<compile_context>
chip_gen: v7x
topology: tpu7x:2x2x1
jax: 0.10.0
libtpu: 0.0.40
codegen_flags: <defaults>
</compile_context>

<pallas_src>
import numpy as np
import jax
import jax.numpy as jnp
from jax.experimental import pallas as pl
from jax.experimental.pallas import tpu as pltpu

# Static model dimensions implied by Linear(80*17, ...) -> seq length 34.
CIN = 4
COUT = 80
KSIZE = 5
PAD = 2
SEQ = 34            # input sequence length
POOLED = SEQ // 2   # 17
KF = KSIZE * CIN + 1  # 21 im2col features (+1 ones row for the folded conv bias)
H1, H2, H3, H4 = 80, 40, 40, 1


def _round_up(n, m):
    return ((n + m - 1) // m) * m


def _choose_tile_b(B, max_tile=512):
    """Pick a lane-aligned (multiple-of-128) batch tile that minimizes padding."""
    b128 = _round_up(B, 128)
    if b128 <= max_tile:
        # Split into two tiles when big enough so the "parallel" grid axis can
        # shard across both TensorCores on v7x while keeping >=256 lanes/tile.
        if b128 >= 512 and b128 % 256 == 0:
            return b128 // 2
        return b128
    best_t, best_pad = 128, _round_up(B, 128) - B
    for t in range(256, max_tile + 1, 128):
        pad = _round_up(B, t) - B
        if pad <= best_pad:       # prefer the largest tile among minimal-pad ones
            best_t, best_pad = t, pad
    return best_t


def deepcpf1_kernel(x_ref, wc_ref, w1_ref, b1_ref, w2_ref, b2_ref,
                    w3_ref, b3_ref, w4_ref, b4_ref, out_ref, s_ref):
    # x_ref : (SEQ, KF, tile_b) bf16   im2col windows + ones row, batch on lanes
    # s_ref : (POOLED*COUT, tile_b) bf16 VMEM scratch for pooled conv features
    wc = wc_ref[...]                                           # (80, 21) bf16

    # Fused Conv1d(+bias) + ReLU + AvgPool1d(2), staged into the fc1 scratch.
    # 17 static iterations; each one is self-contained (no carried accumulator).
    for j in range(POOLED):
        c0 = jnp.maximum(
            jnp.dot(wc, x_ref[2 * j], preferred_element_type=jnp.float32), 0.0)
        c1 = jnp.maximum(
            jnp.dot(wc, x_ref[2 * j + 1], preferred_element_type=jnp.float32), 0.0)
        # AvgPool's 0.5 factor is folded into w1 on the host.
        s_ref[j * COUT:(j + 1) * COUT, :] = (c0 + c1).astype(s_ref.dtype)

    # fc1 as a single big-K contraction: (80, 1360) @ (1360, tile_b).
    h = jnp.dot(w1_ref[...], s_ref[...], preferred_element_type=jnp.float32)
    h = jnp.maximum(h + b1_ref[...], 0.0)                      # (80, tile_b)
    h = jnp.maximum(jnp.dot(w2_ref[...], h.astype(w2_ref.dtype),
                            preferred_element_type=jnp.float32) + b2_ref[...], 0.0)
    h = jnp.maximum(jnp.dot(w3_ref[...], h.astype(w3_ref.dtype),
                            preferred_element_type=jnp.float32) + b3_ref[...], 0.0)
    y = jnp.dot(w4_ref[...], h.astype(w4_ref.dtype),
                preferred_element_type=jnp.float32) + b4_ref[...]   # (1, tile_b)
    out_ref[...] = jax.nn.sigmoid(y)                           # lane-dense store


def _const_spec(arr):
    nd = arr.ndim
    return pl.BlockSpec(arr.shape, lambda i, _nd=nd: (0,) * _nd)


def deepcpf1_pallas(x_ncw, p, max_tile=512):
    """x_ncw: (B, 4, 34) float32 (PyTorch NCW).  Returns (B, 1) float32."""
    B = x_ncw.shape[0]
    tile_b = _choose_tile_b(B, max_tile)
    B_pad = _round_up(B, tile_b)
    n_tiles = B_pad // tile_b

    # ---- host-side layout prep (outside the kernel) ----
    # NCW -> NLC, pad batch to a tile multiple, zero-pad time for the conv.
    x_nlc = jnp.transpose(x_ncw, (0, 2, 1)).astype(jnp.float32)      # (B, 34, 4)
    x_nlc = jnp.pad(x_nlc, ((0, B_pad - B), (PAD, PAD), (0, 0)))     # (B_pad, 38, 4)
    # im2col: x_win[b, t, k*CIN + i] = x_pad[b, t+k, i]; plus a ones feature
    # row so the conv bias folds into the matmul.
    x_win = jnp.concatenate(
        [x_nlc[:, k:k + SEQ, :] for k in range(KSIZE)] +
        [jnp.ones((B_pad, SEQ, 1), jnp.float32)], axis=-1)           # (B_pad, 34, 21)
    # Batch on the minor (lane) axis: (SEQ, KF, B_pad), bf16.
    x_tkb = jnp.transpose(x_win, (1, 2, 0)).astype(jnp.bfloat16)     # (34, 21, B_pad)

    # Conv weight (out, in, k) -> (out, k*CIN + in); bias as the extra column.
    wcT = jnp.transpose(p['conv_w'], (0, 2, 1)).reshape(COUT, KSIZE * CIN)
    wc = jnp.concatenate([wcT, p['conv_b'].reshape(COUT, 1)], axis=1)
    wc = wc.astype(jnp.bfloat16)                                     # (80, 21)

    # fc1 weight (out, c*17+j) -> (out, j*80+c), AvgPool 0.5 folded in.
    w1 = 0.5 * jnp.transpose(p['fc1_w'].reshape(H1, COUT, POOLED), (0, 2, 1))
    w1 = w1.reshape(H1, POOLED * COUT).astype(jnp.bfloat16)          # (80, 1360)
    b1 = p['fc1_b'].reshape(H1, 1).astype(jnp.float32)
    w2 = p['fc2_w'].astype(jnp.bfloat16)                             # (40, 80)
    b2 = p['fc2_b'].reshape(H2, 1).astype(jnp.float32)
    w3 = p['fc3_w'].astype(jnp.bfloat16)                             # (40, 40)
    b3 = p['fc3_b'].reshape(H3, 1).astype(jnp.float32)
    w4 = p['fc4_w'].astype(jnp.bfloat16)                             # (1, 40)
    b4 = p['fc4_b'].reshape(H4, 1).astype(jnp.float32)

    out = pl.pallas_call(
        deepcpf1_kernel,
        out_shape=jax.ShapeDtypeStruct((n_tiles, tile_b), jnp.float32),
        grid_spec=pltpu.PrefetchScalarGridSpec(
            num_scalar_prefetch=0,
            grid=(n_tiles,),
            in_specs=[
                pl.BlockSpec((SEQ, KF, tile_b), lambda i: (0, 0, i)),
                _const_spec(wc),
                _const_spec(w1), _const_spec(b1),
                _const_spec(w2), _const_spec(b2),
                _const_spec(w3), _const_spec(b3),
                _const_spec(w4), _const_spec(b4),
            ],
            # Each grid step owns a lane-dense (1, tile_b) output row.
            out_specs=pl.BlockSpec((1, tile_b), lambda i: (i, 0)),
            scratch_shapes=[pltpu.VMEM((POOLED * COUT, tile_b), jnp.bfloat16)],
        ),
        compiler_params=pltpu.CompilerParams(
            dimension_semantics=("parallel",),
            vmem_limit_bytes=32 * 1024 * 1024,
        ),
    )(x_tkb, wc, w1, b1, w2, b2, w3, b3, w4, b4)

    return out.reshape(B_pad)[:B].reshape(B, 1)


def init_params(key):
    """Deterministic synthetic parameters with PyTorch layer shapes."""
    ks = jax.random.split(key, 10)

    def w(k, shape, scale=0.05):
        return (scale * jax.random.normal(k, shape)).astype(jnp.float32)

    return dict(
        conv_w=w(ks[0], (COUT, CIN, KSIZE)),
        conv_b=w(ks[1], (COUT,)),
        fc1_w=w(ks[2], (H1, COUT * POOLED), 0.02),
        fc1_b=w(ks[3], (H1,)),
        fc2_w=w(ks[4], (H2, H1)),
        fc2_b=w(ks[5], (H2,)),
        fc3_w=w(ks[6], (H3, H2)),
        fc3_b=w(ks[7], (H3,)),
        fc4_w=w(ks[8], (H4, H3)),
        fc4_b=w(ks[9], (H4,)),
    )


def deepcpf1_reference(x, p):
    """Pure-JAX f32 reference mirroring the PyTorch forward (eval mode)."""
    B = x.shape[0]
    y = jax.lax.conv_general_dilated(
        x, p['conv_w'], window_strides=(1,), padding=[(PAD, PAD)],
        dimension_numbers=('NCH', 'OIH', 'NCH'))
    y = jnp.maximum(y + p['conv_b'][None, :, None], 0.0)       # (B, 80, 34)
    y = y.reshape(B, COUT, POOLED, 2).mean(axis=-1)            # AvgPool1d(2)
    v = y.reshape(B, COUT * POOLED)                            # torch .view flatten
    h = jnp.maximum(v @ p['fc1_w'].T + p['fc1_b'], 0.0)
    h = jnp.maximum(h @ p['fc2_w'].T + p['fc2_b'], 0.0)
    h = jnp.maximum(h @ p['fc3_w'].T + p['fc3_b'], 0.0)
    return jax.nn.sigmoid(h @ p['fc4_w'].T + p['fc4_b'])


if __name__ == "__main__":
    key = jax.random.PRNGKey(0)
    kx, kp = jax.random.split(key)
    B = 2
    # Sequence length 34 is dictated by Linear(80*17, 80) after AvgPool1d(2).
    x = jax.random.normal(kx, (B, CIN, SEQ), dtype=jnp.float32)
    params = init_params(kp)

    out = deepcpf1_pallas(x, params)
    out = jax.block_until_ready(out)
    assert out.shape == (B, 1)

    ref = deepcpf1_reference(x, params)
    np.testing.assert_allclose(np.asarray(out), np.asarray(ref),
                               atol=2e-2, rtol=2e-2)
    print("KERNEL_OK")
</pallas_src>

<mosaic_0001>
module attributes {stable_mosaic.version = 11 : i64} {
  func.func @deepcpf1_kernel(%arg0: i32, %arg1: memref<34x21x128xbf16, #tpu.memory_space<vmem>>, %arg2: memref<80x21xbf16, #tpu.memory_space<vmem>>, %arg3: memref<80x1360xbf16, #tpu.memory_space<vmem>>, %arg4: memref<80x1xf32, #tpu.memory_space<vmem>>, %arg5: memref<40x80xbf16, #tpu.memory_space<vmem>>, %arg6: memref<40x1xf32, #tpu.memory_space<vmem>>, %arg7: memref<40x40xbf16, #tpu.memory_space<vmem>>, %arg8: memref<40x1xf32, #tpu.memory_space<vmem>>, %arg9: memref<1x40xbf16, #tpu.memory_space<vmem>>, %arg10: memref<1x1xf32, #tpu.memory_space<vmem>>, %arg11: memref<1x128xf32, #tpu.memory_space<vmem>>, %arg12: memref<1360x128xbf16, #tpu.memory_space<vmem>>) attributes {dimension_semantics = [#tpu.dimension_semantics<parallel>], iteration_bounds = array<i64: 1>, scalar_prefetch = 0 : i64, scratch_operands = 1 : i64, tpu.core_type = #tpu.core_type<tc>, window_params = [{transform_indices = @transform_0, window_bounds = array<i64: 34, 21, 128>}, {pipeline_mode = #tpu.pipeline_mode<synchronous>, transform_indices = @transform_1, window_bounds = array<i64: 80, 21>}, {pipeline_mode = #tpu.pipeline_mode<synchronous>, transform_indices = @transform_2, window_bounds = array<i64: 80, 1360>}, {pipeline_mode = #tpu.pipeline_mode<synchronous>, transform_indices = @transform_3, window_bounds = array<i64: 80, 1>}, {pipeline_mode = #tpu.pipeline_mode<synchronous>, transform_indices = @transform_4, window_bounds = array<i64: 40, 80>}, {pipeline_mode = #tpu.pipeline_mode<synchronous>, transform_indices = @transform_5, window_bounds = array<i64: 40, 1>}, {pipeline_mode = #tpu.pipeline_mode<synchronous>, transform_indices = @transform_6, window_bounds = array<i64: 40, 40>}, {pipeline_mode = #tpu.pipeline_mode<synchronous>, transform_indices = @transform_7, window_bounds = array<i64: 40, 1>}, {pipeline_mode = #tpu.pipeline_mode<synchronous>, transform_indices = @transform_8, window_bounds = array<i64: 1, 40>}, {pipeline_mode = #tpu.pipeline_mode<synchronous>, transform_indices = @transform_9, window_bounds = array<i64: 1, 1>}, {transform_indices = @transform_10, window_bounds = array<i64: 1, 128>}]} {
    %c0 = arith.constant 0 : index
    %c0_0 = arith.constant 0 : index
    %0 = vector.load %arg2[%c0, %c0_0] : memref<80x21xbf16, #tpu.memory_space<vmem>>, vector<80x21xbf16>
    %c0_1 = arith.constant 0 : index
    %c0_2 = arith.constant 0 : index
    %c0_3 = arith.constant 0 : index
    %1 = vector.load %arg1[%c0_1, %c0_2, %c0_3] : memref<34x21x128xbf16, #tpu.memory_space<vmem>>, vector<1x21x128xbf16>
    %2 = vector.shape_cast %1 : vector<1x21x128xbf16> to vector<21x128xbf16>
    %cst = arith.constant dense<0.000000e+00> : vector<80x128xf32>
    %3 = tpu.matmul %0, %2, %cst {dimension_numbers = #tpu.dot_dimension_numbers<[1], [0], [0], [1], [0, 0, 1, 1], [], []>} : vector<80x21xbf16>, vector<21x128xbf16>, vector<80x128xf32> -> vector<80x128xf32>
    %cst_4 = arith.constant 0.000000e+00 : f32
    %4 = vector.broadcast %cst_4 : f32 to vector<80x128xf32>
    %5 = arith.maximumf %3, %4 : vector<80x128xf32>
    %c1 = arith.constant 1 : index
    %c0_5 = arith.constant 0 : index
    %c0_6 = arith.constant 0 : index
    %6 = vector.load %arg1[%c1, %c0_5, %c0_6] : memref<34x21x128xbf16, #tpu.memory_space<vmem>>, vector<1x21x128xbf16>
    %7 = vector.shape_cast %6 : vector<1x21x128xbf16> to vector<21x128xbf16>
    %cst_7 = arith.constant dense<0.000000e+00> : vector<80x128xf32>
    %8 = tpu.matmul %0, %7, %cst_7 {dimension_numbers = #tpu.dot_dimension_numbers<[1], [0], [0], [1], [0, 0, 1, 1], [], []>} : vector<80x21xbf16>, vector<21x128xbf16>, vector<80x128xf32> -> vector<80x128xf32>
    %cst_8 = arith.constant 0.000000e+00 : f32
    %9 = vector.broadcast %cst_8 : f32 to vector<80x128xf32>
    %10 = arith.maximumf %8, %9 : vector<80x128xf32>
    %11 = arith.addf %5, %10 : vector<80x128xf32>
    %12 = arith.truncf %11 : vector<80x128xf32> to vector<80x128xbf16>
    %c0_9 = arith.constant 0 : index
    %c0_10 = arith.constant 0 : index
    %13 = vector.load %arg12[%c0_9, %c0_10] : memref<1360x128xbf16, #tpu.memory_space<vmem>>, vector<80x128xbf16>
    tpu.vector_store %arg12[%c0_9, %c0_10], %12 {strides = array<i32>} : memref<1360x128xbf16, #tpu.memory_space<vmem>>, vector<80x128xbf16>,
    %c2 = arith.constant 2 : index
    %c0_11 = arith.constant 0 : index
    %c0_12 = arith.constant 0 : index
    %14 = vector.load %arg1[%c2, %c0_11, %c0_12] : memref<34x21x128xbf16, #tpu.memory_space<vmem>>, vector<1x21x128xbf16>
    %15 = vector.shape_cast %14 : vector<1x21x128xbf16> to vector<21x128xbf16>
    %cst_13 = arith.constant dense<0.000000e+00> : vector<80x128xf32>
    %16 = tpu.matmul %0, %15, %cst_13 {dimension_numbers = #tpu.dot_dimension_numbers<[1], [0], [0], [1], [0, 0, 1, 1], [], []>} : vector<80x21xbf16>, vector<21x128xbf16>, vector<80x128xf32> -> vector<80x128xf32>
    %cst_14 = arith.constant 0.000000e+00 : f32
    %17 = vector.broadcast %cst_14 : f32 to vector<80x128xf32>
    %18 = arith.maximumf %16, %17 : vector<80x128xf32>
    %c3 = arith.constant 3 : index
    %c0_15 = arith.constant 0 : index
    %c0_16 = arith.constant 0 : index
    %19 = vector.load %arg1[%c3, %c0_15, %c0_16] : memref<34x21x128xbf16, #tpu.memory_space<vmem>>, vector<1x21x128xbf16>
    %20 = vector.shape_cast %19 : vector<1x21x128xbf16> to vector<21x128xbf16>
    %cst_17 = arith.constant dense<0.000000e+00> : vector<80x128xf32>
    %21 = tpu.matmul %0, %20, %cst_17 {dimension_numbers = #tpu.dot_dimension_numbers<[1], [0], [0], [1], [0, 0, 1, 1], [], []>} : vector<80x21xbf16>, vector<21x128xbf16>, vector<80x128xf32> -> vector<80x128xf32>
    %cst_18 = arith.constant 0.000000e+00 : f32
    %22 = vector.broadcast %cst_18 : f32 to vector<80x128xf32>
    %23 = arith.maximumf %21, %22 : vector<80x128xf32>
    %24 = arith.addf %18, %23 : vector<80x128xf32>
    %25 = arith.truncf %24 : vector<80x128xf32> to vector<80x128xbf16>
    %c80 = arith.constant 80 : index
    %c0_19 = arith.constant 0 : index
    %26 = vector.load %arg12[%c80, %c0_19] : memref<1360x128xbf16, #tpu.memory_space<vmem>>, vector<80x128xbf16>
    tpu.vector_store %arg12[%c80, %c0_19], %25 {strides = array<i32>} : memref<1360x128xbf16, #tpu.memory_space<vmem>>, vector<80x128xbf16>,
    %c4 = arith.constant 4 : index
    %c0_20 = arith.constant 0 : index
    %c0_21 = arith.constant 0 : index
    %27 = vector.load %arg1[%c4, %c0_20, %c0_21] : memref<34x21x128xbf16, #tpu.memory_space<vmem>>, vector<1x21x128xbf16>
    %28 = vector.shape_cast %27 : vector<1x21x128xbf16> to vector<21x128xbf16>
    %cst_22 = arith.constant dense<0.000000e+00> : vector<80x128xf32>
    %29 = tpu.matmul %0, %28, %cst_22 {dimension_numbers = #tpu.dot_dimension_numbers<[1], [0], [0], [1], [0, 0, 1, 1], [], []>} : vector<80x21xbf16>, vector<21x128xbf16>, vector<80x128xf32> -> vector<80x128xf32>
    %cst_23 = arith.constant 0.000000e+00 : f32
    %30 = vector.broadcast %cst_23 : f32 to vector<80x128xf32>
    %31 = arith.maximumf %29, %30 : vector<80x128xf32>
    %c5 = arith.constant 5 : index
    %c0_24 = arith.constant 0 : index
    %c0_25 = arith.constant 0 : index
    %32 = vector.load %arg1[%c5, %c0_24, %c0_25] : memref<34x21x128xbf16, #tpu.memory_space<vmem>>, vector<1x21x128xbf16>
    %33 = vector.shape_cast %32 : vector<1x21x128xbf16> to vector<21x128xbf16>
    %cst_26 = arith.constant dense<0.000000e+00> : vector<80x128xf32>
    %34 = tpu.matmul %0, %33, %cst_26 {dimension_numbers = #tpu.dot_dimension_numbers<[1], [0], [0], [1], [0, 0, 1, 1], [], []>} : vector<80x21xbf16>, vector<21x128xbf16>, vector<80x128xf32> -> vector<80x128xf32>
    %cst_27 = arith.constant 0.000000e+00 : f32
    %35 = vector.broadcast %cst_27 : f32 to vector<80x128xf32>
    %36 = arith.maximumf %34, %35 : vector<80x128xf32>
    %37 = arith.addf %31, %36 : vector<80x128xf32>
    %38 = arith.truncf %37 : vector<80x128xf32> to vector<80x128xbf16>
    %c160 = arith.constant 160 : index
    %c0_28 = arith.constant 0 : index
    %39 = vector.load %arg12[%c160, %c0_28] : memref<1360x128xbf16, #tpu.memory_space<vmem>>, vector<80x128xbf16>
    tpu.vector_store %arg12[%c160, %c0_28], %38 {strides = array<i32>} : memref<1360x128xbf16, #tpu.memory_space<vmem>>, vector<80x128xbf16>,
    %c6 = arith.constant 6 : index
    %c0_29 = arith.constant 0 : index
    %c0_30 = arith.constant 0 : index
    %40 = vector.load %arg1[%c6, %c0_29, %c0_30] : memref<34x21x128xbf16, #tpu.memory_space<vmem>>, vector<1x21x128xbf16>
    %41 = vector.shape_cast %40 : vector<1x21x128xbf16> to vector<21x128xbf16>
    %cst_31 = arith.constant dense<0.000000e+00> : vector<80x128xf32>
    %42 = tpu.matmul %0, %41, %cst_31 {dimension_numbers = #tpu.dot_dimension_numbers<[1], [0], [0], [1], [0, 0, 1, 1], [], []>} : vector<80x21xbf16>, vector<21x128xbf16>, vector<80x128xf32> -> vector<80x128xf32>
    %cst_32 = arith.constant 0.000000e+00 : f32
    %43 = vector.broadcast %cst_32 : f32 to vector<80x128xf32>
    %44 = arith.maximumf %42, %43 : vector<80x128xf32>
    %c7 = arith.constant 7 : index
    %c0_33 = arith.constant 0 : index
    %c0_34 = arith.constant 0 : index
    %45 = vector.load %arg1[%c7, %c0_33, %c0_34] : memref<34x21x128xbf16, #tpu.memory_space<vmem>>, vector<1x21x128xbf16>
    %46 = vector.shape_cast %45 : vector<1x21x128xbf16> to vector<21x128xbf16>
    %cst_35 = arith.constant dense<0.000000e+00> : vector<80x128xf32>
    %47 = tpu.matmul %0, %46, %cst_35 {dimension_numbers = #tpu.dot_dimension_numbers<[1], [0], [0], [1], [0, 0, 1, 1], [], []>} : vector<80x21xbf16>, vector<21x128xbf16>, vector<80x128xf32> -> vector<80x128xf32>
    %cst_36 = arith.constant 0.000000e+00 : f32
    %48 = vector.broadcast %cst_36 : f32 to vector<80x128xf32>
    %49 = arith.maximumf %47, %48 : vector<80x128xf32>
    %50 = arith.addf %44, %49 : vector<80x128xf32>
    %51 = arith.truncf %50 : vector<80x128xf32> to vector<80x128xbf16>
    %c240 = arith.constant 240 : index
    %c0_37 = arith.constant 0 : index
    %52 = vector.load %arg12[%c240, %c0_37] : memref<1360x128xbf16, #tpu.memory_space<vmem>>, vector<80x128xbf16>
    tpu.vector_store %arg12[%c240, %c0_37], %51 {strides = array<i32>} : memref<1360x128xbf16, #tpu.memory_space<vmem>>, vector<80x128xbf16>,
    %c8 = arith.constant 8 : index
    %c0_38 = arith.constant 0 : index
    %c0_39 = arith.constant 0 : index
    %53 = vector.load %arg1[%c8, %c0_38, %c0_39] : memref<34x21x128xbf16, #tpu.memory_space<vmem>>, vector<1x21x128xbf16>
    %54 = vector.shape_cast %53 : vector<1x21x128xbf16> to vector<21x128xbf16>
    %cst_40 = arith.constant dense<0.000000e+00> : vector<80x128xf32>
    %55 = tpu.matmul %0, %54, %cst_40 {dimension_numbers = #tpu.dot_dimension_numbers<[1], [0], [0], [1], [0, 0, 1, 1], [], []>} : vector<80x21xbf16>, vector<21x128xbf16>, vector<80x128xf32> -> vector<80x128xf32>
    %cst_41 = arith.constant 0.000000e+00 : f32
    %56 = vector.broadcast %cst_41 : f32 to vector<80x128xf32>
    %57 = arith.maximumf %55, %56 : vector<80x128xf32>
    %c9 = arith.constant 9 : index
    %c0_42 = arith.constant 0 : index
    %c0_43 = arith.constant 0 : index
    %58 = vector.load %arg1[%c9, %c0_42, %c0_43] : memref<34x21x128xbf16, #tpu.memory_space<vmem>>, vector<1x21x128xbf16>
    %59 = vector.shape_cast %58 : vector<1x21x128xbf16> to vector<21x128xbf16>
    %cst_44 = arith.constant dense<0.000000e+00> : vector<80x128xf32>
    %60 = tpu.matmul %0, %59, %cst_44 {dimension_numbers = #tpu.dot_dimension_numbers<[1], [0], [0], [1], [0, 0, 1, 1], [], []>} : vector<80x21xbf16>, vector<21x128xbf16>, vector<80x128xf32> -> vector<80x128xf32>
    %cst_45 = arith.constant 0.000000e+00 : f32
    %61 = vector.broadcast %cst_45 : f32 to vector<80x128xf32>
    %62 = arith.maximumf %60, %61 : vector<80x128xf32>
    %63 = arith.addf %57, %62 : vector<80x128xf32>
    %64 = arith.truncf %63 : vector<80x128xf32> to vector<80x128xbf16>
    %c320 = arith.constant 320 : index
    %c0_46 = arith.constant 0 : index
    %65 = vector.load %arg12[%c320, %c0_46] : memref<1360x128xbf16, #tpu.memory_space<vmem>>, vector<80x128xbf16>
    tpu.vector_store %arg12[%c320, %c0_46], %64 {strides = array<i32>} : memref<1360x128xbf16, #tpu.memory_space<vmem>>, vector<80x128xbf16>,
    %c10 = arith.constant 10 : index
    %c0_47 = arith.constant 0 : index
    %c0_48 = arith.constant 0 : index
    %66 = vector.load %arg1[%c10, %c0_47, %c0_48] : memref<34x21x128xbf16, #tpu.memory_space<vmem>>, vector<1x21x128xbf16>
    %67 = vector.shape_cast %66 : vector<1x21x128xbf16> to vector<21x128xbf16>
    %cst_49 = arith.constant dense<0.000000e+00> : vector<80x128xf32>
    %68 = tpu.matmul %0, %67, %cst_49 {dimension_numbers = #tpu.dot_dimension_numbers<[1], [0], [0], [1], [0, 0, 1, 1], [], []>} : vector<80x21xbf16>, vector<21x128xbf16>, vector<80x128xf32> -> vector<80x128xf32>
    %cst_50 = arith.constant 0.000000e+00 : f32
    %69 = vector.broadcast %cst_50 : f32 to vector<80x128xf32>
    %70 = arith.maximumf %68, %69 : vector<80x128xf32>
    %c11 = arith.constant 11 : index
    %c0_51 = arith.constant 0 : index
    %c0_52 = arith.constant 0 : index
    %71 = vector.load %arg1[%c11, %c0_51, %c0_52] : memref<34x21x128xbf16, #tpu.memory_space<vmem>>, vector<1x21x128xbf16>
    %72 = vector.shape_cast %71 : vector<1x21x128xbf16> to vector<21x128xbf16>
    %cst_53 = arith.constant dense<0.000000e+00> : vector<80x128xf32>
    %73 = tpu.matmul %0, %72, %cst_53 {dimension_numbers = #tpu.dot_dimension_numbers<[1], [0], [0], [1], [0, 0, 1, 1], [], []>} : vector<80x21xbf16>, vector<21x128xbf16>, vector<80x128xf32> -> vector<80x128xf32>
    %cst_54 = arith.constant 0.000000e+00 : f32
    %74 = vector.broadcast %cst_54 : f32 to vector<80x128xf32>
    %75 = arith.maximumf %73, %74 : vector<80x128xf32>
    %76 = arith.addf %70, %75 : vector<80x128xf32>
    %77 = arith.truncf %76 : vector<80x128xf32> to vector<80x128xbf16>
    %c400 = arith.constant 400 : index
    %c0_55 = arith.constant 0 : index
    %78 = vector.load %arg12[%c400, %c0_55] : memref<1360x128xbf16, #tpu.memory_space<vmem>>, vector<80x128xbf16>
    tpu.vector_store %arg12[%c400, %c0_55], %77 {strides = array<i32>} : memref<1360x128xbf16, #tpu.memory_space<vmem>>, vector<80x128xbf16>,
    %c12 = arith.constant 12 : index
    %c0_56 = arith.constant 0 : index
    %c0_57 = arith.constant 0 : index
    %79 = vector.load %arg1[%c12, %c0_56, %c0_57] : memref<34x21x128xbf16, #tpu.memory_space<vmem>>, vector<1x21x128xbf16>
    %80 = vector.shape_cast %79 : vector<1x21x128xbf16> to vector<21x128xbf16>
    %cst_58 = arith.constant dense<0.000000e+00> : vector<80x128xf32>
    %81 = tpu.matmul %0, %80, %cst_58 {dimension_numbers = #tpu.dot_dimension_numbers<[1], [0], [0], [1], [0, 0, 1, 1], [], []>} : vector<80x21xbf16>, vector<21x128xbf16>, vector<80x128xf32> -> vector<80x128xf32>
    %cst_59 = arith.constant 0.000000e+00 : f32
    %82 = vector.broadcast %cst_59 : f32 to vector<80x128xf32>
    %83 = arith.maximumf %81, %82 : vector<80x128xf32>
    %c13 = arith.constant 13 : index
    %c0_60 = arith.constant 0 : index
    %c0_61 = arith.constant 0 : index
    %84 = vector.load %arg1[%c13, %c0_60, %c0_61] : memref<34x21x128xbf16, #tpu.memory_space<vmem>>, vector<1x21x128xbf16>
    %85 = vector.shape_cast %84 : vector<1x21x128xbf16> to vector<21x128xbf16>
    %cst_62 = arith.constant dense<0.000000e+00> : vector<80x128xf32>
    %86 = tpu.matmul %0, %85, %cst_62 {dimension_numbers = #tpu.dot_dimension_numbers<[1], [0], [0], [1], [0, 0, 1, 1], [], []>} : vector<80x21xbf16>, vector<21x128xbf16>, vector<80x128xf32> -> vector<80x128xf32>
    %cst_63 = arith.constant 0.000000e+00 : f32
    %87 = vector.broadcast %cst_63 : f32 to vector<80x128xf32>
    %88 = arith.maximumf %86, %87 : vector<80x128xf32>
    %89 = arith.addf %83, %88 : vector<80x128xf32>
    %90 = arith.truncf %89 : vector<80x128xf32> to vector<80x128xbf16>
    %c480 = arith.constant 480 : index
    %c0_64 = arith.constant 0 : index
    %91 = vector.load %arg12[%c480, %c0_64] : memref<1360x128xbf16, #tpu.memory_space<vmem>>, vector<80x128xbf16>
    tpu.vector_store %arg12[%c480, %c0_64], %90 {strides = array<i32>} : memref<1360x128xbf16, #tpu.memory_space<vmem>>, vector<80x128xbf16>,
    %c14 = arith.constant 14 : index
    %c0_65 = arith.constant 0 : index
    %c0_66 = arith.constant 0 : index
    %92 = vector.load %arg1[%c14, %c0_65, %c0_66] : memref<34x21x128xbf16, #tpu.memory_space<vmem>>, vector<1x21x128xbf16>
    %93 = vector.shape_cast %92 : vector<1x21x128xbf16> to vector<21x128xbf16>
    %cst_67 = arith.constant dense<0.000000e+00> : vector<80x128xf32>
    %94 = tpu.matmul %0, %93, %cst_67 {dimension_numbers = #tpu.dot_dimension_numbers<[1], [0], [0], [1], [0, 0, 1, 1], [], []>} : vector<80x21xbf16>, vector<21x128xbf16>, vector<80x128xf32> -> vector<80x128xf32>
    %cst_68 = arith.constant 0.000000e+00 : f32
    %95 = vector.broadcast %cst_68 : f32 to vector<80x128xf32>
    %96 = arith.maximumf %94, %95 : vector<80x128xf32>
    %c15 = arith.constant 15 : index
    %c0_69 = arith.constant 0 : index
    %c0_70 = arith.constant 0 : index
    %97 = vector.load %arg1[%c15, %c0_69, %c0_70] : memref<34x21x128xbf16, #tpu.memory_space<vmem>>, vector<1x21x128xbf16>
    %98 = vector.shape_cast %97 : vector<1x21x128xbf16> to vector<21x128xbf16>
    %cst_71 = arith.constant dense<0.000000e+00> : vector<80x128xf32>
    %99 = tpu.matmul %0, %98, %cst_71 {dimension_numbers = #tpu.dot_dimension_numbers<[1], [0], [0], [1], [0, 0, 1, 1], [], []>} : vector<80x21xbf16>, vector<21x128xbf16>, vector<80x128xf32> -> vector<80x128xf32>
    %cst_72 = arith.constant 0.000000e+00 : f32
    %100 = vector.broadcast %cst_72 : f32 to vector<80x128xf32>
    %101 = arith.maximumf %99, %100 : vector<80x128xf32>
    %102 = arith.addf %96, %101 : vector<80x128xf32>
    %103 = arith.truncf %102 : vector<80x128xf32> to vector<80x128xbf16>
    %c560 = arith.constant 560 : index
    %c0_73 = arith.constant 0 : index
    %104 = vector.load %arg12[%c560, %c0_73] : memref<1360x128xbf16, #tpu.memory_space<vmem>>, vector<80x128xbf16>
    tpu.vector_store %arg12[%c560, %c0_73], %103 {strides = array<i32>} : memref<1360x128xbf16, #tpu.memory_space<vmem>>, vector<80x128xbf16>,
    %c16 = arith.constant 16 : index
    %c0_74 = arith.constant 0 : index
    %c0_75 = arith.constant 0 : index
    %105 = vector.load %arg1[%c16, %c0_74, %c0_75] : memref<34x21x128xbf16, #tpu.memory_space<vmem>>, vector<1x21x128xbf16>
    %106 = vector.shape_cast %105 : vector<1x21x128xbf16> to vector<21x128xbf16>
    %cst_76 = arith.constant dense<0.000000e+00> : vector<80x128xf32>
    %107 = tpu.matmul %0, %106, %cst_76 {dimension_numbers = #tpu.dot_dimension_numbers<[1], [0], [0], [1], [0, 0, 1, 1], [], []>} : vector<80x21xbf16>, vector<21x128xbf16>, vector<80x128xf32> -> vector<80x128xf32>
    %cst_77 = arith.constant 0.000000e+00 : f32
    %108 = vector.broadcast %cst_77 : f32 to vector<80x128xf32>
    %109 = arith.maximumf %107, %108 : vector<80x128xf32>
    %c17 = arith.constant 17 : index
    %c0_78 = arith.constant 0 : index
    %c0_79 = arith.constant 0 : index
    %110 = vector.load %arg1[%c17, %c0_78, %c0_79] : memref<34x21x128xbf16, #tpu.memory_space<vmem>>, vector<1x21x128xbf16>
    %111 = vector.shape_cast %110 : vector<1x21x128xbf16> to vector<21x128xbf16>
    %cst_80 = arith.constant dense<0.000000e+00> : vector<80x128xf32>
    %112 = tpu.matmul %0, %111, %cst_80 {dimension_numbers = #tpu.dot_dimension_numbers<[1], [0], [0], [1], [0, 0, 1, 1], [], []>} : vector<80x21xbf16>, vector<21x128xbf16>, vector<80x128xf32> -> vector<80x128xf32>
    %cst_81 = arith.constant 0.000000e+00 : f32
    %113 = vector.broadcast %cst_81 : f32 to vector<80x128xf32>
    %114 = arith.maximumf %112, %113 : vector<80x128xf32>
    %115 = arith.addf %109, %114 : vector<80x128xf32>
    %116 = arith.truncf %115 : vector<80x128xf32> to vector<80x128xbf16>
    %c640 = arith.constant 640 : index
    %c0_82 = arith.constant 0 : index
    %117 = vector.load %arg12[%c640, %c0_82] : memref<1360x128xbf16, #tpu.memory_space<vmem>>, vector<80x128xbf16>
    tpu.vector_store %arg12[%c640, %c0_82], %116 {strides = array<i32>} : memref<1360x128xbf16, #tpu.memory_space<vmem>>, vector<80x128xbf16>,
    %c18 = arith.constant 18 : index
    %c0_83 = arith.constant 0 : index
    %c0_84 = arith.constant 0 : index
    %118 = vector.load %arg1[%c18, %c0_83, %c0_84] : memref<34x21x128xbf16, #tpu.memory_space<vmem>>, vector<1x21x128xbf16>
    %119 = vector.shape_cast %118 : vector<1x21x128xbf16> to vector<21x128xbf16>
    %cst_85 = arith.constant dense<0.000000e+00> : vector<80x128xf32>
    %120 = tpu.matmul %0, %119, %cst_85 {dimension_numbers = #tpu.dot_dimension_numbers<[1], [0], [0], [1], [0, 0, 1, 1], [], []>} : vector<80x21xbf16>, vector<21x128xbf16>, vector<80x128xf32> -> vector<80x128xf32>
    %cst_86 = arith.constant 0.000000e+00 : f32
    %121 = vector.broadcast %cst_86 : f32 to vector<80x128xf32>
    %122 = arith.maximumf %120, %121 : vector<80x128xf32>
    %c19 = arith.constant 19 : index
    %c0_87 = arith.constant 0 : index
    %c0_88 = arith.constant 0 : index
    %123 = vector.load %arg1[%c19, %c0_87, %c0_88] : memref<34x21x128xbf16, #tpu.memory_space<vmem>>, vector<1x21x128xbf16>
    %124 = vector.shape_cast %123 : vector<1x21x128xbf16> to vector<21x128xbf16>
    %cst_89 = arith.constant dense<0.000000e+00> : vector<80x128xf32>
    %125 = tpu.matmul %0, %124, %cst_89 {dimension_numbers = #tpu.dot_dimension_numbers<[1], [0], [0], [1], [0, 0, 1, 1], [], []>} : vector<80x21xbf16>, vector<21x128xbf16>, vector<80x128xf32> -> vector<80x128xf32>
    %cst_90 = arith.constant 0.000000e+00 : f32
    %126 = vector.broadcast %cst_90 : f32 to vector<80x128xf32>
    %127 = arith.maximumf %125, %126 : vector<80x128xf32>
    %128 = arith.addf %122, %127 : vector<80x128xf32>
    %129 = arith.truncf %128 : vector<80x128xf32> to vector<80x128xbf16>
    %c720 = arith.constant 720 : index
    %c0_91 = arith.constant 0 : index
    %130 = vector.load %arg12[%c720, %c0_91] : memref<1360x128xbf16, #tpu.memory_space<vmem>>, vector<80x128xbf16>
    tpu.vector_store %arg12[%c720, %c0_91], %129 {strides = array<i32>} : memref<1360x128xbf16, #tpu.memory_space<vmem>>, vector<80x128xbf16>,
    %c20 = arith.constant 20 : index
    %c0_92 = arith.constant 0 : index
    %c0_93 = arith.constant 0 : index
    %131 = vector.load %arg1[%c20, %c0_92, %c0_93] : memref<34x21x128xbf16, #tpu.memory_space<vmem>>, vector<1x21x128xbf16>
    %132 = vector.shape_cast %131 : vector<1x21x128xbf16> to vector<21x128xbf16>
    %cst_94 = arith.constant dense<0.000000e+00> : vector<80x128xf32>
    %133 = tpu.matmul %0, %132, %cst_94 {dimension_numbers = #tpu.dot_dimension_numbers<[1], [0], [0], [1], [0, 0, 1, 1], [], []>} : vector<80x21xbf16>, vector<21x128xbf16>, vector<80x128xf32> -> vector<80x128xf32>
    %cst_95 = arith.constant 0.000000e+00 : f32
    %134 = vector.broadcast %cst_95 : f32 to vector<80x128xf32>
    %135 = arith.maximumf %133, %134 : vector<80x128xf32>
    %c21 = arith.constant 21 : index
    %c0_96 = arith.constant 0 : index
    %c0_97 = arith.constant 0 : index
    %136 = vector.load %arg1[%c21, %c0_96, %c0_97] : memref<34x21x128xbf16, #tpu.memory_space<vmem>>, vector<1x21x128xbf16>
    %137 = vector.shape_cast %136 : vector<1x21x128xbf16> to vector<21x128xbf16>
    %cst_98 = arith.constant dense<0.000000e+00> : vector<80x128xf32>
    %138 = tpu.matmul %0, %137, %cst_98 {dimension_numbers = #tpu.dot_dimension_numbers<[1], [0], [0], [1], [0, 0, 1, 1], [], []>} : vector<80x21xbf16>, vector<21x128xbf16>, vector<80x128xf32> -> vector<80x128xf32>
    %cst_99 = arith.constant 0.000000e+00 : f32
    %139 = vector.broadcast %cst_99 : f32 to vector<80x128xf32>
    %140 = arith.maximumf %138, %139 : vector<80x128xf32>
    %141 = arith.addf %135, %140 : vector<80x128xf32>
    %142 = arith.truncf %141 : vector<80x128xf32> to vector<80x128xbf16>
    %c800 = arith.constant 800 : index
    %c0_100 = arith.constant 0 : index
    %143 = vector.load %arg12[%c800, %c0_100] : memref<1360x128xbf16, #tpu.memory_space<vmem>>, vector<80x128xbf16>
    tpu.vector_store %arg12[%c800, %c0_100], %142 {strides = array<i32>} : memref<1360x128xbf16, #tpu.memory_space<vmem>>, vector<80x128xbf16>,
    %c22 = arith.constant 22 : index
    %c0_101 = arith.constant 0 : index
    %c0_102 = arith.constant 0 : index
    %144 = vector.load %arg1[%c22, %c0_101, %c0_102] : memref<34x21x128xbf16, #tpu.memory_space<vmem>>, vector<1x21x128xbf16>
    %145 = vector.shape_cast %144 : vector<1x21x128xbf16> to vector<21x128xbf16>
    %cst_103 = arith.constant dense<0.000000e+00> : vector<80x128xf32>
    %146 = tpu.matmul %0, %145, %cst_103 {dimension_numbers = #tpu.dot_dimension_numbers<[1], [0], [0], [1], [0, 0, 1, 1], [], []>} : vector<80x21xbf16>, vector<21x128xbf16>, vector<80x128xf32> -> vector<80x128xf32>
    %cst_104 = arith.constant 0.000000e+00 : f32
    %147 = vector.broadcast %cst_104 : f32 to vector<80x128xf32>
    %148 = arith.maximumf %146, %147 : vector<80x128xf32>
    %c23 = arith.constant 23 : index
    %c0_105 = arith.constant 0 : index
    %c0_106 = arith.constant 0 : index
    %149 = vector.load %arg1[%c23, %c0_105, %c0_106] : memref<34x21x128xbf16, #tpu.memory_space<vmem>>, vector<1x21x128xbf16>
    %150 = vector.shape_cast %149 : vector<1x21x128xbf16> to vector<21x128xbf16>
    %cst_107 = arith.constant dense<0.000000e+00> : vector<80x128xf32>
    %151 = tpu.matmul %0, %150, %cst_107 {dimension_numbers = #tpu.dot_dimension_numbers<[1], [0], [0], [1], [0, 0, 1, 1], [], []>} : vector<80x21xbf16>, vector<21x128xbf16>, vector<80x128xf32> -> vector<80x128xf32>
    %cst_108 = arith.constant 0.000000e+00 : f32
    %152 = vector.broadcast %cst_108 : f32 to vector<80x128xf32>
    %153 = arith.maximumf %151, %152 : vector<80x128xf32>
    %154 = arith.addf %148, %153 : vector<80x128xf32>
    %155 = arith.truncf %154 : vector<80x128xf32> to vector<80x128xbf16>
    %c880 = arith.constant 880 : index
    %c0_109 = arith.constant 0 : index
    %156 = vector.load %arg12[%c880, %c0_109] : memref<1360x128xbf16, #tpu.memory_space<vmem>>, vector<80x128xbf16>
    tpu.vector_store %arg12[%c880, %c0_109], %155 {strides = array<i32>} : memref<1360x128xbf16, #tpu.memory_space<vmem>>, vector<80x128xbf16>,
    %c24 = arith.constant 24 : index
    %c0_110 = arith.constant 0 : index
    %c0_111 = arith.constant 0 : index
    %157 = vector.load %arg1[%c24, %c0_110, %c0_111] : memref<34x21x128xbf16, #tpu.memory_space<vmem>>, vector<1x21x128xbf16>
    %158 = vector.shape_cast %157 : vector<1x21x128xbf16> to vector<21x128xbf16>
    %cst_112 = arith.constant dense<0.000000e+00> : vector<80x128xf32>
    %159 = tpu.matmul %0, %158, %cst_112 {dimension_numbers = #tpu.dot_dimension_numbers<[1], [0], [0], [1], [0, 0, 1, 1], [], []>} : vector<80x21xbf16>, vector<21x128xbf16>, vector<80x128xf32> -> vector<80x128xf32>
    %cst_113 = arith.constant 0.000000e+00 : f32
    %160 = vector.broadcast %cst_113 : f32 to vector<80x128xf32>
    %161 = arith.maximumf %159, %160 : vector<80x128xf32>
    %c25 = arith.constant 25 : index
    %c0_114 = arith.constant 0 : index
    %c0_115 = arith.constant 0 : index
    %162 = vector.load %arg1[%c25, %c0_114, %c0_115] : memref<34x21x128xbf16, #tpu.memory_space<vmem>>, vector<1x21x128xbf16>
    %163 = vector.shape_cast %162 : vector<1x21x128xbf16> to vector<21x128xbf16>
    %cst_116 = arith.constant dense<0.000000e+00> : vector<80x128xf32>
    %164 = tpu.matmul %0, %163, %cst_116 {dimension_numbers = #tpu.dot_dimension_numbers<[1], [0], [0], [1], [0, 0, 1, 1], [], []>} : vector<80x21xbf16>, vector<21x128xbf16>, vector<80x128xf32> -> vector<80x128xf32>
    %cst_117 = arith.constant 0.000000e+00 : f32
    %165 = vector.broadcast %cst_117 : f32 to vector<80x128xf32>
    %166 = arith.maximumf %164, %165 : vector<80x128xf32>
    %167 = arith.addf %161, %166 : vector<80x128xf32>
    %168 = arith.truncf %167 : vector<80x128xf32> to vector<80x128xbf16>
    %c960 = arith.constant 960 : index
    %c0_118 = arith.constant 0 : index
    %169 = vector.load %arg12[%c960, %c0_118] : memref<1360x128xbf16, #tpu.memory_space<vmem>>, vector<80x128xbf16>
    tpu.vector_store %arg12[%c960, %c0_118], %168 {strides = array<i32>} : memref<1360x128xbf16, #tpu.memory_space<vmem>>, vector<80x128xbf16>,
    %c26 = arith.constant 26 : index
    %c0_119 = arith.constant 0 : index
    %c0_120 = arith.constant 0 : index
    %170 = vector.load %arg1[%c26, %c0_119, %c0_120] : memref<34x21x128xbf16, #tpu.memory_space<vmem>>, vector<1x21x128xbf16>
    %171 = vector.shape_cast %170 : vector<1x21x128xbf16> to vector<21x128xbf16>
    %cst_121 = arith.constant dense<0.000000e+00> : vector<80x128xf32>
    %172 = tpu.matmul %0, %171, %cst_121 {dimension_numbers = #tpu.dot_dimension_numbers<[1], [0], [0], [1], [0, 0, 1, 1], [], []>} : vector<80x21xbf16>, vector<21x128xbf16>, vector<80x128xf32> -> vector<80x128xf32>
    %cst_122 = arith.constant 0.000000e+00 : f32
    %173 = vector.broadcast %cst_122 : f32 to vector<80x128xf32>
    %174 = arith.maximumf %172, %173 : vector<80x128xf32>
    %c27 = arith.constant 27 : index
    %c0_123 = arith.constant 0 : index
    %c0_124 = arith.constant 0 : index
    %175 = vector.load %arg1[%c27, %c0_123, %c0_124] : memref<34x21x128xbf16, #tpu.memory_space<vmem>>, vector<1x21x128xbf16>
    %176 = vector.shape_cast %175 : vector<1x21x128xbf16> to vector<21x128xbf16>
    %cst_125 = arith.constant dense<0.000000e+00> : vector<80x128xf32>
    %177 = tpu.matmul %0, %176, %cst_125 {dimension_numbers = #tpu.dot_dimension_numbers<[1], [0], [0], [1], [0, 0, 1, 1], [], []>} : vector<80x21xbf16>, vector<21x128xbf16>, vector<80x128xf32> -> vector<80x128xf32>
    %cst_126 = arith.constant 0.000000e+00 : f32
    %178 = vector.broadcast %cst_126 : f32 to vector<80x128xf32>
    %179 = arith.maximumf %177, %178 : vector<80x128xf32>
    %180 = arith.addf %174, %179 : vector<80x128xf32>
    %181 = arith.truncf %180 : vector<80x128xf32> to vector<80x128xbf16>
    %c1040 = arith.constant 1040 : index
    %c0_127 = arith.constant 0 : index
    %182 = vector.load %arg12[%c1040, %c0_127] : memref<1360x128xbf16, #tpu.memory_space<vmem>>, vector<80x128xbf16>
    tpu.vector_store %arg12[%c1040, %c0_127], %181 {strides = array<i32>} : memref<1360x128xbf16, #tpu.memory_space<vmem>>, vector<80x128xbf16>,
    %c28 = arith.constant 28 : index
    %c0_128 = arith.constant 0 : index
    %c0_129 = arith.constant 0 : index
    %183 = vector.load %arg1[%c28, %c0_128, %c0_129] : memref<34x21x128xbf16, #tpu.memory_space<vmem>>, vector<1x21x128xbf16>
    %184 = vector.shape_cast %183 : vector<1x21x128xbf16> to vector<21x128xbf16>
    %cst_130 = arith.constant dense<0.000000e+00> : vector<80x128xf32>
    %185 = tpu.matmul %0, %184, %cst_130 {dimension_numbers = #tpu.dot_dimension_numbers<[1], [0], [0], [1], [0, 0, 1, 1], [], []>} : vector<80x21xbf16>, vector<21x128xbf16>, vector<80x128xf32> -> vector<80x128xf32>
    %cst_131 = arith.constant 0.000000e+00 : f32
    %186 = vector.broadcast %cst_131 : f32 to vector<80x128xf32>
    %187 = arith.maximumf %185, %186 : vector<80x128xf32>
    %c29 = arith.constant 29 : index
    %c0_132 = arith.constant 0 : index
    %c0_133 = arith.constant 0 : index
    %188 = vector.load %arg1[%c29, %c0_132, %c0_133] : memref<34x21x128xbf16, #tpu.memory_space<vmem>>, vector<1x21x128xbf16>
    %189 = vector.shape_cast %188 : vector<1x21x128xbf16> to vector<21x128xbf16>
    %cst_134 = arith.constant dense<0.000000e+00> : vector<80x128xf32>
    %190 = tpu.matmul %0, %189, %cst_134 {dimension_numbers = #tpu.dot_dimension_numbers<[1], [0], [0], [1], [0, 0, 1, 1], [], []>} : vector<80x21xbf16>, vector<21x128xbf16>, vector<80x128xf32> -> vector<80x128xf32>
    %cst_135 = arith.constant 0.000000e+00 : f32
    %191 = vector.broadcast %cst_135 : f32 to vector<80x128xf32>
    %192 = arith.maximumf %190, %191 : vector<80x128xf32>
    %193 = arith.addf %187, %192 : vector<80x128xf32>
    %194 = arith.truncf %193 : vector<80x128xf32> to vector<80x128xbf16>
    %c1120 = arith.constant 1120 : index
    %c0_136 = arith.constant 0 : index
    %195 = vector.load %arg12[%c1120, %c0_136] : memref<1360x128xbf16, #tpu.memory_space<vmem>>, vector<80x128xbf16>
    tpu.vector_store %arg12[%c1120, %c0_136], %194 {strides = array<i32>} : memref<1360x128xbf16, #tpu.memory_space<vmem>>, vector<80x128xbf16>,
    %c30 = arith.constant 30 : index
    %c0_137 = arith.constant 0 : index
    %c0_138 = arith.constant 0 : index
    %196 = vector.load %arg1[%c30, %c0_137, %c0_138] : memref<34x21x128xbf16, #tpu.memory_space<vmem>>, vector<1x21x128xbf16>
    %197 = vector.shape_cast %196 : vector<1x21x128xbf16> to vector<21x128xbf16>
    %cst_139 = arith.constant dense<0.000000e+00> : vector<80x128xf32>
    %198 = tpu.matmul %0, %197, %cst_139 {dimension_numbers = #tpu.dot_dimension_numbers<[1], [0], [0], [1], [0, 0, 1, 1], [], []>} : vector<80x21xbf16>, vector<21x128xbf16>, vector<80x128xf32> -> vector<80x128xf32>
    %cst_140 = arith.constant 0.000000e+00 : f32
    %199 = vector.broadcast %cst_140 : f32 to vector<80x128xf32>
    %200 = arith.maximumf %198, %199 : vector<80x128xf32>
    %c31 = arith.constant 31 : index
    %c0_141 = arith.constant 0 : index
    %c0_142 = arith.constant 0 : index
    %201 = vector.load %arg1[%c31, %c0_141, %c0_142] : memref<34x21x128xbf16, #tpu.memory_space<vmem>>, vector<1x21x128xbf16>
    %202 = vector.shape_cast %201 : vector<1x21x128xbf16> to vector<21x128xbf16>
    %cst_143 = arith.constant dense<0.000000e+00> : vector<80x128xf32>
    %203 = tpu.matmul %0, %202, %cst_143 {dimension_numbers = #tpu.dot_dimension_numbers<[1], [0], [0], [1], [0, 0, 1, 1], [], []>} : vector<80x21xbf16>, vector<21x128xbf16>, vector<80x128xf32> -> vector<80x128xf32>
    %cst_144 = arith.constant 0.000000e+00 : f32
    %204 = vector.broadcast %cst_144 : f32 to vector<80x128xf32>
    %205 = arith.maximumf %203, %204 : vector<80x128xf32>
    %206 = arith.addf %200, %205 : vector<80x128xf32>
    %207 = arith.truncf %206 : vector<80x128xf32> to vector<80x128xbf16>
    %c1200 = arith.constant 1200 : index
    %c0_145 = arith.constant 0 : index
    %208 = vector.load %arg12[%c1200, %c0_145] : memref<1360x128xbf16, #tpu.memory_space<vmem>>, vector<80x128xbf16>
    tpu.vector_store %arg12[%c1200, %c0_145], %207 {strides = array<i32>} : memref<1360x128xbf16, #tpu.memory_space<vmem>>, vector<80x128xbf16>,
    %c32 = arith.constant 32 : index
    %c0_146 = arith.constant 0 : index
    %c0_147 = arith.constant 0 : index
    %209 = vector.load %arg1[%c32, %c0_146, %c0_147] : memref<34x21x128xbf16, #tpu.memory_space<vmem>>, vector<1x21x128xbf16>
    %210 = vector.shape_cast %209 : vector<1x21x128xbf16> to vector<21x128xbf16>
    %cst_148 = arith.constant dense<0.000000e+00> : vector<80x128xf32>
    %211 = tpu.matmul %0, %210, %cst_148 {dimension_numbers = #tpu.dot_dimension_numbers<[1], [0], [0], [1], [0, 0, 1, 1], [], []>} : vector<80x21xbf16>, vector<21x128xbf16>, vector<80x128xf32> -> vector<80x128xf32>
    %cst_149 = arith.constant 0.000000e+00 : f32
    %212 = vector.broadcast %cst_149 : f32 to vector<80x128xf32>
    %213 = arith.maximumf %211, %212 : vector<80x128xf32>
    %c33 = arith.constant 33 : index
    %c0_150 = arith.constant 0 : index
    %c0_151 = arith.constant 0 : index
    %214 = vector.load %arg1[%c33, %c0_150, %c0_151] : memref<34x21x128xbf16, #tpu.memory_space<vmem>>, vector<1x21x128xbf16>
    %215 = vector.shape_cast %214 : vector<1x21x128xbf16> to vector<21x128xbf16>
    %cst_152 = arith.constant dense<0.000000e+00> : vector<80x128xf32>
    %216 = tpu.matmul %0, %215, %cst_152 {dimension_numbers = #tpu.dot_dimension_numbers<[1], [0], [0], [1], [0, 0, 1, 1], [], []>} : vector<80x21xbf16>, vector<21x128xbf16>, vector<80x128xf32> -> vector<80x128xf32>
    %cst_153 = arith.constant 0.000000e+00 : f32
    %217 = vector.broadcast %cst_153 : f32 to vector<80x128xf32>
    %218 = arith.maximumf %216, %217 : vector<80x128xf32>
    %219 = arith.addf %213, %218 : vector<80x128xf32>
    %220 = arith.truncf %219 : vector<80x128xf32> to vector<80x128xbf16>
    %c1280 = arith.constant 1280 : index
    %c0_154 = arith.constant 0 : index
    %221 = vector.load %arg12[%c1280, %c0_154] : memref<1360x128xbf16, #tpu.memory_space<vmem>>, vector<80x128xbf16>
    tpu.vector_store %arg12[%c1280, %c0_154], %220 {strides = array<i32>} : memref<1360x128xbf16, #tpu.memory_space<vmem>>, vector<80x128xbf16>,
    %c0_155 = arith.constant 0 : index
    %c0_156 = arith.constant 0 : index
    %222 = vector.load %arg3[%c0_155, %c0_156] : memref<80x1360xbf16, #tpu.memory_space<vmem>>, vector<80x1360xbf16>
    %c0_157 = arith.constant 0 : index
    %c0_158 = arith.constant 0 : index
    %223 = vector.load %arg12[%c0_157, %c0_158] : memref<1360x128xbf16, #tpu.memory_space<vmem>>, vector<1360x128xbf16>
    %cst_159 = arith.constant dense<0.000000e+00> : vector<80x128xf32>
    %224 = tpu.matmul %222, %223, %cst_159 {dimension_numbers = #tpu.dot_dimension_numbers<[1], [0], [0], [1], [0, 0, 1, 1], [], []>} : vector<80x1360xbf16>, vector<1360x128xbf16>, vector<80x128xf32> -> vector<80x128xf32>
    %c0_160 = arith.constant 0 : index
    %c0_161 = arith.constant 0 : index
    %225 = vector.load %arg4[%c0_160, %c0_161] : memref<80x1xf32, #tpu.memory_space<vmem>>, vector<80x1xf32>
    %226 = vector.broadcast %225 : vector<80x1xf32> to vector<80x128xf32>
    %227 = arith.addf %224, %226 : vector<80x128xf32>
    %cst_162 = arith.constant 0.000000e+00 : f32
    %228 = vector.broadcast %cst_162 : f32 to vector<80x128xf32>
    %229 = arith.maximumf %227, %228 : vector<80x128xf32>
    %c0_163 = arith.constant 0 : index
    %c0_164 = arith.constant 0 : index
    %230 = vector.load %arg5[%c0_163, %c0_164] : memref<40x80xbf16, #tpu.memory_space<vmem>>, vector<40x80xbf16>
    %231 = arith.truncf %229 : vector<80x128xf32> to vector<80x128xbf16>
    %cst_165 = arith.constant dense<0.000000e+00> : vector<40x128xf32>
    %232 = tpu.matmul %230, %231, %cst_165 {dimension_numbers = #tpu.dot_dimension_numbers<[1], [0], [0], [1], [0, 0, 1, 1], [], []>} : vector<40x80xbf16>, vector<80x128xbf16>, vector<40x128xf32> -> vector<40x128xf32>
    %c0_166 = arith.constant 0 : index
    %c0_167 = arith.constant 0 : index
    %233 = vector.load %arg6[%c0_166, %c0_167] : memref<40x1xf32, #tpu.memory_space<vmem>>, vector<40x1xf32>
    %234 = vector.broadcast %233 : vector<40x1xf32> to vector<40x128xf32>
    %235 = arith.addf %232, %234 : vector<40x128xf32>
    %cst_168 = arith.constant 0.000000e+00 : f32
    %236 = vector.broadcast %cst_168 : f32 to vector<40x128xf32>
    %237 = arith.maximumf %235, %236 : vector<40x128xf32>
    %c0_169 = arith.constant 0 : index
    %c0_170 = arith.constant 0 : index
    %238 = vector.load %arg7[%c0_169, %c0_170] : memref<40x40xbf16, #tpu.memory_space<vmem>>, vector<40x40xbf16>
    %239 = arith.truncf %237 : vector<40x128xf32> to vector<40x128xbf16>
    %cst_171 = arith.constant dense<0.000000e+00> : vector<40x128xf32>
    %240 = tpu.matmul %238, %239, %cst_171 {dimension_numbers = #tpu.dot_dimension_numbers<[1], [0], [0], [1], [0, 0, 1, 1], [], []>} : vector<40x40xbf16>, vector<40x128xbf16>, vector<40x128xf32> -> vector<40x128xf32>
    %c0_172 = arith.constant 0 : index
    %c0_173 = arith.constant 0 : index
    %241 = vector.load %arg8[%c0_172, %c0_173] : memref<40x1xf32, #tpu.memory_space<vmem>>, vector<40x1xf32>
    %242 = vector.broadcast %241 : vector<40x1xf32> to vector<40x128xf32>
    %243 = arith.addf %240, %242 : vector<40x128xf32>
    %cst_174 = arith.constant 0.000000e+00 : f32
    %244 = vector.broadcast %cst_174 : f32 to vector<40x128xf32>
    %245 = arith.maximumf %243, %244 : vector<40x128xf32>
    %c0_175 = arith.constant 0 : index
    %c0_176 = arith.constant 0 : index
    %246 = vector.load %arg9[%c0_175, %c0_176] : memref<1x40xbf16, #tpu.memory_space<vmem>>, vector<1x40xbf16>
    %247 = arith.truncf %245 : vector<40x128xf32> to vector<40x128xbf16>
    %cst_177 = arith.constant dense<0.000000e+00> : vector<1x128xf32>
    %248 = tpu.matmul %246, %247, %cst_177 {dimension_numbers = #tpu.dot_dimension_numbers<[1], [0], [0], [1], [0, 0, 1, 1], [], []>} : vector<1x40xbf16>, vector<40x128xbf16>, vector<1x128xf32> -> vector<1x128xf32>
    %c0_178 = arith.constant 0 : index
    %c0_179 = arith.constant 0 : index
    %249 = vector.load %arg10[%c0_178, %c0_179] : memref<1x1xf32, #tpu.memory_space<vmem>>, vector<1x1xf32>
    %250 = vector.broadcast %249 : vector<1x1xf32> to vector<1x128xf32>
    %251 = arith.addf %248, %250 : vector<1x128xf32>
    %252 = arith.negf %251 : vector<1x128xf32>
    %253 = math.exp %252 : vector<1x128xf32>
    %cst_180 = arith.constant 1.000000e+00 : f32
    %254 = vector.broadcast %cst_180 : f32 to vector<1x128xf32>
    %255 = arith.addf %254, %253 : vector<1x128xf32>
    %256 = arith.divf %254, %255 : vector<1x128xf32>
    %c0_181 = arith.constant 0 : index
    %c0_182 = arith.constant 0 : index
    %257 = vector.load %arg11[%c0_181, %c0_182] : memref<1x128xf32, #tpu.memory_space<vmem>>, vector<1x128xf32>
    tpu.vector_store %arg11[%c0_181, %c0_182], %256 {strides = array<i32>} : memref<1x128xf32, #tpu.memory_space<vmem>>, vector<1x128xf32>,
    return
  }
  func.func @transform_0(%arg0: i32) -> (i32, i32, i32) {
    %c0_i32 = arith.constant 0 : i32
    %c0_i32_0 = arith.constant 0 : i32
    %c0_i32_1 = arith.constant 0 : i32
    return %c0_i32, %c0_i32_0, %arg0 : i32, i32, i32
  }
  func.func @transform_1(%arg0: i32) -> (i32, i32) {
    %c0_i32 = arith.constant 0 : i32
    %c0_i32_0 = arith.constant 0 : i32
    %c0_i32_1 = arith.constant 0 : i32
    return %c0_i32, %c0_i32_0 : i32, i32
  }
  func.func @transform_2(%arg0: i32) -> (i32, i32) {
    %c0_i32 = arith.constant 0 : i32
    %c0_i32_0 = arith.constant 0 : i32
    %c0_i32_1 = arith.constant 0 : i32
    return %c0_i32, %c0_i32_0 : i32, i32
  }
  func.func @transform_3(%arg0: i32) -> (i32, i32) {
    %c0_i32 = arith.constant 0 : i32
    %c0_i32_0 = arith.constant 0 : i32
    %c0_i32_1 = arith.constant 0 : i32
    return %c0_i32, %c0_i32_0 : i32, i32
  }
  func.func @transform_4(%arg0: i32) -> (i32, i32) {
    %c0_i32 = arith.constant 0 : i32
    %c0_i32_0 = arith.constant 0 : i32
    %c0_i32_1 = arith.constant 0 : i32
    return %c0_i32, %c0_i32_0 : i32, i32
  }
  func.func @transform_5(%arg0: i32) -> (i32, i32) {
    %c0_i32 = arith.constant 0 : i32
    %c0_i32_0 = arith.constant 0 : i32
    %c0_i32_1 = arith.constant 0 : i32
    return %c0_i32, %c0_i32_0 : i32, i32
  }
  func.func @transform_6(%arg0: i32) -> (i32, i32) {
    %c0_i32 = arith.constant 0 : i32
    %c0_i32_0 = arith.constant 0 : i32
    %c0_i32_1 = arith.constant 0 : i32
    return %c0_i32, %c0_i32_0 : i32, i32
  }
  func.func @transform_7(%arg0: i32) -> (i32, i32) {
    %c0_i32 = arith.constant 0 : i32
    %c0_i32_0 = arith.constant 0 : i32
    %c0_i32_1 = arith.constant 0 : i32
    return %c0_i32, %c0_i32_0 : i32, i32
  }
  func.func @transform_8(%arg0: i32) -> (i32, i32) {
    %c0_i32 = arith.constant 0 : i32
    %c0_i32_0 = arith.constant 0 : i32
    %c0_i32_1 = arith.constant 0 : i32
    return %c0_i32, %c0_i32_0 : i32, i32
  }
  func.func @transform_9(%arg0: i32) -> (i32, i32) {
    %c0_i32 = arith.constant 0 : i32
    %c0_i32_0 = arith.constant 0 : i32
    %c0_i32_1 = arith.constant 0 : i32
    return %c0_i32, %c0_i32_0 : i32, i32
  }
  func.func @transform_10(%arg0: i32) -> (i32, i32) {
    %c0_i32 = arith.constant 0 : i32
    %c0_i32_0 = arith.constant 0 : i32
    return %arg0, %c0_i32 : i32, i32
  }
}

</mosaic_0001>

<llo_original>
// kernel: tpu_custom_call.1
$region0: #{tpu_custom_call.1}
  #allocation0 [shape = 'u32[]', space=smem, size = 0x4, offset = 0x4, fixed_abs, tag = 'smem constant byte address 0x4 - core index']
  #allocation1 [shape = 'u32[144,128]{1,0:T(1,128)}', space=vmem, size = 0x12000, scoped, tag = 'internal scratch']
  #allocation2 [shape = 'bf16[1360,128]{1,0:T(16,128)(2,1)}', space=vmem, size = 0x55000, scoped, tag = 'scratch operand']
  #allocation3 [shape = 'f32[1,1]{1,0:T(1,128)S(1)}', space=vmem, size = 0x200, scoped, tag = 'scoped memory for tpu_custom_call.1']
  %s0 = inlined_call_operand.hbm [shape: bf16[34,21,128], index: 0, kind: input, shape index: {}]
  %s1 = inlined_call_operand.vmem [shape: bf16[80,21], index: 1, kind: input, shape index: {}]
  %s2 = inlined_call_operand.hbm [shape: bf16[80,1360], index: 2, kind: input, shape index: {}]
  %s3 = inlined_call_operand.vmem [shape: f32[80,1], index: 3, kind: input, shape index: {}]
  %s4 = inlined_call_operand.vmem [shape: bf16[40,80], index: 4, kind: input, shape index: {}]
  %s5 = inlined_call_operand.vmem [shape: f32[40,1], index: 5, kind: input, shape index: {}]
  %s6 = inlined_call_operand.vmem [shape: bf16[40,40], index: 6, kind: input, shape index: {}]
  %s7 = inlined_call_operand.vmem [shape: f32[40,1], index: 7, kind: input, shape index: {}]
  %s8 = inlined_call_operand.vmem [shape: bf16[1,40], index: 8, kind: input, shape index: {}]
  %s9 = inlined_call_operand.<no memory space> [shape: f32[1,1], index: 9, kind: input, shape index: {}]
  %s10 = inlined_call_operand.hbm [shape: f32[1,128], index: 10, kind: output, shape index: {}]
  %s11 = sld [smem:[#allocation0]]
  $region58: #{tpu_custom_call.1} parent=0
    _
  %s13 = ssub.s32 1, %s11
  %s14 = scalar_select 0, %s13, %s11
  %v15 = vstv %s9
  %16 = vst [vmem:[#allocation3] sm:$0x1] %v15
  $region1: #{tpu_custom_call.1} parent=0
    #allocation4 [shape = 'u8[208896]{0}', space=vmem, size = 0x33000, scoped, tag = 'input window, operand 0, single buffered']
    #allocation5 [shape = 's32[1]{0}', space=sflag, size = 0x4, scoped, tag = 'scoped memory for tpu_custom_call.1']
    #allocation6 [shape = 's32[1]{0}', space=sflag, size = 0x4, scoped, tag = 'scoped memory for tpu_custom_call.1']
    #allocation7 [shape = 'u8[225280]{0}', space=vmem, size = 0x37000, scoped, tag = 'input window, operand 2, single buffered']
    #allocation8 [shape = 's32[1]{0}', space=sflag, size = 0x4, scoped, tag = 'scoped memory for tpu_custom_call.1']
    #allocation9 [shape = 'u8[512]{0}', space=vmem, size = 0x400, scoped, tag = 'output window, operand 0, single buffered']
    %17 = vsyncpa [#allocation5], 0
    %18 = vsyncpa [#allocation8], 0
    %19 = vsyncpa [#allocation6], 0
    // Predicated region
    $region2: #{tpu_custom_call.1} parent=1 // pred_check
      _
    $region3: #{tpu_custom_call.1} parent=1 // pred_check_branch
      %21 = sbr.rel (0) target = $region5
    $region4: #{tpu_custom_call.1} parent=1 // pred_region
      %s23 = ssub.s32 6528, 6528
      %24 = vsyncadd [#allocation5], %s23
      %s25 = sshll.u32 [#allocation4], 4
      %s26 = int_to_ptr.vmem [resolvable:$true] %s25
      %31 = dma.hbm_to_vmem [thread:$0]  %s0, 6528, %s26, [#allocation5], 64, 64, 4
    $region5: #{tpu_custom_call.1} parent=1 // pred_fallthru
      _
    // Predicated region
    $region6: #{tpu_custom_call.1} parent=1 // pred_check
      _
    $region7: #{tpu_custom_call.1} parent=1 // pred_check_branch
      %33 = sbr.rel (0) target = $region9
    $region8: #{tpu_custom_call.1} parent=1 // pred_region
      _
    $region9: #{tpu_custom_call.1} parent=1 // pred_fallthru
      _
    // Predicated region
    $region10: #{tpu_custom_call.1} parent=1 // pred_check
      _
    $region11: #{tpu_custom_call.1} parent=1 // pred_check_branch
      %35 = sbr.rel (0) target = $region13
    $region12: #{tpu_custom_call.1} parent=1 // pred_region
      %s37 = ssub.s32 7040, 7040
      %38 = vsyncadd [#allocation8], %s37
      %s39 = sshll.u32 [#allocation7], 4
      %s40 = int_to_ptr.vmem [resolvable:$true] %s39
      %45 = dma.hbm_to_vmem [thread:$0]  %s2, 7040, %s40, [#allocation8], 704, 704, 44
    $region13: #{tpu_custom_call.1} parent=1 // pred_fallthru
      _
    // Predicated region
    $region14: #{tpu_custom_call.1} parent=1 // pred_check
      _
    $region15: #{tpu_custom_call.1} parent=1 // pred_check_branch
      %47 = sbr.rel (0) target = $region17
    $region16: #{tpu_custom_call.1} parent=1 // pred_region
      _
    $region17: #{tpu_custom_call.1} parent=1 // pred_fallthru
      _
    // Predicated region
    $region18: #{tpu_custom_call.1} parent=1 // pred_check
      _
    $region19: #{tpu_custom_call.1} parent=1 // pred_check_branch
      %49 = sbr.rel (0) target = $region21
    $region20: #{tpu_custom_call.1} parent=1 // pred_region
      _
    $region21: #{tpu_custom_call.1} parent=1 // pred_fallthru
      _
    // Predicated region
    $region22: #{tpu_custom_call.1} parent=1 // pred_check
      _
    $region23: #{tpu_custom_call.1} parent=1 // pred_check_branch
      %51 = sbr.rel (0) target = $region25
    $region24: #{tpu_custom_call.1} parent=1 // pred_region
      _
    $region25: #{tpu_custom_call.1} parent=1 // pred_fallthru
      _
    // Predicated region
    $region26: #{tpu_custom_call.1} parent=1 // pred_check
      _
    $region27: #{tpu_custom_call.1} parent=1 // pred_check_branch
      %53 = sbr.rel (0) target = $region29
    $region28: #{tpu_custom_call.1} parent=1 // pred_region
      _
    $region29: #{tpu_custom_call.1} parent=1 // pred_fallthru
      _
    // Predicated region
    $region30: #{tpu_custom_call.1} parent=1 // pred_check
      _
    $region31: #{tpu_custom_call.1} parent=1 // pred_check_branch
      %55 = sbr.rel (0) target = $region33
    $region32: #{tpu_custom_call.1} parent=1 // pred_region
      _
    $region33: #{tpu_custom_call.1} parent=1 // pred_fallthru
      _
    // Predicated region
    $region34: #{tpu_custom_call.1} parent=1 // pred_check
      _
    $region35: #{tpu_custom_call.1} parent=1 // pred_check_branch
      %57 = sbr.rel (0) target = $region37
    $region36: #{tpu_custom_call.1} parent=1 // pred_region
      _
    $region37: #{tpu_custom_call.1} parent=1 // pred_fallthru
      _
    // Predicated region
    $region38: #{tpu_custom_call.1} parent=1 // pred_check
      _
    $region39: #{tpu_custom_call.1} parent=1 // pred_check_branch
      %59 = sbr.rel (0) target = $region41
    $region40: #{tpu_custom_call.1} parent=1 // pred_region
      _
    $region41: #{tpu_custom_call.1} parent=1 // pred_fallthru
      _
    // Predicated region
    $region42: #{tpu_custom_call.1} parent=1 // pred_check
      _
    $region43: #{tpu_custom_call.1} parent=1 // pred_check_branch
      %61 = sbr.rel (0) target = $region45
    $region44: #{tpu_custom_call.1} parent=1 // pred_region
      %62 = dma.done [#allocation5], 6528
    $region45: #{tpu_custom_call.1} parent=1 // pred_fallthru
      _
    // Predicated region
    $region46: #{tpu_custom_call.1} parent=1 // pred_check
      _
    $region47: #{tpu_custom_call.1} parent=1 // pred_check_branch
      %64 = sbr.rel (0) target = $region49
    $region48: #{tpu_custom_call.1} parent=1 // pred_region
      %65 = dma.done [#allocation8], 7040
    $region49: #{tpu_custom_call.1} parent=1 // pred_fallthru
      _
    %v67 = vld [vmem:[%s1] sm:$0xf]
    %v68 = vld [vmem:[%s1 + $0x4] sm:$0xf]
    %v69 = vld [vmem:[%s1 + $0x8] sm:$0xf]
    %v70 = vld [vmem:[%s1 + $0xc] sm:$0xf]
    %v71 = vld [vmem:[%s1 + $0x10] sm:$0xf]
    %v72 = vld [vmem:[%s1 + $0x14] sm:$0xf]
    %v73 = vld [vmem:[%s1 + $0x18] sm:$0xf]
    %v74 = vld [vmem:[%s1 + $0x1c] sm:$0xf]
    %v75 = vld [vmem:[%s1 + $0x20] sm:$0xf]
    %v76 = vld [vmem:[%s1 + $0x24] sm:$0xf]
    %v77 = vld [vmem:[#allocation4] sm:$0xf]
    %v78 = vld [vmem:[#allocation4 + $0x4] sm:$0xf]
    %v79 = vld [vmem:[#allocation4 + $0x8] sm:$0x7]
    %v90 = vunpack.c.l.b16 %v67
    %v91 = vunpack.c.l.b16 %v68
    %v92 = vunpack.c.l.b16 %v69
    %v93 = vunpack.c.l.b16 %v70
    %v94 = vunpack.c.l.b16 %v71
    %v95 = vunpack.c.l.b16 %v72
    %v96 = vunpack.c.l.b16 %v73
    %v97 = vunpack.c.l.b16 %v74
    %v98 = vunpack.c.l.b16 %v75
    %v99 = vunpack.c.l.b16 %v76
    %v100 = vpack.c.b16 %v91, %v90
    %v101 = vpack.c.b16 %v93, %v92
    %v102 = vpack.c.b16 %v95, %v94
    %v103 = vpack.c.b16 %v97, %v96
    %v104 = vpack.c.b16 %v99, %v98
    %v108 = vunpack.c.l.b16 %v77
    %v109 = vunpack.c.l.b16 %v78
    %v110 = vunpack.c.l.b16 %v79
    %v111 = vpack.c.b16 %v109, %v108
    %v112 = vpack.c.b16 %v110, %v110
    %vm114 = vcmask 171008
    %v116 = vsel %vm114, %v100, 0
    %v119 = vsel %vm114, %v101, 0
    %v122 = vsel %vm114, %v102, 0
    %v125 = vsel %vm114, %v103, 0
    %v128 = vsel %vm114, %v104, 0
    %vm130 = vcmask 1041408
    %vm131 = vcmask 1042432
    %v132 = vsel %vm130, 4294967295, 65535
    %v133 = vsel %vm131, %v132, 0
    %v135 = vand.u32 %v112, %v133
    %137 = vmatprep.subr.bf16.mxu0 0
    %138 = vmatpush1.bf16.msra.mxu0 %v111
    %139 = vmatprep.subr.bf16.mxu0 0
    %140 = vmatpush1.bf16.msra.mxu0 %v135
    %141 = vmatprep.subr.bf16.mxu0 0
    %142 = vmatpush1.bf16.msra.mxu0 0
    %143 = vmatprep.subr.bf16.mxu0 0
    %144 = vmatpush1.bf16.msra.mxu0 0
    %145 = vmatprep.subr.bf16.mxu0 0
    %146 = vmatpush1.bf16.msra.mxu0 0
    %147 = vmatprep.subr.bf16.mxu0 0
    %148 = vmatpush1.bf16.msra.mxu0 0
    %149 = vmatprep.subr.bf16.mxu0 0
    %150 = vmatpush1.bf16.msra.mxu0 0
    %151 = vmatprep.subr.bf16.mxu0 0
    %152 = vmatpush1.bf16.msra.mxu0 0
    %153 = vmatprep.subr.bf16.mxu0 0
    %154 = vmatpush1.bf16.msra.mxu0 0
    %155 = vmatprep.subr.bf16.mxu0 0
    %156 = vmatpush1.bf16.msra.mxu0 0
    %157 = vmatprep.subr.bf16.mxu0 0
    %158 = vmatpush1.bf16.msra.mxu0 0
    %159 = vmatprep.subr.bf16.mxu0 0
    %160 = vmatpush1.bf16.msra.mxu0 0
    %161 = vmatprep.subr.bf16.mxu0 0
    %162 = vmatpush1.bf16.msra.mxu0 0
    %163 = vmatprep.subr.bf16.mxu0 0
    %164 = vmatpush1.bf16.msra.mxu0 0
    %165 = vmatprep.subr.bf16.mxu0 0
    %166 = vmatpush1.bf16.msra.mxu0 0
    %167 = vmatprep.subr.bf16.mxu0 0
    %168 = vmatpush1.bf16.msra.mxu0 0
    %169 = vmatprep.mubr.bf16.mxu0 0
    %170 = vmatmul.mubr.bf16.gmra.mrb[0].mxu0 %v116
    %v171 = vpop.f32.mrb[0].mxu0
    %v172 = vadd.f32 0.0, %v171
    %v173 = vpop.f32.mrb[0].mxu0
    %v174 = vpop.f32.mrb[0].mxu0
    %v175 = vadd.f32 0.0, %v174
    %v176 = vpop.f32.mrb[0].mxu0
    %177 = vmatprep.mubr.bf16.mxu0 0
    %178 = vmatmul.mubr.bf16.gmra.mrb[0].mxu0 %v119
    %v179 = vpop.f32.mrb[0].mxu0
    %v180 = vadd.f32 0.0, %v179
    %v181 = vpop.f32.mrb[0].mxu0
    %v182 = vpop.f32.mrb[0].mxu0
    %v183 = vadd.f32 0.0, %v182
    %v184 = vpop.f32.mrb[0].mxu0
    %185 = vmatprep.mubr.bf16.mxu0 0
    %186 = vmatmul.mubr.bf16.gmra.mrb[0].mxu0 %v122
    %v187 = vpop.f32.mrb[0].mxu0
    %v188 = vadd.f32 0.0, %v187
    %v189 = vpop.f32.mrb[0].mxu0
    %v190 = vpop.f32.mrb[0].mxu0
    %v191 = vadd.f32 0.0, %v190
    %v192 = vpop.f32.mrb[0].mxu0
    %193 = vmatprep.mubr.bf16.mxu0 0
    %194 = vmatmul.mubr.bf16.gmra.mrb[0].mxu0 %v125
    %v195 = vpop.f32.mrb[0].mxu0
    %v196 = vadd.f32 0.0, %v195
    %v197 = vpop.f32.mrb[0].mxu0
    %v198 = vpop.f32.mrb[0].mxu0
    %v199 = vadd.f32 0.0, %v198
    %v200 = vpop.f32.mrb[0].mxu0
    %201 = vmatprep.mubr.bf16.mxu0 0
    %202 = vmatmul.mubr.bf16.gmra.mrb[0].mxu0 %v128
    %v203 = vpop.f32.mrb[0].mxu0
    %v204 = vadd.f32 0.0, %v203
    %v205 = vpop.f32.mrb[0].mxu0
    %v206 = vpop.f32.mrb[0].mxu0
    %v207 = vadd.f32 0.0, %v206
    %v208 = vpop.f32.mrb[0].mxu0
    %209 = vdwg.mxu0
    %v210 = vmax.f32 %v172, 0.0
    %v211 = vmax.f32 %v175, 0.0
    %v212 = vmax.f32 %v180, 0.0
    %v213 = vmax.f32 %v183, 0.0
    %v214 = vmax.f32 %v188, 0.0
    %v215 = vmax.f32 %v191, 0.0
    %v216 = vmax.f32 %v196, 0.0
    %v217 = vmax.f32 %v199, 0.0
    %v218 = vmax.f32 %v204, 0.0
    %v219 = vmax.f32 %v207, 0.0
    %s220 = scalar_lea.vmem [#allocation4], 12
    %v221 = vld [vmem:[%s220] sm:$0xf]
    %v222 = vld [vmem:[%s220 + $0x4] sm:$0xf]
    %v223 = vld [vmem:[%s220 + $0x8] sm:$0x7]
    %v227 = vunpack.c.l.b16 %v221
    %v228 = vunpack.c.l.b16 %v222
    %v229 = vunpack.c.l.b16 %v223
    %v230 = vpack.c.b16 %v228, %v227
    %v231 = vpack.c.b16 %v229, %v229
    %v234 = vand.u32 %v231, %v133
    %236 = vmatprep.subr.bf16.mxu0 0
    %237 = vmatpush1.bf16.msra.mxu0 %v230
    %238 = vmatprep.subr.bf16.mxu0 0
    %239 = vmatpush1.bf16.msra.mxu0 %v234
    %240 = vmatprep.subr.bf16.mxu0 0
    %241 = vmatpush1.bf16.msra.mxu0 0
    %242 = vmatprep.subr.bf16.mxu0 0
    %243 = vmatpush1.bf16.msra.mxu0 0
    %244 = vmatprep.subr.bf16.mxu0 0
    %245 = vmatpush1.bf16.msra.mxu0 0
    %246 = vmatprep.subr.bf16.mxu0 0
    %247 = vmatpush1.bf16.msra.mxu0 0
    %248 = vmatprep.subr.bf16.mxu0 0
    %249 = vmatpush1.bf16.msra.mxu0 0
    %250 = vmatprep.subr.bf16.mxu0 0
    %251 = vmatpush1.bf16.msra.mxu0 0
    %252 = vmatprep.subr.bf16.mxu0 0
    %253 = vmatpush1.bf16.msra.mxu0 0
    %254 = vmatprep.subr.bf16.mxu0 0
    %255 = vmatpush1.bf16.msra.mxu0 0
    %256 = vmatprep.subr.bf16.mxu0 0
    %257 = vmatpush1.bf16.msra.mxu0 0
    %258 = vmatprep.subr.bf16.mxu0 0
    %259 = vmatpush1.bf16.msra.mxu0 0
    %260 = vmatprep.subr.bf16.mxu0 0
    %261 = vmatpush1.bf16.msra.mxu0 0
    %262 = vmatprep.subr.bf16.mxu0 0
    %263 = vmatpush1.bf16.msra.mxu0 0
    %264 = vmatprep.subr.bf16.mxu0 0
    %265 = vmatpush1.bf16.msra.mxu0 0
    %266 = vmatprep.subr.bf16.mxu0 0
    %267 = vmatpush1.bf16.msra.mxu0 0
    %268 = vmatprep.mubr.bf16.mxu0 0
    %269 = vmatmul.mubr.bf16.gmra.mrb[0].mxu0 %v116
    %v270 = vpop.f32.mrb[0].mxu0
    %v271 = vadd.f32 0.0, %v270
    %v272 = vpop.f32.mrb[0].mxu0
    %v273 = vpop.f32.mrb[0].mxu0
    %v274 = vadd.f32 0.0, %v273
    %v275 = vpop.f32.mrb[0].mxu0
    %276 = vmatprep.mubr.bf16.mxu0 0
    %277 = vmatmul.mubr.bf16.gmra.mrb[0].mxu0 %v119
    %v278 = vpop.f32.mrb[0].mxu0
    %v279 = vadd.f32 0.0, %v278
    %v280 = vpop.f32.mrb[0].mxu0
    %v281 = vpop.f32.mrb[0].mxu0
    %v282 = vadd.f32 0.0, %v281
    %v283 = vpop.f32.mrb[0].mxu0
    %284 = vmatprep.mubr.bf16.mxu0 0
    %285 = vmatmul.mubr.bf16.gmra.mrb[0].mxu0 %v122
    %v286 = vpop.f32.mrb[0].mxu0
    %v287 = vadd.f32 0.0, %v286
    %v288 = vpop.f32.mrb[0].mxu0
    %v289 = vpop.f32.mrb[0].mxu0
    %v290 = vadd.f32 0.0, %v289
    %v291 = vpop.f32.mrb[0].mxu0
    %292 = vmatprep.mubr.bf16.mxu0 0
    %293 = vmatmul.mubr.bf16.gmra.mrb[0].mxu0 %v125
    %v294 = vpop.f32.mrb[0].mxu0
    %v295 = vadd.f32 0.0, %v294
    %v296 = vpop.f32.mrb[0].mxu0
    %v297 = vpop.f32.mrb[0].mxu0
    %v298 = vadd.f32 0.0, %v297
    %v299 = vpop.f32.mrb[0].mxu0
    %300 = vmatprep.mubr.bf16.mxu0 0
    %301 = vmatmul.mubr.bf16.gmra.mrb[0].mxu0 %v128
    %v302 = vpop.f32.mrb[0].mxu0
    %v303 = vadd.f32 0.0, %v302
    %v304 = vpop.f32.mrb[0].mxu0
    %v305 = vpop.f32.mrb[0].mxu0
    %v306 = vadd.f32 0.0, %v305
    %v307 = vpop.f32.mrb[0].mxu0
    %308 = vdwg.mxu0
    %v309 = vmax.f32 %v271, 0.0
    %v310 = vmax.f32 %v274, 0.0
    %v311 = vmax.f32 %v279, 0.0
    %v312 = vmax.f32 %v282, 0.0
    %v313 = vmax.f32 %v287, 0.0
    %v314 = vmax.f32 %v290, 0.0
    %v315 = vmax.f32 %v295, 0.0
    %v316 = vmax.f32 %v298, 0.0
    %v317 = vmax.f32 %v303, 0.0
    %v318 = vmax.f32 %v306, 0.0
    %v319 = vadd.f32 %v210, %v309
    %v320 = vadd.f32 %v211, %v310
    %v321 = vadd.f32 %v212, %v311
    %v322 = vadd.f32 %v213, %v312
    %v323 = vadd.f32 %v214, %v313
    %v324 = vadd.f32 %v215, %v314
    %v325 = vadd.f32 %v216, %v315
    %v326 = vadd.f32 %v217, %v316
    %v327 = vadd.f32 %v218, %v317
    %v328 = vadd.f32 %v219, %v318
    %v329 = vpack.c.bf16 %v320, %v319
    %v330 = vpack.c.bf16 %v322, %v321
    %v331 = vpack.c.bf16 %v324, %v323
    %v332 = vpack.c.bf16 %v326, %v325
    %v333 = vpack.c.bf16 %v328, %v327
    %334 = vst [vmem:[#allocation2] sm:$0xff] %v329
    %335 = vst [vmem:[#allocation2 + $0x8] sm:$0xff] %v330
    %336 = vst [vmem:[#allocation2 + $0x10] sm:$0xff] %v331
    %337 = vst [vmem:[#allocation2 + $0x18] sm:$0xff] %v332
    %338 = vst [vmem:[#allocation2 + $0x20] sm:$0xff] %v333
    %s339 = scalar_lea.vmem [#allocation4], 24
    %v340 = vld [vmem:[%s339] sm:$0xf]
    %v341 = vld [vmem:[%s339 + $0x4] sm:$0xf]
    %v342 = vld [vmem:[%s339 + $0x8] sm:$0x7]
    %v346 = vunpack.c.l.b16 %v340
    %v347 = vunpack.c.l.b16 %v341
    %v348 = vunpack.c.l.b16 %v342
    %v349 = vpack.c.b16 %v347, %v346
    %v350 = vpack.c.b16 %v348, %v348
    %v353 = vand.u32 %v350, %v133
    %355 = vmatprep.subr.bf16.mxu0 0
    %356 = vmatpush1.bf16.msra.mxu0 %v349
    %357 = vmatprep.subr.bf16.mxu0 0
    %358 = vmatpush1.bf16.msra.mxu0 %v353
    %359 = vmatprep.subr.bf16.mxu0 0
    %360 = vmatpush1.bf16.msra.mxu0 0
    %361 = vmatprep.subr.bf16.mxu0 0
    %362 = vmatpush1.bf16.msra.mxu0 0
    %363 = vmatprep.subr.bf16.mxu0 0
    %364 = vmatpush1.bf16.msra.mxu0 0
    %365 = vmatprep.subr.bf16.mxu0 0
    %366 = vmatpush1.bf16.msra.mxu0 0
    %367 = vmatprep.subr.bf16.mxu0 0
    %368 = vmatpush1.bf16.msra.mxu0 0
    %369 = vmatprep.subr.bf16.mxu0 0
    %370 = vmatpush1.bf16.msra.mxu0 0
    %371 = vmatprep.subr.bf16.mxu0 0
    %372 = vmatpush1.bf16.msra.mxu0 0
    %373 = vmatprep.subr.bf16.mxu0 0
    %374 = vmatpush1.bf16.msra.mxu0 0
    %375 = vmatprep.subr.bf16.mxu0 0
    %376 = vmatpush1.bf16.msra.mxu0 0
    %377 = vmatprep.subr.bf16.mxu0 0
    %378 = vmatpush1.bf16.msra.mxu0 0
    %379 = vmatprep.subr.bf16.mxu0 0
    %380 = vmatpush1.bf16.msra.mxu0 0
    %381 = vmatprep.subr.bf16.mxu0 0
    %382 = vmatpush1.bf16.msra.mxu0 0
    %383 = vmatprep.subr.bf16.mxu0 0
    %384 = vmatpush1.bf16.msra.mxu0 0
    %385 = vmatprep.subr.bf16.mxu0 0
    %386 = vmatpush1.bf16.msra.mxu0 0
    %387 = vmatprep.mubr.bf16.mxu0 0
    %388 = vmatmul.mubr.bf16.gmra.mrb[0].mxu0 %v116
    %v389 = vpop.f32.mrb[0].mxu0
    %v390 = vadd.f32 0.0, %v389
    %v391 = vpop.f32.mrb[0].mxu0
    %v392 = vpop.f32.mrb[0].mxu0
    %v393 = vadd.f32 0.0, %v392
    %v394 = vpop.f32.mrb[0].mxu0
    %395 = vmatprep.mubr.bf16.mxu0 0
    %396 = vmatmul.mubr.bf16.gmra.mrb[0].mxu0 %v119
    %v397 = vpop.f32.mrb[0].mxu0
    %v398 = vadd.f32 0.0, %v397
    %v399 = vpop.f32.mrb[0].mxu0
    %v400 = vpop.f32.mrb[0].mxu0
    %v401 = vadd.f32 0.0, %v400
    %v402 = vpop.f32.mrb[0].mxu0
    %403 = vmatprep.mubr.bf16.mxu0 0
    %404 = vmatmul.mubr.bf16.gmra.mrb[0].mxu0 %v122
    %v405 = vpop.f32.mrb[0].mxu0
    %v406 = vadd.f32 0.0, %v405
    %v407 = vpop.f32.mrb[0].mxu0
    %v408 = vpop.f32.mrb[0].mxu0
    %v409 = vadd.f32 0.0, %v408
    %v410 = vpop.f32.mrb[0].mxu0
    %411 = vmatprep.mubr.bf16.mxu0 0
    %412 = vmatmul.mubr.bf16.gmra.mrb[0].mxu0 %v125
    %v413 = vpop.f32.mrb[0].mxu0
    %v414 = vadd.f32 0.0, %v413
    %v415 = vpop.f32.mrb[0].mxu0
    %v416 = vpop.f32.mrb[0].mxu0
    %v417 = vadd.f32 0.0, %v416
    %v418 = vpop.f32.mrb[0].mxu0
    %419 = vmatprep.mubr.bf16.mxu0 0
    %420 = vmatmul.mubr.bf16.gmra.mrb[0].mxu0 %v128
    %v421 = vpop.f32.mrb[0].mxu0
    %v422 = vadd.f32 0.0, %v421
    %v423 = vpop.f32.mrb[0].mxu0
    %v424 = vpop.f32.mrb[0].mxu0
    %v425 = vadd.f32 0.0, %v424
    %v426 = vpop.f32.mrb[0].mxu0
    %427 = vdwg.mxu0
    %v428 = vmax.f32 %v390, 0.0
    %v429 = vmax.f32 %v393, 0.0
    %v430 = vmax.f32 %v398, 0.0
    %v431 = vmax.f32 %v401, 0.0
    %v432 = vmax.f32 %v406, 0.0
    %v433 = vmax.f32 %v409, 0.0
    %v434 = vmax.f32 %v414, 0.0
    %v435 = vmax.f32 %v417, 0.0
    %v436 = vmax.f32 %v422, 0.0
    %v437 = vmax.f32 %v425, 0.0
    %s438 = scalar_lea.vmem [#allocation4], 36
    %v439 = vld [vmem:[%s438] sm:$0xf]
    %v440 = vld [vmem:[%s438 + $0x4] sm:$0xf]
    %v441 = vld [vmem:[%s438 + $0x8] sm:$0x7]
    %v445 = vunpack.c.l.b16 %v439
    %v446 = vunpack.c.l.b16 %v440
    %v447 = vunpack.c.l.b16 %v441
    %v448 = vpack.c.b16 %v446, %v445
    %v449 = vpack.c.b16 %v447, %v447
    %v452 = vand.u32 %v449, %v133
    %454 = vmatprep.subr.bf16.mxu0 0
    %455 = vmatpush1.bf16.msra.mxu0 %v448
    %456 = vmatprep.subr.bf16.mxu0 0
    %457 = vmatpush1.bf16.msra.mxu0 %v452
    %458 = vmatprep.subr.bf16.mxu0 0
    %459 = vmatpush1.bf16.msra.mxu0 0
    %460 = vmatprep.subr.bf16.mxu0 0
    %461 = vmatpush1.bf16.msra.mxu0 0
    %462 = vmatprep.subr.bf16.mxu0 0
    %463 = vmatpush1.bf16.msra.mxu0 0
    %464 = vmatprep.subr.bf16.mxu0 0
    %465 = vmatpush1.bf16.msra.mxu0 0
    %466 = vmatprep.subr.bf16.mxu0 0
    %467 = vmatpush1.bf16.msra.mxu0 0
    %468 = vmatprep.subr.bf16.mxu0 0
    %469 = vmatpush1.bf16.msra.mxu0 0
    %470 = vmatprep.subr.bf16.mxu0 0
    %471 = vmatpush1.bf16.msra.mxu0 0
    %472 = vmatprep.subr.bf16.mxu0 0
    %473 = vmatpush1.bf16.msra.mxu0 0
    %474 = vmatprep.subr.bf16.mxu0 0
    %475 = vmatpush1.bf16.msra.mxu0 0
    %476 = vmatprep.subr.bf16.mxu0 0
    %477 = vmatpush1.bf16.msra.mxu0 0
    %478 = vmatprep.subr.bf16.mxu0 0
    %479 = vmatpush1.bf16.msra.mxu0 0
    %480 = vmatprep.subr.bf16.mxu0 0
    %481 = vmatpush1.bf16.msra.mxu0 0
    %482 = vmatprep.subr.bf16.mxu0 0
    %483 = vmatpush1.bf16.msra.mxu0 0
    %484 = vmatprep.subr.bf16.mxu0 0
    %485 = vmatpush1.bf16.msra.mxu0 0
    %486 = vmatprep.mubr.bf16.mxu0 0
    %487 = vmatmul.mubr.bf16.gmra.mrb[0].mxu0 %v116
    %v488 = vpop.f32.mrb[0].mxu0
    %v489 = vadd.f32 0.0, %v488
    %v490 = vpop.f32.mrb[0].mxu0
    %v491 = vpop.f32.mrb[0].mxu0
    %v492 = vadd.f32 0.0, %v491
    %v493 = vpop.f32.mrb[0].mxu0
    %494 = vmatprep.mubr.bf16.mxu0 0
    %495 = vmatmul.mubr.bf16.gmra.mrb[0].mxu0 %v119
    %v496 = vpop.f32.mrb[0].mxu0
    %v497 = vadd.f32 0.0, %v496
    %v498 = vpop.f32.mrb[0].mxu0
    %v499 = vpop.f32.mrb[0].mxu0
    %v500 = vadd.f32 0.0, %v499
    %v501 = vpop.f32.mrb[0].mxu0
    %502 = vmatprep.mubr.bf16.mxu0 0
    %503 = vmatmul.mubr.bf16.gmra.mrb[0].mxu0 %v122
    %v504 = vpop.f32.mrb[0].mxu0
    %v505 = vadd.f32 0.0, %v504
    %v506 = vpop.f32.mrb[0].mxu0
    %v507 = vpop.f32.mrb[0].mxu0
    %v508 = vadd.f32 0.0, %v507
    %v509 = vpop.f32.mrb[0].mxu0
    %510 = vmatprep.mubr.bf16.mxu0 0
    %511 = vmatmul.mubr.bf16.gmra.mrb[0].mxu0 %v125
    %v512 = vpop.f32.mrb[0].mxu0
    %v513 = vadd.f32 0.0, %v512
    %v514 = vpop.f32.mrb[0].mxu0
    %v515 = vpop.f32.mrb[0].mxu0
    %v516 = vadd.f32 0.0, %v515
    %v517 = vpop.f32.mrb[0].mxu0
    %518 = vmatprep.mubr.bf16.mxu0 0
    %519 = vmatmul.mubr.bf16.gmra.mrb[0].mxu0 %v128
    %v520 = vpop.f32.mrb[0].mxu0
    %v521 = vadd.f32 0.0, %v520
    %v522 = vpop.f32.mrb[0].mxu0
    %v523 = vpop.f32.mrb[0].mxu0
    %v524 = vadd.f32 0.0, %v523
    %v525 = vpop.f32.mrb[0].mxu0
    %526 = vdwg.mxu0
    %v527 = vmax.f32 %v489, 0.0
    %v528 = vmax.f32 %v492, 0.0
    %v529 = vmax.f32 %v497, 0.0
    %v530 = vmax.f32 %v500, 0.0
    %v531 = vmax.f32 %v505, 0.0
    %v532 = vmax.f32 %v508, 0.0
    %v533 = vmax.f32 %v513, 0.0
    %v534 = vmax.f32 %v516, 0.0
    %v535 = vmax.f32 %v521, 0.0
    %v536 = vmax.f32 %v524, 0.0
    %v537 = vadd.f32 %v428, %v527
    %v538 = vadd.f32 %v429, %v528
    %v539 = vadd.f32 %v430, %v529
    %v540 = vadd.f32 %v431, %v530
    %v541 = vadd.f32 %v432, %v531
    %v542 = vadd.f32 %v433, %v532
    %v543 = vadd.f32 %v434, %v533
    %v544 = vadd.f32 %v435, %v534
    %v545 = vadd.f32 %v436, %v535
    %v546 = vadd.f32 %v437, %v536
    %v547 = vpack.c.bf16 %v538, %v537
    %v548 = vpack.c.bf16 %v540, %v539
    %v549 = vpack.c.bf16 %v542, %v541
    %v550 = vpack.c.bf16 %v544, %v543
    %v551 = vpack.c.bf16 %v546, %v545
    %552 = vst [vmem:[#allocation2 + $0x28] sm:$0xff] %v547
    %553 = vst [vmem:[#allocation2 + $0x30] sm:$0xff] %v548
    %554 = vst [vmem:[#allocation2 + $0x38] sm:$0xff] %v549
    %555 = vst [vmem:[#allocation2 + $0x40] sm:$0xff] %v550
    %556 = vst [vmem:[#allocation2 + $0x48] sm:$0xff] %v551
    %s557 = scalar_lea.vmem [#allocation4], 48
    %v558 = vld [vmem:[%s557] sm:$0xf]
    %v559 = vld [vmem:[%s557 + $0x4] sm:$0xf]
    %v560 = vld [vmem:[%s557 + $0x8] sm:$0x7]
    %v564 = vunpack.c.l.b16 %v558
    %v565 = vunpack.c.l.b16 %v559
    %v566 = vunpack.c.l.b16 %v560
    %v567 = vpack.c.b16 %v565, %v564
    %v568 = vpack.c.b16 %v566, %v566
    %v571 = vand.u32 %v568, %v133
    %573 = vmatprep.subr.bf16.mxu0 0
    %574 = vmatpush1.bf16.msra.mxu0 %v567
    %575 = vmatprep.subr.bf16.mxu0 0
    %576 = vmatpush1.bf16.msra.mxu0 %v571
    %577 = vmatprep.subr.bf16.mxu0 0
    %578 = vmatpush1.bf16.msra.mxu0 0
    %579 = vmatprep.subr.bf16.mxu0 0
    %580 = vmatpush1.bf16.msra.mxu0 0
    %581 = vmatprep.subr.bf16.mxu0 0
    %582 = vmatpush1.bf16.msra.mxu0 0
    %583 = vmatprep.subr.bf16.mxu0 0
    %584 = vmatpush1.bf16.msra.mxu0 0
    %585 = vmatprep.subr.bf16.mxu0 0
    %586 = vmatpush1.bf16.msra.mxu0 0
    %587 = vmatprep.subr.bf16.mxu0 0
    %588 = vmatpush1.bf16.msra.mxu0 0
    %589 = vmatprep.subr.bf16.mxu0 0
    %590 = vmatpush1.bf16.msra.mxu0 0
    %591 = vmatprep.subr.bf16.mxu0 0
    %592 = vmatpush1.bf16.msra.mxu0 0
    %593 = vmatprep.subr.bf16.mxu0 0
    %594 = vmatpush1.bf16.msra.mxu0 0
    %595 = vmatprep.subr.bf16.mxu0 0
    %596 = vmatpush1.bf16.msra.mxu0 0
    %597 = vmatprep.subr.bf16.mxu0 0
    %598 = vmatpush1.bf16.msra.mxu0 0
    %599 = vmatprep.subr.bf16.mxu0 0
    %600 = vmatpush1.bf16.msra.mxu0 0
    %601 = vmatprep.subr.bf16.mxu0 0
    %602 = vmatpush1.bf16.msra.mxu0 0
    %603 = vmatprep.subr.bf16.mxu0 0
    %604 = vmatpush1.bf16.msra.mxu0 0
    %605 = vmatprep.mubr.bf16.mxu0 0
    %606 = vmatmul.mubr.bf16.gmra.mrb[0].mxu0 %v116
    %v607 = vpop.f32.mrb[0].mxu0
    %v608 = vadd.f32 0.0, %v607
    %v609 = vpop.f32.mrb[0].mxu0
    %v610 = vpop.f32.mrb[0].mxu0
    %v611 = vadd.f32 0.0, %v610
    %v612 = vpop.f32.mrb[0].mxu0
    %613 = vmatprep.mubr.bf16.mxu0 0
    %614 = vmatmul.mubr.bf16.gmra.mrb[0].mxu0 %v119
    %v615 = vpop.f32.mrb[0].mxu0
    %v616 = vadd.f32 0.0, %v615
    %v617 = vpop.f32.mrb[0].mxu0
    %v618 = vpop.f32.mrb[0].mxu0
    %v619 = vadd.f32 0.0, %v618
    %v620 = vpop.f32.mrb[0].mxu0
    %621 = vmatprep.mubr.bf16.mxu0 0
    %622 = vmatmul.mubr.bf16.gmra.mrb[0].mxu0 %v122
    %v623 = vpop.f32.mrb[0].mxu0
    %v624 = vadd.f32 0.0, %v623
    %v625 = vpop.f32.mrb[0].mxu0
    %v626 = vpop.f32.mrb[0].mxu0
    %v627 = vadd.f32 0.0, %v626
    %v628 = vpop.f32.mrb[0].mxu0
    %629 = vmatprep.mubr.bf16.mxu0 0
    %630 = vmatmul.mubr.bf16.gmra.mrb[0].mxu0 %v125
    %v631 = vpop.f32.mrb[0].mxu0
    %v632 = vadd.f32 0.0, %v631
    %v633 = vpop.f32.mrb[0].mxu0
    %v634 = vpop.f32.mrb[0].mxu0
    %v635 = vadd.f32 0.0, %v634
    %v636 = vpop.f32.mrb[0].mxu0
    %637 = vmatprep.mubr.bf16.mxu0 0
    %638 = vmatmul.mubr.bf16.gmra.mrb[0].mxu0 %v128
    %v639 = vpop.f32.mrb[0].mxu0
    %v640 = vadd.f32 0.0, %v639
    %v641 = vpop.f32.mrb[0].mxu0
    %v642 = vpop.f32.mrb[0].mxu0
    %v643 = vadd.f32 0.0, %v642
    %v644 = vpop.f32.mrb[0].mxu0
    %645 = vdwg.mxu0
    %v646 = vmax.f32 %v608, 0.0
    %v647 = vmax.f32 %v611, 0.0
    %v648 = vmax.f32 %v616, 0.0
    %v649 = vmax.f32 %v619, 0.0
    %v650 = vmax.f32 %v624, 0.0
    %v651 = vmax.f32 %v627, 0.0
    %v652 = vmax.f32 %v632, 0.0
    %v653 = vmax.f32 %v635, 0.0
    %v654 = vmax.f32 %v640, 0.0
    %v655 = vmax.f32 %v643, 0.0
    %s656 = scalar_lea.vmem [#allocation4], 60
    %v657 = vld [vmem:[%s656] sm:$0xf]
    %v658 = vld [vmem:[%s656 + $0x4] sm:$0xf]
    %v659 = vld [vmem:[%s656 + $0x8] sm:$0x7]
    %v663 = vunpack.c.l.b16 %v657
    %v664 = vunpack.c.l.b16 %v658
    %v665 = vunpack.c.l.b16 %v659
    %v666 = vpack.c.b16 %v664, %v663
    %v667 = vpack.c.b16 %v665, %v665
    %v670 = vand.u32 %v667, %v133
    %672 = vmatprep.subr.bf16.mxu0 0
    %673 = vmatpush1.bf16.msra.mxu0 %v666
    %674 = vmatprep.subr.bf16.mxu0 0
    %675 = vmatpush1.bf16.msra.mxu0 %v670
    %676 = vmatprep.subr.bf16.mxu0 0
    %677 = vmatpush1.bf16.msra.mxu0 0
    %678 = vmatprep.subr.bf16.mxu0 0
    %679 = vmatpush1.bf16.msra.mxu0 0
    %680 = vmatprep.subr.bf16.mxu0 0
    %681 = vmatpush1.bf16.msra.mxu0 0
    %682 = vmatprep.subr.bf16.mxu0 0
    %683 = vmatpush1.bf16.msra.mxu0 0
    %684 = vmatprep.subr.bf16.mxu0 0
    %685 = vmatpush1.bf16.msra.mxu0 0
    %686 = vmatprep.subr.bf16.mxu0 0
    %687 = vmatpush1.bf16.msra.mxu0 0
    %688 = vmatprep.subr.bf16.mxu0 0
    %689 = vmatpush1.bf16.msra.mxu0 0
    %690 = vmatprep.subr.bf16.mxu0 0
    %691 = vmatpush1.bf16.msra.mxu0 0
    %692 = vmatprep.subr.bf16.mxu0 0
    %693 = vmatpush1.bf16.msra.mxu0 0
    %694 = vmatprep.subr.bf16.mxu0 0
    %695 = vmatpush1.bf16.msra.mxu0 0
    %696 = vmatprep.subr.bf16.mxu0 0
    %697 = vmatpush1.bf16.msra.mxu0 0
    %698 = vmatprep.subr.bf16.mxu0 0
    %699 = vmatpush1.bf16.msra.mxu0 0
    %700 = vmatprep.subr.bf16.mxu0 0
    %701 = vmatpush1.bf16.msra.mxu0 0
    %702 = vmatprep.subr.bf16.mxu0 0
    %703 = vmatpush1.bf16.msra.mxu0 0
    %704 = vmatprep.mubr.bf16.mxu0 0
    %705 = vmatmul.mubr.bf16.gmra.mrb[0].mxu0 %v116
    %v706 = vpop.f32.mrb[0].mxu0
    %v707 = vadd.f32 0.0, %v706
    %v708 = vpop.f32.mrb[0].mxu0
    %v709 = vpop.f32.mrb[0].mxu0
    %v710 = vadd.f32 0.0, %v709
    %v711 = vpop.f32.mrb[0].mxu0
    %712 = vmatprep.mubr.bf16.mxu0 0
    %713 = vmatmul.mubr.bf16.gmra.mrb[0].mxu0 %v119
    %v714 = vpop.f32.mrb[0].mxu0
    %v715 = vadd.f32 0.0, %v714
    %v716 = vpop.f32.mrb[0].mxu0
    %v717 = vpop.f32.mrb[0].mxu0
    %v718 = vadd.f32 0.0, %v717
    %v719 = vpop.f32.mrb[0].mxu0
    %720 = vmatprep.mubr.bf16.mxu0 0
    %721 = vmatmul.mubr.bf16.gmra.mrb[0].mxu0 %v122
    %v722 = vpop.f32.mrb[0].mxu0
    %v723 = vadd.f32 0.0, %v722
    %v724 = vpop.f32.mrb[0].mxu0
    %v725 = vpop.f32.mrb[0].mxu0
    %v726 = vadd.f32 0.0, %v725
    %v727 = vpop.f32.mrb[0].mxu0
    %728 = vmatprep.mubr.bf16.mxu0 0
    %729 = vmatmul.mubr.bf16.gmra.mrb[0].mxu0 %v125
    %v730 = vpop.f32.mrb[0].mxu0
    %v731 = vadd.f32 0.0, %v730
    %v732 = vpop.f32.mrb[0].mxu0
    %v733 = vpop.f32.mrb[0].mxu0
    %v734 = vadd.f32 0.0, %v733
    %v735 = vpop.f32.mrb[0].mxu0
    %736 = vmatprep.mubr.bf16.mxu0 0
    %737 = vmatmul.mubr.bf16.gmra.mrb[0].mxu0 %v128
    %v738 = vpop.f32.mrb[0].mxu0
    %v739 = vadd.f32 0.0, %v738
    %v740 = vpop.f32.mrb[0].mxu0
    %v741 = vpop.f32.mrb[0].mxu0
    %v742 = vadd.f32 0.0, %v741
    %v743 = vpop.f32.mrb[0].mxu0
    %744 = vdwg.mxu0
    %v745 = vmax.f32 %v707, 0.0
    %v746 = vmax.f32 %v710, 0.0
    %v747 = vmax.f32 %v715, 0.0
    %v748 = vmax.f32 %v718, 0.0
    %v749 = vmax.f32 %v723, 0.0
    %v750 = vmax.f32 %v726, 0.0
    %v751 = vmax.f32 %v731, 0.0
    %v752 = vmax.f32 %v734, 0.0
    %v753 = vmax.f32 %v739, 0.0
    %v754 = vmax.f32 %v742, 0.0
    %v755 = vadd.f32 %v646, %v745
    %v756 = vadd.f32 %v647, %v746
    %v757 = vadd.f32 %v648, %v747
    %v758 = vadd.f32 %v649, %v748
    %v759 = vadd.f32 %v650, %v749
    %v760 = vadd.f32 %v651, %v750
    %v761 = vadd.f32 %v652, %v751
    %v762 = vadd.f32 %v653, %v752
    %v763 = vadd.f32 %v654, %v753
    %v764 = vadd.f32 %v655, %v754
    %v765 = vpack.c.bf16 %v756, %v755
    %v766 = vpack.c.bf16 %v758, %v757
    %v767 = vpack.c.bf16 %v760, %v759
    %v768 = vpack.c.bf16 %v762, %v761
    %v769 = vpack.c.bf16 %v764, %v763
    %770 = vst [vmem:[#allocation2 + $0x50] sm:$0xff] %v765
    %771 = vst [vmem:[#allocation2 + $0x58] sm:$0xff] %v766
    %772 = vst [vmem:[#allocation2 + $0x60] sm:$0xff] %v767
    %773 = vst [vmem:[#allocation2 + $0x68] sm:$0xff] %v768
    %774 = vst [vmem:[#allocation2 + $0x70] sm:$0xff] %v769
    %s775 = scalar_lea.vmem [#allocation4], 72
    %v776 = vld [vmem:[%s775] sm:$0xf]
    %v777 = vld [vmem:[%s775 + $0x4] sm:$0xf]
    %v778 = vld [vmem:[%s775 + $0x8] sm:$0x7]
    %v782 = vunpack.c.l.b16 %v776
    %v783 = vunpack.c.l.b16 %v777
    %v784 = vunpack.c.l.b16 %v778
    %v785 = vpack.c.b16 %v783, %v782
    %v786 = vpack.c.b16 %v784, %v784
    %v789 = vand.u32 %v786, %v133
    %791 = vmatprep.subr.bf16.mxu0 0
    %792 = vmatpush1.bf16.msra.mxu0 %v785
    %793 = vmatprep.subr.bf16.mxu0 0
    %794 = vmatpush1.bf16.msra.mxu0 %v789
    %795 = vmatprep.subr.bf16.mxu0 0
    %796 = vmatpush1.bf16.msra.mxu0 0
    %797 = vmatprep.subr.bf16.mxu0 0
    %798 = vmatpush1.bf16.msra.mxu0 0
    %799 = vmatprep.subr.bf16.mxu0 0
    %800 = vmatpush1.bf16.msra.mxu0 0
    %801 = vmatprep.subr.bf16.mxu0 0
    %802 = vmatpush1.bf16.msra.mxu0 0
    %803 = vmatprep.subr.bf16.mxu0 0
    %804 = vmatpush1.bf16.msra.mxu0 0
    %805 = vmatprep.subr.bf16.mxu0 0
    %806 = vmatpush1.bf16.msra.mxu0 0
    %807 = vmatprep.subr.bf16.mxu0 0
    %808 = vmatpush1.bf16.msra.mxu0 0
    %809 = vmatprep.subr.bf16.mxu0 0
    %810 = vmatpush1.bf16.msra.mxu0 0
    %811 = vmatprep.subr.bf16.mxu0 0
    %812 = vmatpush1.bf16.msra.mxu0 0
    %813 = vmatprep.subr.bf16.mxu0 0
    %814 = vmatpush1.bf16.msra.mxu0 0
    %815 = vmatprep.subr.bf16.mxu0 0
    %816 = vmatpush1.bf16.msra.mxu0 0
    %817 = vmatprep.subr.bf16.mxu0 0
    %818 = vmatpush1.bf16.msra.mxu0 0
    %819 = vmatprep.subr.bf16.mxu0 0
    %820 = vmatpush1.bf16.msra.mxu0 0
    %821 = vmatprep.subr.bf16.mxu0 0
    %822 = vmatpush1.bf16.msra.mxu0 0
    %823 = vmatprep.mubr.bf16.mxu0 0
    %824 = vmatmul.mubr.bf16.gmra.mrb[0].mxu0 %v116
    %v825 = vpop.f32.mrb[0].mxu0
    %v826 = vadd.f32 0.0, %v825
    %v827 = vpop.f32.mrb[0].mxu0
    %v828 = vpop.f32.mrb[0].mxu0
    %v829 = vadd.f32 0.0, %v828
    %v830 = vpop.f32.mrb[0].mxu0
    %831 = vmatprep.mubr.bf16.mxu0 0
    %832 = vmatmul.mubr.bf16.gmra.mrb[0].mxu0 %v119
    %v833 = vpop.f32.mrb[0].mxu0
    %v834 = vadd.f32 0.0, %v833
    %v835 = vpop.f32.mrb[0].mxu0
    %v836 = vpop.f32.mrb[0].mxu0
    %v837 = vadd.f32 0.0, %v836
    %v838 = vpop.f32.mrb[0].mxu0
    %839 = vmatprep.mubr.bf16.mxu0 0
    %840 = vmatmul.mubr.bf16.gmra.mrb[0].mxu0 %v122
    %v841 = vpop.f32.mrb[0].mxu0
    %v842 = vadd.f32 0.0, %v841
    %v843 = vpop.f32.mrb[0].mxu0
    %v844 = vpop.f32.mrb[0].mxu0
    %v845 = vadd.f32 0.0, %v844
    %v846 = vpop.f32.mrb[0].mxu0
    %847 = vmatprep.mubr.bf16.mxu0 0
    %848 = vmatmul.mubr.bf16.gmra.mrb[0].mxu0 %v125
    %v849 = vpop.f32.mrb[0].mxu0
    %v850 = vadd.f32 0.0, %v849
    %v851 = vpop.f32.mrb[0].mxu0
    %v852 = vpop.f32.mrb[0].mxu0
    %v853 = vadd.f32 0.0, %v852
    %v854 = vpop.f32.mrb[0].mxu0
    %855 = vmatprep.mubr.bf16.mxu0 0
    %856 = vmatmul.mubr.bf16.gmra.mrb[0].mxu0 %v128
    %v857 = vpop.f32.mrb[0].mxu0
    %v858 = vadd.f32 0.0, %v857
    %v859 = vpop.f32.mrb[0].mxu0
    %v860 = vpop.f32.mrb[0].mxu0
    %v861 = vadd.f32 0.0, %v860
    %v862 = vpop.f32.mrb[0].mxu0
    %863 = vdwg.mxu0
    %v864 = vmax.f32 %v826, 0.0
    %v865 = vmax.f32 %v829, 0.0
    %v866 = vmax.f32 %v834, 0.0
    %v867 = vmax.f32 %v837, 0.0
    %v868 = vmax.f32 %v842, 0.0
    %v869 = vmax.f32 %v845, 0.0
    %v870 = vmax.f32 %v850, 0.0
    %v871 = vmax.f32 %v853, 0.0
    %v872 = vmax.f32 %v858, 0.0
    %v873 = vmax.f32 %v861, 0.0
    %s874 = scalar_lea.vmem [#allocation4], 84
    %v875 = vld [vmem:[%s874] sm:$0xf]
    %v876 = vld [vmem:[%s874 + $0x4] sm:$0xf]
    %v877 = vld [vmem:[%s874 + $0x8] sm:$0x7]
    %v881 = vunpack.c.l.b16 %v875
    %v882 = vunpack.c.l.b16 %v876
    %v883 = vunpack.c.l.b16 %v877
    %v884 = vpack.c.b16 %v882, %v881
    %v885 = vpack.c.b16 %v883, %v883
    %v888 = vand.u32 %v885, %v133
    %890 = vmatprep.subr.bf16.mxu0 0
    %891 = vmatpush1.bf16.msra.mxu0 %v884
    %892 = vmatprep.subr.bf16.mxu0 0
    %893 = vmatpush1.bf16.msra.mxu0 %v888
    %894 = vmatprep.subr.bf16.mxu0 0
    %895 = vmatpush1.bf16.msra.mxu0 0
    %896 = vmatprep.subr.bf16.mxu0 0
    %897 = vmatpush1.bf16.msra.mxu0 0
    %898 = vmatprep.subr.bf16.mxu0 0
    %899 = vmatpush1.bf16.msra.mxu0 0
    %900 = vmatprep.subr.bf16.mxu0 0
    %901 = vmatpush1.bf16.msra.mxu0 0
    %902 = vmatprep.subr.bf16.mxu0 0
    %903 = vmatpush1.bf16.msra.mxu0 0
    %904 = vmatprep.subr.bf16.mxu0 0
    %905 = vmatpush1.bf16.msra.mxu0 0
    %906 = vmatprep.subr.bf16.mxu0 0
    %907 = vmatpush1.bf16.msra.mxu0 0
    %908 = vmatprep.subr.bf16.mxu0 0
    %909 = vmatpush1.bf16.msra.mxu0 0
    %910 = vmatprep.subr.bf16.mxu0 0
    %911 = vmatpush1.bf16.msra.mxu0 0
    %912 = vmatprep.subr.bf16.mxu0 0
    %913 = vmatpush1.bf16.msra.mxu0 0
    %914 = vmatprep.subr.bf16.mxu0 0
    %915 = vmatpush1.bf16.msra.mxu0 0
    %916 = vmatprep.subr.bf16.mxu0 0
    %917 = vmatpush1.bf16.msra.mxu0 0
    %918 = vmatprep.subr.bf16.mxu0 0
    %919 = vmatpush1.bf16.msra.mxu0 0
    %920 = vmatprep.subr.bf16.mxu0 0
    %921 = vmatpush1.bf16.msra.mxu0 0
    %922 = vmatprep.mubr.bf16.mxu0 0
    %923 = vmatmul.mubr.bf16.gmra.mrb[0].mxu0 %v116
    %v924 = vpop.f32.mrb[0].mxu0
    %v925 = vadd.f32 0.0, %v924
    %v926 = vpop.f32.mrb[0].mxu0
    %v927 = vpop.f32.mrb[0].mxu0
    %v928 = vadd.f32 0.0, %v927
    %v929 = vpop.f32.mrb[0].mxu0
    %930 = vmatprep.mubr.bf16.mxu0 0
    %931 = vmatmul.mubr.bf16.gmra.mrb[0].mxu0 %v119
    %v932 = vpop.f32.mrb[0].mxu0
    %v933 = vadd.f32 0.0, %v932
    %v934 = vpop.f32.mrb[0].mxu0
    %v935 = vpop.f32.mrb[0].mxu0
    %v936 = vadd.f32 0.0, %v935
    %v937 = vpop.f32.mrb[0].mxu0
    %938 = vmatprep.mubr.bf16.mxu0 0
    %939 = vmatmul.mubr.bf16.gmra.mrb[0].mxu0 %v122
    %v940 = vpop.f32.mrb[0].mxu0
    %v941 = vadd.f32 0.0, %v940
    %v942 = vpop.f32.mrb[0].mxu0
    %v943 = vpop.f32.mrb[0].mxu0
    %v944 = vadd.f32 0.0, %v943
    %v945 = vpop.f32.mrb[0].mxu0
    %946 = vmatprep.mubr.bf16.mxu0 0
    %947 = vmatmul.mubr.bf16.gmra.mrb[0].mxu0 %v125
    %v948 = vpop.f32.mrb[0].mxu0
    %v949 = vadd.f32 0.0, %v948
    %v950 = vpop.f32.mrb[0].mxu0
    %v951 = vpop.f32.mrb[0].mxu0
    %v952 = vadd.f32 0.0, %v951
    %v953 = vpop.f32.mrb[0].mxu0
    %954 = vmatprep.mubr.bf16.mxu0 0
    %955 = vmatmul.mubr.bf16.gmra.mrb[0].mxu0 %v128
    %v956 = vpop.f32.mrb[0].mxu0
    %v957 = vadd.f32 0.0, %v956
    %v958 = vpop.f32.mrb[0].mxu0
    %v959 = vpop.f32.mrb[0].mxu0
    %v960 = vadd.f32 0.0, %v959
    %v961 = vpop.f32.mrb[0].mxu0
    %962 = vdwg.mxu0
    %v963 = vmax.f32 %v925, 0.0
    %v964 = vmax.f32 %v928, 0.0
    %v965 = vmax.f32 %v933, 0.0
    %v966 = vmax.f32 %v936, 0.0
    %v967 = vmax.f32 %v941, 0.0
    %v968 = vmax.f32 %v944, 0.0
    %v969 = vmax.f32 %v949, 0.0
    %v970 = vmax.f32 %v952, 0.0
    %v971 = vmax.f32 %v957, 0.0
    %v972 = vmax.f32 %v960, 0.0
    %v973 = vadd.f32 %v864, %v963
    %v974 = vadd.f32 %v865, %v964
    %v975 = vadd.f32 %v866, %v965
    %v976 = vadd.f32 %v867, %v966
    %v977 = vadd.f32 %v868, %v967
    %v978 = vadd.f32 %v869, %v968
    %v979 = vadd.f32 %v870, %v969
    %v980 = vadd.f32 %v871, %v970
    %v981 = vadd.f32 %v872, %v971
    %v982 = vadd.f32 %v873, %v972
    %v983 = vpack.c.bf16 %v974, %v973
    %v984 = vpack.c.bf16 %v976, %v975
    %v985 = vpack.c.bf16 %v978, %v977
    %v986 = vpack.c.bf16 %v980, %v979
    %v987 = vpack.c.bf16 %v982, %v981
    %988 = vst [vmem:[#allocation2 + $0x78] sm:$0xff] %v983
    %989 = vst [vmem:[#allocation2 + $0x80] sm:$0xff] %v984
    %990 = vst [vmem:[#allocation2 + $0x88] sm:$0xff] %v985
    %991 = vst [vmem:[#allocation2 + $0x90] sm:$0xff] %v986
    %992 = vst [vmem:[#allocation2 + $0x98] sm:$0xff] %v987
    %s993 = scalar_lea.vmem [#allocation4], 96
    %v994 = vld [vmem:[%s993] sm:$0xf]
    %v995 = vld [vmem:[%s993 + $0x4] sm:$0xf]
    %v996 = vld [vmem:[%s993 + $0x8] sm:$0x7]
    %v1000 = vunpack.c.l.b16 %v994
    %v1001 = vunpack.c.l.b16 %v995
    %v1002 = vunpack.c.l.b16 %v996
    %v1003 = vpack.c.b16 %v1001, %v1000
    %v1004 = vpack.c.b16 %v1002, %v1002
    %v1007 = vand.u32 %v1004, %v133
    %1009 = vmatprep.subr.bf16.mxu0 0
    %1010 = vmatpush1.bf16.msra.mxu0 %v1003
    %1011 = vmatprep.subr.bf16.mxu0 0
    %1012 = vmatpush1.bf16.msra.mxu0 %v1007
    %1013 = vmatprep.subr.bf16.mxu0 0
    %1014 = vmatpush1.bf16.msra.mxu0 0
    %1015 = vmatprep.subr.bf16.mxu0 0
    %1016 = vmatpush1.bf16.msra.mxu0 0
    %1017 = vmatprep.subr.bf16.mxu0 0
    %1018 = vmatpush1.bf16.msra.mxu0 0
    %1019 = vmatprep.subr.bf16.mxu0 0
    %1020 = vmatpush1.bf16.msra.mxu0 0
    %1021 = vmatprep.subr.bf16.mxu0 0
    %1022 = vmatpush1.bf16.msra.mxu0 0
    %1023 = vmatprep.subr.bf16.mxu0 0
    %1024 = vmatpush1.bf16.msra.mxu0 0
    %1025 = vmatprep.subr.bf16.mxu0 0
    %1026 = vmatpush1.bf16.msra.mxu0 0
    %1027 = vmatprep.subr.bf16.mxu0 0
    %1028 = vmatpush1.bf16.msra.mxu0 0
    %1029 = vmatprep.subr.bf16.mxu0 0
    %1030 = vmatpush1.bf16.msra.mxu0 0
    %1031 = vmatprep.subr.bf16.mxu0 0
    %1032 = vmatpush1.bf16.msra.mxu0 0
    %1033 = vmatprep.subr.bf16.mxu0 0
    %1034 = vmatpush1.bf16.msra.mxu0 0
    %1035 = vmatprep.subr.bf16.mxu0 0
    %1036 = vmatpush1.bf16.msra.mxu0 0
    %1037 = vmatprep.subr.bf16.mxu0 0
    %1038 = vmatpush1.bf16.msra.mxu0 0
    %1039 = vmatprep.subr.bf16.mxu0 0
    %1040 = vmatpush1.bf16.msra.mxu0 0
    %1041 = vmatprep.mubr.bf16.mxu0 0
    %1042 = vmatmul.mubr.bf16.gmra.mrb[0].mxu0 %v116
    %v1043 = vpop.f32.mrb[0].mxu0
    %v1044 = vadd.f32 0.0, %v1043
    %v1045 = vpop.f32.mrb[0].mxu0
    %v1046 = vpop.f32.mrb[0].mxu0
    %v1047 = vadd.f32 0.0, %v1046
    %v1048 = vpop.f32.mrb[0].mxu0
    %1049 = vmatprep.mubr.bf16.mxu0 0
    %1050 = vmatmul.mubr.bf16.gmra.mrb[0].mxu0 %v119
    %v1051 = vpop.f32.mrb[0].mxu0
    %v1052 = vadd.f32 0.0, %v1051
    %v1053 = vpop.f32.mrb[0].mxu0
    %v1054 = vpop.f32.mrb[0].mxu0
    %v1055 = vadd.f32 0.0, %v1054
    %v1056 = vpop.f32.mrb[0].mxu0
    %1057 = vmatprep.mubr.bf16.mxu0 0
    %1058 = vmatmul.mubr.bf16.gmra.mrb[0].mxu0 %v122
    %v1059 = vpop.f32.mrb[0].mxu0
    %v1060 = vadd.f32 0.0, %v1059
    %v1061 = vpop.f32.mrb[0].mxu0
    %v1062 = vpop.f32.mrb[0].mxu0
    %v1063 = vadd.f32 0.0, %v1062
    %v1064 = vpop.f32.mrb[0].mxu0
    %1065 = vmatprep.mubr.bf16.mxu0 0
    %1066 = vmatmul.mubr.bf16.gmra.mrb[0].mxu0 %v125
    %v1067 = vpop.f32.mrb[0].mxu0
    %v1068 = vadd.f32 0.0, %v1067
    %v1069 = vpop.f32.mrb[0].mxu0
    %v1070 = vpop.f32.mrb[0].mxu0
    %v1071 = vadd.f32 0.0, %v1070
    %v1072 = vpop.f32.mrb[0].mxu0
    %1073 = vmatprep.mubr.bf16.mxu0 0
    %1074 = vmatmul.mubr.bf16.gmra.mrb[0].mxu0 %v128
    %v1075 = vpop.f32.mrb[0].mxu0
    %v1076 = vadd.f32 0.0, %v1075
    %v1077 = vpop.f32.mrb[0].mxu0
    %v1078 = vpop.f32.mrb[0].mxu0
    %v1079 = vadd.f32 0.0, %v1078
    %v1080 = vpop.f32.mrb[0].mxu0
    %1081 = vdwg.mxu0
    %v1082 = vmax.f32 %v1044, 0.0
    %v1083 = vmax.f32 %v1047, 0.0
    %v1084 = vmax.f32 %v1052, 0.0
    %v1085 = vmax.f32 %v1055, 0.0
    %v1086 = vmax.f32 %v1060, 0.0
    %v1087 = vmax.f32 %v1063, 0.0
    %v1088 = vmax.f32 %v1068, 0.0
    %v1089 = vmax.f32 %v1071, 0.0
    %v1090 = vmax.f32 %v1076, 0.0
    %v1091 = vmax.f32 %v1079, 0.0
    %s1092 = scalar_lea.vmem [#allocation4], 108
    %v1093 = vld [vmem:[%s1092] sm:$0xf]
    %v1094 = vld [vmem:[%s1092 + $0x4] sm:$0xf]
    %v1095 = vld [vmem:[%s1092 + $0x8] sm:$0x7]
    %v1099 = vunpack.c.l.b16 %v1093
    %v1100 = vunpack.c.l.b16 %v1094
    %v1101 = vunpack.c.l.b16 %v1095
    %v1102 = vpack.c.b16 %v1100, %v1099
    %v1103 = vpack.c.b16 %v1101, %v1101
    %v1106 = vand.u32 %v1103, %v133
    %1108 = vmatprep.subr.bf16.mxu0 0
    %1109 = vmatpush1.bf16.msra.mxu0 %v1102
    %1110 = vmatprep.subr.bf16.mxu0 0
    %1111 = vmatpush1.bf16.msra.mxu0 %v1106
    %1112 = vmatprep.subr.bf16.mxu0 0
    %1113 = vmatpush1.bf16.msra.mxu0 0
    %1114 = vmatprep.subr.bf16.mxu0 0
    %1115 = vmatpush1.bf16.msra.mxu0 0
    %1116 = vmatprep.subr.bf16.mxu0 0
    %1117 = vmatpush1.bf16.msra.mxu0 0
    %1118 = vmatprep.subr.bf16.mxu0 0
    %1119 = vmatpush1.bf16.msra.mxu0 0
    %1120 = vmatprep.subr.bf16.mxu0 0
    %1121 = vmatpush1.bf16.msra.mxu0 0
    %1122 = vmatprep.subr.bf16.mxu0 0
    %1123 = vmatpush1.bf16.msra.mxu0 0
    %1124 = vmatprep.subr.bf16.mxu0 0
    %1125 = vmatpush1.bf16.msra.mxu0 0
    %1126 = vmatprep.subr.bf16.mxu0 0
    %1127 = vmatpush1.bf16.msra.mxu0 0
    %1128 = vmatprep.subr.bf16.mxu0 0
    %1129 = vmatpush1.bf16.msra.mxu0 0
    %1130 = vmatprep.subr.bf16.mxu0 0
    %1131 = vmatpush1.bf16.msra.mxu0 0
    %1132 = vmatprep.subr.bf16.mxu0 0
    %1133 = vmatpush1.bf16.msra.mxu0 0
    %1134 = vmatprep.subr.bf16.mxu0 0
    %1135 = vmatpush1.bf16.msra.mxu0 0
    %1136 = vmatprep.subr.bf16.mxu0 0
    %1137 = vmatpush1.bf16.msra.mxu0 0
    %1138 = vmatprep.subr.bf16.mxu0 0
    %1139 = vmatpush1.bf16.msra.mxu0 0
    %1140 = vmatprep.mubr.bf16.mxu0 0
    %1141 = vmatmul.mubr.bf16.gmra.mrb[0].mxu0 %v116
    %v1142 = vpop.f32.mrb[0].mxu0
    %v1143 = vadd.f32 0.0, %v1142
    %v1144 = vpop.f32.mrb[0].mxu0
    %v1145 = vpop.f32.mrb[0].mxu0
    %v1146 = vadd.f32 0.0, %v1145
    %v1147 = vpop.f32.mrb[0].mxu0
    %1148 = vmatprep.mubr.bf16.mxu0 0
    %1149 = vmatmul.mubr.bf16.gmra.mrb[0].mxu0 %v119
    %v1150 = vpop.f32.mrb[0].mxu0
    %v1151 = vadd.f32 0.0, %v1150
    %v1152 = vpop.f32.mrb[0].mxu0
    %v1153 = vpop.f32.mrb[0].mxu0
    %v1154 = vadd.f32 0.0, %v1153
    %v1155 = vpop.f32.mrb[0].mxu0
    %1156 = vmatprep.mubr.bf16.mxu0 0
    %1157 = vmatmul.mubr.bf16.gmra.mrb[0].mxu0 %v122
    %v1158 = vpop.f32.mrb[0].mxu0
    %v1159 = vadd.f32 0.0, %v1158
    %v1160 = vpop.f32.mrb[0].mxu0
    %v1161 = vpop.f32.mrb[0].mxu0
    %v1162 = vadd.f32 0.0, %v1161
    %v1163 = vpop.f32.mrb[0].mxu0
    %1164 = vmatprep.mubr.bf16.mxu0 0
    %1165 = vmatmul.mubr.bf16.gmra.mrb[0].mxu0 %v125
    %v1166 = vpop.f32.mrb[0].mxu0
    %v1167 = vadd.f32 0.0, %v1166
    %v1168 = vpop.f32.mrb[0].mxu0
    %v1169 = vpop.f32.mrb[0].mxu0
    %v1170 = vadd.f32 0.0, %v1169
    %v1171 = vpop.f32.mrb[0].mxu0
    %1172 = vmatprep.mubr.bf16.mxu0 0
    %1173 = vmatmul.mubr.bf16.gmra.mrb[0].mxu0 %v128
    %v1174 = vpop.f32.mrb[0].mxu0
    %v1175 = vadd.f32 0.0, %v1174
    %v1176 = vpop.f32.mrb[0].mxu0
    %v1177 = vpop.f32.mrb[0].mxu0
    %v1178 = vadd.f32 0.0, %v1177
    %v1179 = vpop.f32.mrb[0].mxu0
    %1180 = vdwg.mxu0
    %v1181 = vmax.f32 %v1143, 0.0
    %v1182 = vmax.f32 %v1146, 0.0
    %v1183 = vmax.f32 %v1151, 0.0
    %v1184 = vmax.f32 %v1154, 0.0
    %v1185 = vmax.f32 %v1159, 0.0
    %v1186 = vmax.f32 %v1162, 0.0
    %v1187 = vmax.f32 %v1167, 0.0
    %v1188 = vmax.f32 %v1170, 0.0
    %v1189 = vmax.f32 %v1175, 0.0
    %v1190 = vmax.f32 %v1178, 0.0
    %v1191 = vadd.f32 %v1082, %v1181
    %v1192 = vadd.f32 %v1083, %v1182
    %v1193 = vadd.f32 %v1084, %v1183
    %v1194 = vadd.f32 %v1085, %v1184
    %v1195 = vadd.f32 %v1086, %v1185
    %v1196 = vadd.f32 %v1087, %v1186
    %v1197 = vadd.f32 %v1088, %v1187
    %v1198 = vadd.f32 %v1089, %v1188
    %v1199 = vadd.f32 %v1090, %v1189
    %v1200 = vadd.f32 %v1091, %v1190
    %v1201 = vpack.c.bf16 %v1192, %v1191
    %v1202 = vpack.c.bf16 %v1194, %v1193
    %v1203 = vpack.c.bf16 %v1196, %v1195
    %v1204 = vpack.c.bf16 %v1198, %v1197
    %v1205 = vpack.c.bf16 %v1200, %v1199
    %1206 = vst [vmem:[#allocation2 + $0xa0] sm:$0xff] %v1201
    %1207 = vst [vmem:[#allocation2 + $0xa8] sm:$0xff] %v1202
    %1208 = vst [vmem:[#allocation2 + $0xb0] sm:$0xff] %v1203
    %1209 = vst [vmem:[#allocation2 + $0xb8] sm:$0xff] %v1204
    %1210 = vst [vmem:[#allocation2 + $0xc0] sm:$0xff] %v1205
    %s1211 = scalar_lea.vmem [#allocation4], 120
    %v1212 = vld [vmem:[%s1211] sm:$0xf]
    %v1213 = vld [vmem:[%s1211 + $0x4] sm:$0xf]
    %v1214 = vld [vmem:[%s1211 + $0x8] sm:$0x7]
    %v1218 = vunpack.c.l.b16 %v1212
    %v1219 = vunpack.c.l.b16 %v1213
    %v1220 = vunpack.c.l.b16 %v1214
    %v1221 = vpack.c.b16 %v1219, %v1218
    %v1222 = vpack.c.b16 %v1220, %v1220
    %v1225 = vand.u32 %v1222, %v133
    %1227 = vmatprep.subr.bf16.mxu0 0
    %1228 = vmatpush1.bf16.msra.mxu0 %v1221
    %1229 = vmatprep.subr.bf16.mxu0 0
    %1230 = vmatpush1.bf16.msra.mxu0 %v1225
    %1231 = vmatprep.subr.bf16.mxu0 0
    %1232 = vmatpush1.bf16.msra.mxu0 0
    %1233 = vmatprep.subr.bf16.mxu0 0
    %1234 = vmatpush1.bf16.msra.mxu0 0
    %1235 = vmatprep.subr.bf16.mxu0 0
    %1236 = vmatpush1.bf16.msra.mxu0 0
    %1237 = vmatprep.subr.bf16.mxu0 0
    %1238 = vmatpush1.bf16.msra.mxu0 0
    %1239 = vmatprep.subr.bf16.mxu0 0
    %1240 = vmatpush1.bf16.msra.mxu0 0
    %1241 = vmatprep.subr.bf16.mxu0 0
    %1242 = vmatpush1.bf16.msra.mxu0 0
    %1243 = vmatprep.subr.bf16.mxu0 0
    %1244 = vmatpush1.bf16.msra.mxu0 0
    %1245 = vmatprep.subr.bf16.mxu0 0
    %1246 = vmatpush1.bf16.msra.mxu0 0
    %1247 = vmatprep.subr.bf16.mxu0 0
    %1248 = vmatpush1.bf16.msra.mxu0 0
    %1249 = vmatprep.subr.bf16.mxu0 0
    %1250 = vmatpush1.bf16.msra.mxu0 0
    %1251 = vmatprep.subr.bf16.mxu0 0
    %1252 = vmatpush1.bf16.msra.mxu0 0
    %1253 = vmatprep.subr.bf16.mxu0 0
    %1254 = vmatpush1.bf16.msra.mxu0 0
    %1255 = vmatprep.subr.bf16.mxu0 0
    %1256 = vmatpush1.bf16.msra.mxu0 0
    %1257 = vmatprep.subr.bf16.mxu0 0
    %1258 = vmatpush1.bf16.msra.mxu0 0
    %1259 = vmatprep.mubr.bf16.mxu0 0
    %1260 = vmatmul.mubr.bf16.gmra.mrb[0].mxu0 %v116
    %v1261 = vpop.f32.mrb[0].mxu0
    %v1262 = vadd.f32 0.0, %v1261
    %v1263 = vpop.f32.mrb[0].mxu0
    %v1264 = vpop.f32.mrb[0].mxu0
    %v1265 = vadd.f32 0.0, %v1264
    %v1266 = vpop.f32.mrb[0].mxu0
    %1267 = vmatprep.mubr.bf16.mxu0 0
    %1268 = vmatmul.mubr.bf16.gmra.mrb[0].mxu0 %v119
    %v1269 = vpop.f32.mrb[0].mxu0
    %v1270 = vadd.f32 0.0, %v1269
    %v1271 = vpop.f32.mrb[0].mxu0
    %v1272 = vpop.f32.mrb[0].mxu0
    %v1273 = vadd.f32 0.0, %v1272
    %v1274 = vpop.f32.mrb[0].mxu0
    %1275 = vmatprep.mubr.bf16.mxu0 0
    %1276 = vmatmul.mubr.bf16.gmra.mrb[0].mxu0 %v122
    %v1277 = vpop.f32.mrb[0].mxu0
    %v1278 = vadd.f32 0.0, %v1277
    %v1279 = vpop.f32.mrb[0].mxu0
    %v1280 = vpop.f32.mrb[0].mxu0
    %v1281 = vadd.f32 0.0, %v1280
    %v1282 = vpop.f32.mrb[0].mxu0
    %1283 = vmatprep.mubr.bf16.mxu0 0
    %1284 = vmatmul.mubr.bf16.gmra.mrb[0].mxu0 %v125
    %v1285 = vpop.f32.mrb[0].mxu0
    %v1286 = vadd.f32 0.0, %v1285
    %v1287 = vpop.f32.mrb[0].mxu0
    %v1288 = vpop.f32.mrb[0].mxu0
    %v1289 = vadd.f32 0.0, %v1288
    %v1290 = vpop.f32.mrb[0].mxu0
    %1291 = vmatprep.mubr.bf16.mxu0 0
    %1292 = vmatmul.mubr.bf16.gmra.mrb[0].mxu0 %v128
    %v1293 = vpop.f32.mrb[0].mxu0
    %v1294 = vadd.f32 0.0, %v1293
    %v1295 = vpop.f32.mrb[0].mxu0
    %v1296 = vpop.f32.mrb[0].mxu0
    %v1297 = vadd.f32 0.0, %v1296
    %v1298 = vpop.f32.mrb[0].mxu0
    %1299 = vdwg.mxu0
    %v1300 = vmax.f32 %v1262, 0.0
    %v1301 = vmax.f32 %v1265, 0.0
    %v1302 = vmax.f32 %v1270, 0.0
    %v1303 = vmax.f32 %v1273, 0.0
    %v1304 = vmax.f32 %v1278, 0.0
    %v1305 = vmax.f32 %v1281, 0.0
    %v1306 = vmax.f32 %v1286, 0.0
    %v1307 = vmax.f32 %v1289, 0.0
    %v1308 = vmax.f32 %v1294, 0.0
    %v1309 = vmax.f32 %v1297, 0.0
    %s1310 = scalar_lea.vmem [#allocation4], 132
    %v1311 = vld [vmem:[%s1310] sm:$0xf]
    %v1312 = vld [vmem:[%s1310 + $0x4] sm:$0xf]
    %v1313 = vld [vmem:[%s1310 + $0x8] sm:$0x7]
    %v1317 = vunpack.c.l.b16 %v1311
    %v1318 = vunpack.c.l.b16 %v1312
    %v1319 = vunpack.c.l.b16 %v1313
    %v1320 = vpack.c.b16 %v1318, %v1317
    %v1321 = vpack.c.b16 %v1319, %v1319
    %v1324 = vand.u32 %v1321, %v133
    %1326 = vmatprep.subr.bf16.mxu0 0
    %1327 = vmatpush1.bf16.msra.mxu0 %v1320
    %1328 = vmatprep.subr.bf16.mxu0 0
    %1329 = vmatpush1.bf16.msra.mxu0 %v1324
    %1330 = vmatprep.subr.bf16.mxu0 0
    %1331 = vmatpush1.bf16.msra.mxu0 0
    %1332 = vmatprep.subr.bf16.mxu0 0
    %1333 = vmatpush1.bf16.msra.mxu0 0
    %1334 = vmatprep.subr.bf16.mxu0 0
    %1335 = vmatpush1.bf16.msra.mxu0 0
    %1336 = vmatprep.subr.bf16.mxu0 0
    %1337 = vmatpush1.bf16.msra.mxu0 0
    %1338 = vmatprep.subr.bf16.mxu0 0
    %1339 = vmatpush1.bf16.msra.mxu0 0
    %1340 = vmatprep.subr.bf16.mxu0 0
    %1341 = vmatpush1.bf16.msra.mxu0 0
    %1342 = vmatprep.subr.bf16.mxu0 0
    %1343 = vmatpush1.bf16.msra.mxu0 0
    %1344 = vmatprep.subr.bf16.mxu0 0
    %1345 = vmatpush1.bf16.msra.mxu0 0
    %1346 = vmatprep.subr.bf16.mxu0 0
    %1347 = vmatpush1.bf16.msra.mxu0 0
    %1348 = vmatprep.subr.bf16.mxu0 0
    %1349 = vmatpush1.bf16.msra.mxu0 0
    %1350 = vmatprep.subr.bf16.mxu0 0
    %1351 = vmatpush1.bf16.msra.mxu0 0
    %1352 = vmatprep.subr.bf16.mxu0 0
    %1353 = vmatpush1.bf16.msra.mxu0 0
    %1354 = vmatprep.subr.bf16.mxu0 0
    %1355 = vmatpush1.bf16.msra.mxu0 0
    %1356 = vmatprep.subr.bf16.mxu0 0
    %1357 = vmatpush1.bf16.msra.mxu0 0
    %1358 = vmatprep.mubr.bf16.mxu0 0
    %1359 = vmatmul.mubr.bf16.gmra.mrb[0].mxu0 %v116
    %v1360 = vpop.f32.mrb[0].mxu0
    %v1361 = vadd.f32 0.0, %v1360
    %v1362 = vpop.f32.mrb[0].mxu0
    %v1363 = vpop.f32.mrb[0].mxu0
    %v1364 = vadd.f32 0.0, %v1363
    %v1365 = vpop.f32.mrb[0].mxu0
    %1366 = vmatprep.mubr.bf16.mxu0 0
    %1367 = vmatmul.mubr.bf16.gmra.mrb[0].mxu0 %v119
    %v1368 = vpop.f32.mrb[0].mxu0
    %v1369 = vadd.f32 0.0, %v1368
    %v1370 = vpop.f32.mrb[0].mxu0
    %v1371 = vpop.f32.mrb[0].mxu0
    %v1372 = vadd.f32 0.0, %v1371
    %v1373 = vpop.f32.mrb[0].mxu0
    %1374 = vmatprep.mubr.bf16.mxu0 0
    %1375 = vmatmul.mubr.bf16.gmra.mrb[0].mxu0 %v122
    %v1376 = vpop.f32.mrb[0].mxu0
    %v1377 = vadd.f32 0.0, %v1376
    %v1378 = vpop.f32.mrb[0].mxu0
    %v1379 = vpop.f32.mrb[0].mxu0
    %v1380 = vadd.f32 0.0, %v1379
    %v1381 = vpop.f32.mrb[0].mxu0
    %1382 = vmatprep.mubr.bf16.mxu0 0
    %1383 = vmatmul.mubr.bf16.gmra.mrb[0].mxu0 %v125
    %v1384 = vpop.f32.mrb[0].mxu0
    %v1385 = vadd.f32 0.0, %v1384
    %v1386 = vpop.f32.mrb[0].mxu0
    %v1387 = vpop.f32.mrb[0].mxu0
    %v1388 = vadd.f32 0.0, %v1387
    %v1389 = vpop.f32.mrb[0].mxu0
    %1390 = vmatprep.mubr.bf16.mxu0 0
    %1391 = vmatmul.mubr.bf16.gmra.mrb[0].mxu0 %v128
    %v1392 = vpop.f32.mrb[0].mxu0
    %v1393 = vadd.f32 0.0, %v1392
    %v1394 = vpop.f32.mrb[0].mxu0
    %v1395 = vpop.f32.mrb[0].mxu0
    %v1396 = vadd.f32 0.0, %v1395
    %v1397 = vpop.f32.mrb[0].mxu0
    %1398 = vdwg.mxu0
    %v1399 = vmax.f32 %v1361, 0.0
    %v1400 = vmax.f32 %v1364, 0.0
    %v1401 = vmax.f32 %v1369, 0.0
    %v1402 = vmax.f32 %v1372, 0.0
    %v1403 = vmax.f32 %v1377, 0.0
    %v1404 = vmax.f32 %v1380, 0.0
    %v1405 = vmax.f32 %v1385, 0.0
    %v1406 = vmax.f32 %v1388, 0.0
    %v1407 = vmax.f32 %v1393, 0.0
    %v1408 = vmax.f32 %v1396, 0.0
    %v1409 = vadd.f32 %v1300, %v1399
    %v1410 = vadd.f32 %v1301, %v1400
    %v1411 = vadd.f32 %v1302, %v1401
    %v1412 = vadd.f32 %v1303, %v1402
    %v1413 = vadd.f32 %v1304, %v1403
    %v1414 = vadd.f32 %v1305, %v1404
    %v1415 = vadd.f32 %v1306, %v1405
    %v1416 = vadd.f32 %v1307, %v1406
    %v1417 = vadd.f32 %v1308, %v1407
    %v1418 = vadd.f32 %v1309, %v1408
    %v1419 = vpack.c.bf16 %v1410, %v1409
    %v1420 = vpack.c.bf16 %v1412, %v1411
    %v1421 = vpack.c.bf16 %v1414, %v1413
    %v1422 = vpack.c.bf16 %v1416, %v1415
    %v1423 = vpack.c.bf16 %v1418, %v1417
    %1424 = vst [vmem:[#allocation2 + $0xc8] sm:$0xff] %v1419
    %1425 = vst [vmem:[#allocation2 + $0xd0] sm:$0xff] %v1420
    %1426 = vst [vmem:[#allocation2 + $0xd8] sm:$0xff] %v1421
    %1427 = vst [vmem:[#allocation2 + $0xe0] sm:$0xff] %v1422
    %1428 = vst [vmem:[#allocation2 + $0xe8] sm:$0xff] %v1423
    %s1429 = scalar_lea.vmem [#allocation4], 144
    %v1430 = vld [vmem:[%s1429] sm:$0xf]
    %v1431 = vld [vmem:[%s1429 + $0x4] sm:$0xf]
    %v1432 = vld [vmem:[%s1429 + $0x8] sm:$0x7]
    %v1436 = vunpack.c.l.b16 %v1430
    %v1437 = vunpack.c.l.b16 %v1431
    %v1438 = vunpack.c.l.b16 %v1432
    %v1439 = vpack.c.b16 %v1437, %v1436
    %v1440 = vpack.c.b16 %v1438, %v1438
    %v1443 = vand.u32 %v1440, %v133
    %1445 = vmatprep.subr.bf16.mxu0 0
    %1446 = vmatpush1.bf16.msra.mxu0 %v1439
    %1447 = vmatprep.subr.bf16.mxu0 0
    %1448 = vmatpush1.bf16.msra.mxu0 %v1443
    %1449 = vmatprep.subr.bf16.mxu0 0
    %1450 = vmatpush1.bf16.msra.mxu0 0
    %1451 = vmatprep.subr.bf16.mxu0 0
    %1452 = vmatpush1.bf16.msra.mxu0 0
    %1453 = vmatprep.subr.bf16.mxu0 0
    %1454 = vmatpush1.bf16.msra.mxu0 0
    %1455 = vmatprep.subr.bf16.mxu0 0
    %1456 = vmatpush1.bf16.msra.mxu0 0
    %1457 = vmatprep.subr.bf16.mxu0 0
    %1458 = vmatpush1.bf16.msra.mxu0 0
    %1459 = vmatprep.subr.bf16.mxu0 0
    %1460 = vmatpush1.bf16.msra.mxu0 0
    %1461 = vmatprep.subr.bf16.mxu0 0
    %1462 = vmatpush1.bf16.msra.mxu0 0
    %1463 = vmatprep.subr.bf16.mxu0 0
    %1464 = vmatpush1.bf16.msra.mxu0 0
    %1465 = vmatprep.subr.bf16.mxu0 0
    %1466 = vmatpush1.bf16.msra.mxu0 0
    %1467 = vmatprep.subr.bf16.mxu0 0
    %1468 = vmatpush1.bf16.msra.mxu0 0
    %1469 = vmatprep.subr.bf16.mxu0 0
    %1470 = vmatpush1.bf16.msra.mxu0 0
    %1471 = vmatprep.subr.bf16.mxu0 0
    %1472 = vmatpush1.bf16.msra.mxu0 0
    %1473 = vmatprep.subr.bf16.mxu0 0
    %1474 = vmatpush1.bf16.msra.mxu0 0
    %1475 = vmatprep.subr.bf16.mxu0 0
    %1476 = vmatpush1.bf16.msra.mxu0 0
    %1477 = vmatprep.mubr.bf16.mxu0 0
    %1478 = vmatmul.mubr.bf16.gmra.mrb[0].mxu0 %v116
    %v1479 = vpop.f32.mrb[0].mxu0
    %v1480 = vadd.f32 0.0, %v1479
    %v1481 = vpop.f32.mrb[0].mxu0
    %v1482 = vpop.f32.mrb[0].mxu0
    %v1483 = vadd.f32 0.0, %v1482
    %v1484 = vpop.f32.mrb[0].mxu0
    %1485 = vmatprep.mubr.bf16.mxu0 0
    %1486 = vmatmul.mubr.bf16.gmra.mrb[0].mxu0 %v119
    %v1487 = vpop.f32.mrb[0].mxu0
    %v1488 = vadd.f32 0.0, %v1487
    %v1489 = vpop.f32.mrb[0].mxu0
    %v1490 = vpop.f32.mrb[0].mxu0
    %v1491 = vadd.f32 0.0, %v1490
    %v1492 = vpop.f32.mrb[0].mxu0
    %1493 = vmatprep.mubr.bf16.mxu0 0
    %1494 = vmatmul.mubr.bf16.gmra.mrb[0].mxu0 %v122
    %v1495 = vpop.f32.mrb[0].mxu0
    %v1496 = vadd.f32 0.0, %v1495
    %v1497 = vpop.f32.mrb[0].mxu0
    %v1498 = vpop.f32.mrb[0].mxu0
    %v1499 = vadd.f32 0.0, %v1498
    %v1500 = vpop.f32.mrb[0].mxu0
    %1501 = vmatprep.mubr.bf16.mxu0 0
    %1502 = vmatmul.mubr.bf16.gmra.mrb[0].mxu0 %v125
    %v1503 = vpop.f32.mrb[0].mxu0
    %v1504 = vadd.f32 0.0, %v1503
    %v1505 = vpop.f32.mrb[0].mxu0
    %v1506 = vpop.f32.mrb[0].mxu0
    %v1507 = vadd.f32 0.0, %v1506
    %v1508 = vpop.f32.mrb[0].mxu0
    %1509 = vmatprep.mubr.bf16.mxu0 0
    %1510 = vmatmul.mubr.bf16.gmra.mrb[0].mxu0 %v128
    %v1511 = vpop.f32.mrb[0].mxu0
    %v1512 = vadd.f32 0.0, %v1511
    %v1513 = vpop.f32.mrb[0].mxu0
    %v1514 = vpop.f32.mrb[0].mxu0
    %v1515 = vadd.f32 0.0, %v1514
    %v1516 = vpop.f32.mrb[0].mxu0
    %1517 = vdwg.mxu0
    %v1518 = vmax.f32 %v1480, 0.0
    %v1519 = vmax.f32 %v1483, 0.0
    %v1520 = vmax.f32 %v1488, 0.0
    %v1521 = vmax.f32 %v1491, 0.0
    %v1522 = vmax.f32 %v1496, 0.0
    %v1523 = vmax.f32 %v1499, 0.0
    %v1524 = vmax.f32 %v1504, 0.0
    %v1525 = vmax.f32 %v1507, 0.0
    %v1526 = vmax.f32 %v1512, 0.0
    %v1527 = vmax.f32 %v1515, 0.0
    %s1528 = scalar_lea.vmem [#allocation4], 156
    %v1529 = vld [vmem:[%s1528] sm:$0xf]
    %v1530 = vld [vmem:[%s1528 + $0x4] sm:$0xf]
    %v1531 = vld [vmem:[%s1528 + $0x8] sm:$0x7]
    %v1535 = vunpack.c.l.b16 %v1529
    %v1536 = vunpack.c.l.b16 %v1530
    %v1537 = vunpack.c.l.b16 %v1531
    %v1538 = vpack.c.b16 %v1536, %v1535
    %v1539 = vpack.c.b16 %v1537, %v1537
    %v1542 = vand.u32 %v1539, %v133
    %1544 = vmatprep.subr.bf16.mxu0 0
    %1545 = vmatpush1.bf16.msra.mxu0 %v1538
    %1546 = vmatprep.subr.bf16.mxu0 0
    %1547 = vmatpush1.bf16.msra.mxu0 %v1542
    %1548 = vmatprep.subr.bf16.mxu0 0
    %1549 = vmatpush1.bf16.msra.mxu0 0
    %1550 = vmatprep.subr.bf16.mxu0 0
    %1551 = vmatpush1.bf16.msra.mxu0 0
    %1552 = vmatprep.subr.bf16.mxu0 0
    %1553 = vmatpush1.bf16.msra.mxu0 0
    %1554 = vmatprep.subr.bf16.mxu0 0
    %1555 = vmatpush1.bf16.msra.mxu0 0
    %1556 = vmatprep.subr.bf16.mxu0 0
    %1557 = vmatpush1.bf16.msra.mxu0 0
    %1558 = vmatprep.subr.bf16.mxu0 0
    %1559 = vmatpush1.bf16.msra.mxu0 0
    %1560 = vmatprep.subr.bf16.mxu0 0
    %1561 = vmatpush1.bf16.msra.mxu0 0
    %1562 = vmatprep.subr.bf16.mxu0 0
    %1563 = vmatpush1.bf16.msra.mxu0 0
    %1564 = vmatprep.subr.bf16.mxu0 0
    %1565 = vmatpush1.bf16.msra.mxu0 0
    %1566 = vmatprep.subr.bf16.mxu0 0
    %1567 = vmatpush1.bf16.msra.mxu0 0
    %1568 = vmatprep.subr.bf16.mxu0 0
    %1569 = vmatpush1.bf16.msra.mxu0 0
    %1570 = vmatprep.subr.bf16.mxu0 0
    %1571 = vmatpush1.bf16.msra.mxu0 0
    %1572 = vmatprep.subr.bf16.mxu0 0
    %1573 = vmatpush1.bf16.msra.mxu0 0
    %1574 = vmatprep.subr.bf16.mxu0 0
    %1575 = vmatpush1.bf16.msra.mxu0 0
    %1576 = vmatprep.mubr.bf16.mxu0 0
    %1577 = vmatmul.mubr.bf16.gmra.mrb[0].mxu0 %v116
    %v1578 = vpop.f32.mrb[0].mxu0
    %v1579 = vadd.f32 0.0, %v1578
    %v1580 = vpop.f32.mrb[0].mxu0
    %v1581 = vpop.f32.mrb[0].mxu0
    %v1582 = vadd.f32 0.0, %v1581
    %v1583 = vpop.f32.mrb[0].mxu0
    %1584 = vmatprep.mubr.bf16.mxu0 0
    %1585 = vmatmul.mubr.bf16.gmra.mrb[0].mxu0 %v119
    %v1586 = vpop.f32.mrb[0].mxu0
    %v1587 = vadd.f32 0.0, %v1586
    %v1588 = vpop.f32.mrb[0].mxu0
    %v1589 = vpop.f32.mrb[0].mxu0
    %v1590 = vadd.f32 0.0, %v1589
    %v1591 = vpop.f32.mrb[0].mxu0
    %1592 = vmatprep.mubr.bf16.mxu0 0
    %1593 = vmatmul.mubr.bf16.gmra.mrb[0].mxu0 %v122
    %v1594 = vpop.f32.mrb[0].mxu0
    %v1595 = vadd.f32 0.0, %v1594
    %v1596 = vpop.f32.mrb[0].mxu0
    %v1597 = vpop.f32.mrb[0].mxu0
    %v1598 = vadd.f32 0.0, %v1597
    %v1599 = vpop.f32.mrb[0].mxu0
    %1600 = vmatprep.mubr.bf16.mxu0 0
    %1601 = vmatmul.mubr.bf16.gmra.mrb[0].mxu0 %v125
    %v1602 = vpop.f32.mrb[0].mxu0
    %v1603 = vadd.f32 0.0, %v1602
    %v1604 = vpop.f32.mrb[0].mxu0
    %v1605 = vpop.f32.mrb[0].mxu0
    %v1606 = vadd.f32 0.0, %v1605
    %v1607 = vpop.f32.mrb[0].mxu0
    %1608 = vmatprep.mubr.bf16.mxu0 0
    %1609 = vmatmul.mubr.bf16.gmra.mrb[0].mxu0 %v128
    %v1610 = vpop.f32.mrb[0].mxu0
    %v1611 = vadd.f32 0.0, %v1610
    %v1612 = vpop.f32.mrb[0].mxu0
    %v1613 = vpop.f32.mrb[0].mxu0
    %v1614 = vadd.f32 0.0, %v1613
    %v1615 = vpop.f32.mrb[0].mxu0
    %1616 = vdwg.mxu0
    %v1617 = vmax.f32 %v1579, 0.0
    %v1618 = vmax.f32 %v1582, 0.0
    %v1619 = vmax.f32 %v1587, 0.0
    %v1620 = vmax.f32 %v1590, 0.0
    %v1621 = vmax.f32 %v1595, 0.0
    %v1622 = vmax.f32 %v1598, 0.0
    %v1623 = vmax.f32 %v1603, 0.0
    %v1624 = vmax.f32 %v1606, 0.0
    %v1625 = vmax.f32 %v1611, 0.0
    %v1626 = vmax.f32 %v1614, 0.0
    %v1627 = vadd.f32 %v1518, %v1617
    %v1628 = vadd.f32 %v1519, %v1618
    %v1629 = vadd.f32 %v1520, %v1619
    %v1630 = vadd.f32 %v1521, %v1620
    %v1631 = vadd.f32 %v1522, %v1621
    %v1632 = vadd.f32 %v1523, %v1622
    %v1633 = vadd.f32 %v1524, %v1623
    %v1634 = vadd.f32 %v1525, %v1624
    %v1635 = vadd.f32 %v1526, %v1625
    %v1636 = vadd.f32 %v1527, %v1626
    %v1637 = vpack.c.bf16 %v1628, %v1627
    %v1638 = vpack.c.bf16 %v1630, %v1629
    %v1639 = vpack.c.bf16 %v1632, %v1631
    %v1640 = vpack.c.bf16 %v1634, %v1633
    %v1641 = vpack.c.bf16 %v1636, %v1635
    %1642 = vst [vmem:[#allocation2 + $0xf0] sm:$0xff] %v1637
    %1643 = vst [vmem:[#allocation2 + $0xf8] sm:$0xff] %v1638
    %1644 = vst [vmem:[#allocation2 + $0x100] sm:$0xff] %v1639
    %1645 = vst [vmem:[#allocation2 + $0x108] sm:$0xff] %v1640
    %1646 = vst [vmem:[#allocation2 + $0x110] sm:$0xff] %v1641
    %s1647 = scalar_lea.vmem [#allocation4], 168
    %v1648 = vld [vmem:[%s1647] sm:$0xf]
    %v1649 = vld [vmem:[%s1647 + $0x4] sm:$0xf]
    %v1650 = vld [vmem:[%s1647 + $0x8] sm:$0x7]
    %v1654 = vunpack.c.l.b16 %v1648
    %v1655 = vunpack.c.l.b16 %v1649
    %v1656 = vunpack.c.l.b16 %v1650
    %v1657 = vpack.c.b16 %v1655, %v1654
    %v1658 = vpack.c.b16 %v1656, %v1656
    %v1661 = vand.u32 %v1658, %v133
    %1663 = vmatprep.subr.bf16.mxu0 0
    %1664 = vmatpush1.bf16.msra.mxu0 %v1657
    %1665 = vmatprep.subr.bf16.mxu0 0
    %1666 = vmatpush1.bf16.msra.mxu0 %v1661
    %1667 = vmatprep.subr.bf16.mxu0 0
    %1668 = vmatpush1.bf16.msra.mxu0 0
    %1669 = vmatprep.subr.bf16.mxu0 0
    %1670 = vmatpush1.bf16.msra.mxu0 0
    %1671 = vmatprep.subr.bf16.mxu0 0
    %1672 = vmatpush1.bf16.msra.mxu0 0
    %1673 = vmatprep.subr.bf16.mxu0 0
    %1674 = vmatpush1.bf16.msra.mxu0 0
    %1675 = vmatprep.subr.bf16.mxu0 0
    %1676 = vmatpush1.bf16.msra.mxu0 0
    %1677 = vmatprep.subr.bf16.mxu0 0
    %1678 = vmatpush1.bf16.msra.mxu0 0
    %1679 = vmatprep.subr.bf16.mxu0 0
    %1680 = vmatpush1.bf16.msra.mxu0 0
    %1681 = vmatprep.subr.bf16.mxu0 0
    %1682 = vmatpush1.bf16.msra.mxu0 0
    %1683 = vmatprep.subr.bf16.mxu0 0
    %1684 = vmatpush1.bf16.msra.mxu0 0
    %1685 = vmatprep.subr.bf16.mxu0 0
    %1686 = vmatpush1.bf16.msra.mxu0 0
    %1687 = vmatprep.subr.bf16.mxu0 0
    %1688 = vmatpush1.bf16.msra.mxu0 0
    %1689 = vmatprep.subr.bf16.mxu0 0
    %1690 = vmatpush1.bf16.msra.mxu0 0
    %1691 = vmatprep.subr.bf16.mxu0 0
    %1692 = vmatpush1.bf16.msra.mxu0 0
    %1693 = vmatprep.subr.bf16.mxu0 0
    %1694 = vmatpush1.bf16.msra.mxu0 0
    %1695 = vmatprep.mubr.bf16.mxu0 0
    %1696 = vmatmul.mubr.bf16.gmra.mrb[0].mxu0 %v116
    %v1697 = vpop.f32.mrb[0].mxu0
    %v1698 = vadd.f32 0.0, %v1697
    %v1699 = vpop.f32.mrb[0].mxu0
    %v1700 = vpop.f32.mrb[0].mxu0
    %v1701 = vadd.f32 0.0, %v1700
    %v1702 = vpop.f32.mrb[0].mxu0
    %1703 = vmatprep.mubr.bf16.mxu0 0
    %1704 = vmatmul.mubr.bf16.gmra.mrb[0].mxu0 %v119
    %v1705 = vpop.f32.mrb[0].mxu0
    %v1706 = vadd.f32 0.0, %v1705
    %v1707 = vpop.f32.mrb[0].mxu0
    %v1708 = vpop.f32.mrb[0].mxu0
    %v1709 = vadd.f32 0.0, %v1708
    %v1710 = vpop.f32.mrb[0].mxu0
    %1711 = vmatprep.mubr.bf16.mxu0 0
    %1712 = vmatmul.mubr.bf16.gmra.mrb[0].mxu0 %v122
    %v1713 = vpop.f32.mrb[0].mxu0
    %v1714 = vadd.f32 0.0, %v1713
    %v1715 = vpop.f32.mrb[0].mxu0
    %v1716 = vpop.f32.mrb[0].mxu0
    %v1717 = vadd.f32 0.0, %v1716
    %v1718 = vpop.f32.mrb[0].mxu0
    %1719 = vmatprep.mubr.bf16.mxu0 0
    %1720 = vmatmul.mubr.bf16.gmra.mrb[0].mxu0 %v125
    %v1721 = vpop.f32.mrb[0].mxu0
    %v1722 = vadd.f32 0.0, %v1721
    %v1723 = vpop.f32.mrb[0].mxu0
    %v1724 = vpop.f32.mrb[0].mxu0
    %v1725 = vadd.f32 0.0, %v1724
    %v1726 = vpop.f32.mrb[0].mxu0
    %1727 = vmatprep.mubr.bf16.mxu0 0
    %1728 = vmatmul.mubr.bf16.gmra.mrb[0].mxu0 %v128
    %v1729 = vpop.f32.mrb[0].mxu0
    %v1730 = vadd.f32 0.0, %v1729
    %v1731 = vpop.f32.mrb[0].mxu0
    %v1732 = vpop.f32.mrb[0].mxu0
    %v1733 = vadd.f32 0.0, %v1732
    %v1734 = vpop.f32.mrb[0].mxu0
    %1735 = vdwg.mxu0
    %v1736 = vmax.f32 %v1698, 0.0
    %v1737 = vmax.f32 %v1701, 0.0
    %v1738 = vmax.f32 %v1706, 0.0
    %v1739 = vmax.f32 %v1709, 0.0
    %v1740 = vmax.f32 %v1714, 0.0
    %v1741 = vmax.f32 %v1717, 0.0
    %v1742 = vmax.f32 %v1722, 0.0
    %v1743 = vmax.f32 %v1725, 0.0
    %v1744 = vmax.f32 %v1730, 0.0
    %v1745 = vmax.f32 %v1733, 0.0
    %s1746 = scalar_lea.vmem [#allocation4], 180
    %v1747 = vld [vmem:[%s1746] sm:$0xf]
    %v1748 = vld [vmem:[%s1746 + $0x4] sm:$0xf]
    %v1749 = vld [vmem:[%s1746 + $0x8] sm:$0x7]
    %v1753 = vunpack.c.l.b16 %v1747
    %v1754 = vunpack.c.l.b16 %v1748
    %v1755 = vunpack.c.l.b16 %v1749
    %v1756 = vpack.c.b16 %v1754, %v1753
    %v1757 = vpack.c.b16 %v1755, %v1755
    %v1760 = vand.u32 %v1757, %v133
    %1762 = vmatprep.subr.bf16.mxu0 0
    %1763 = vmatpush1.bf16.msra.mxu0 %v1756
    %1764 = vmatprep.subr.bf16.mxu0 0
    %1765 = vmatpush1.bf16.msra.mxu0 %v1760
    %1766 = vmatprep.subr.bf16.mxu0 0
    %1767 = vmatpush1.bf16.msra.mxu0 0
    %1768 = vmatprep.subr.bf16.mxu0 0
    %1769 = vmatpush1.bf16.msra.mxu0 0
    %1770 = vmatprep.subr.bf16.mxu0 0
    %1771 = vmatpush1.bf16.msra.mxu0 0
    %1772 = vmatprep.subr.bf16.mxu0 0
    %1773 = vmatpush1.bf16.msra.mxu0 0
    %1774 = vmatprep.subr.bf16.mxu0 0
    %1775 = vmatpush1.bf16.msra.mxu0 0
    %1776 = vmatprep.subr.bf16.mxu0 0
    %1777 = vmatpush1.bf16.msra.mxu0 0
    %1778 = vmatprep.subr.bf16.mxu0 0
    %1779 = vmatpush1.bf16.msra.mxu0 0
    %1780 = vmatprep.subr.bf16.mxu0 0
    %1781 = vmatpush1.bf16.msra.mxu0 0
    %1782 = vmatprep.subr.bf16.mxu0 0
    %1783 = vmatpush1.bf16.msra.mxu0 0
    %1784 = vmatprep.subr.bf16.mxu0 0
    %1785 = vmatpush1.bf16.msra.mxu0 0
    %1786 = vmatprep.subr.bf16.mxu0 0
    %1787 = vmatpush1.bf16.msra.mxu0 0
    %1788 = vmatprep.subr.bf16.mxu0 0
    %1789 = vmatpush1.bf16.msra.mxu0 0
    %1790 = vmatprep.subr.bf16.mxu0 0
    %1791 = vmatpush1.bf16.msra.mxu0 0
    %1792 = vmatprep.subr.bf16.mxu0 0
    %1793 = vmatpush1.bf16.msra.mxu0 0
    %1794 = vmatprep.mubr.bf16.mxu0 0
    %1795 = vmatmul.mubr.bf16.gmra.mrb[0].mxu0 %v116
    %v1796 = vpop.f32.mrb[0].mxu0
    %v1797 = vadd.f32 0.0, %v1796
    %v1798 = vpop.f32.mrb[0].mxu0
    %v1799 = vpop.f32.mrb[0].mxu0
    %v1800 = vadd.f32 0.0, %v1799
    %v1801 = vpop.f32.mrb[0].mxu0
    %1802 = vmatprep.mubr.bf16.mxu0 0
    %1803 = vmatmul.mubr.bf16.gmra.mrb[0].mxu0 %v119
    %v1804 = vpop.f32.mrb[0].mxu0
    %v1805 = vadd.f32 0.0, %v1804
    %v1806 = vpop.f32.mrb[0].mxu0
    %v1807 = vpop.f32.mrb[0].mxu0
    %v1808 = vadd.f32 0.0, %v1807
    %v1809 = vpop.f32.mrb[0].mxu0
    %1810 = vmatprep.mubr.bf16.mxu0 0
    %1811 = vmatmul.mubr.bf16.gmra.mrb[0].mxu0 %v122
    %v1812 = vpop.f32.mrb[0].mxu0
    %v1813 = vadd.f32 0.0, %v1812
    %v1814 = vpop.f32.mrb[0].mxu0
    %v1815 = vpop.f32.mrb[0].mxu0
    %v1816 = vadd.f32 0.0, %v1815
    %v1817 = vpop.f32.mrb[0].mxu0
    %1818 = vmatprep.mubr.bf16.mxu0 0
    %1819 = vmatmul.mubr.bf16.gmra.mrb[0].mxu0 %v125
    %v1820 = vpop.f32.mrb[0].mxu0
    %v1821 = vadd.f32 0.0, %v1820
    %v1822 = vpop.f32.mrb[0].mxu0
    %v1823 = vpop.f32.mrb[0].mxu0
    %v1824 = vadd.f32 0.0, %v1823
    %v1825 = vpop.f32.mrb[0].mxu0
    %1826 = vmatprep.mubr.bf16.mxu0 0
    %1827 = vmatmul.mubr.bf16.gmra.mrb[0].mxu0 %v128
    %v1828 = vpop.f32.mrb[0].mxu0
    %v1829 = vadd.f32 0.0, %v1828
    %v1830 = vpop.f32.mrb[0].mxu0
    %v1831 = vpop.f32.mrb[0].mxu0
    %v1832 = vadd.f32 0.0, %v1831
    %v1833 = vpop.f32.mrb[0].mxu0
    %1834 = vdwg.mxu0
    %v1835 = vmax.f32 %v1797, 0.0
    %v1836 = vmax.f32 %v1800, 0.0
    %v1837 = vmax.f32 %v1805, 0.0
    %v1838 = vmax.f32 %v1808, 0.0
    %v1839 = vmax.f32 %v1813, 0.0
    %v1840 = vmax.f32 %v1816, 0.0
    %v1841 = vmax.f32 %v1821, 0.0
    %v1842 = vmax.f32 %v1824, 0.0
    %v1843 = vmax.f32 %v1829, 0.0
    %v1844 = vmax.f32 %v1832, 0.0
    %v1845 = vadd.f32 %v1736, %v1835
    %v1846 = vadd.f32 %v1737, %v1836
    %v1847 = vadd.f32 %v1738, %v1837
    %v1848 = vadd.f32 %v1739, %v1838
    %v1849 = vadd.f32 %v1740, %v1839
    %v1850 = vadd.f32 %v1741, %v1840
    %v1851 = vadd.f32 %v1742, %v1841
    %v1852 = vadd.f32 %v1743, %v1842
    %v1853 = vadd.f32 %v1744, %v1843
    %v1854 = vadd.f32 %v1745, %v1844
    %v1855 = vpack.c.bf16 %v1846, %v1845
    %v1856 = vpack.c.bf16 %v1848, %v1847
    %v1857 = vpack.c.bf16 %v1850, %v1849
    %v1858 = vpack.c.bf16 %v1852, %v1851
    %v1859 = vpack.c.bf16 %v1854, %v1853
    %1860 = vst [vmem:[#allocation2 + $0x118] sm:$0xff] %v1855
    %1861 = vst [vmem:[#allocation2 + $0x120] sm:$0xff] %v1856
    %1862 = vst [vmem:[#allocation2 + $0x128] sm:$0xff] %v1857
    %1863 = vst [vmem:[#allocation2 + $0x130] sm:$0xff] %v1858
    %1864 = vst [vmem:[#allocation2 + $0x138] sm:$0xff] %v1859
    %s1865 = scalar_lea.vmem [#allocation4], 192
    %v1866 = vld [vmem:[%s1865] sm:$0xf]
    %v1867 = vld [vmem:[%s1865 + $0x4] sm:$0xf]
    %v1868 = vld [vmem:[%s1865 + $0x8] sm:$0x7]
    %v1872 = vunpack.c.l.b16 %v1866
    %v1873 = vunpack.c.l.b16 %v1867
    %v1874 = vunpack.c.l.b16 %v1868
    %v1875 = vpack.c.b16 %v1873, %v1872
    %v1876 = vpack.c.b16 %v1874, %v1874
    %v1879 = vand.u32 %v1876, %v133
    %1881 = vmatprep.subr.bf16.mxu0 0
    %1882 = vmatpush1.bf16.msra.mxu0 %v1875
    %1883 = vmatprep.subr.bf16.mxu0 0
    %1884 = vmatpush1.bf16.msra.mxu0 %v1879
    %1885 = vmatprep.subr.bf16.mxu0 0
    %1886 = vmatpush1.bf16.msra.mxu0 0
    %1887 = vmatprep.subr.bf16.mxu0 0
    %1888 = vmatpush1.bf16.msra.mxu0 0
    %1889 = vmatprep.subr.bf16.mxu0 0
    %1890 = vmatpush1.bf16.msra.mxu0 0
    %1891 = vmatprep.subr.bf16.mxu0 0
    %1892 = vmatpush1.bf16.msra.mxu0 0
    %1893 = vmatprep.subr.bf16.mxu0 0
    %1894 = vmatpush1.bf16.msra.mxu0 0
    %1895 = vmatprep.subr.bf16.mxu0 0
    %1896 = vmatpush1.bf16.msra.mxu0 0
    %1897 = vmatprep.subr.bf16.mxu0 0
    %1898 = vmatpush1.bf16.msra.mxu0 0
    %1899 = vmatprep.subr.bf16.mxu0 0
    %1900 = vmatpush1.bf16.msra.mxu0 0
    %1901 = vmatprep.subr.bf16.mxu0 0
    %1902 = vmatpush1.bf16.msra.mxu0 0
    %1903 = vmatprep.subr.bf16.mxu0 0
    %1904 = vmatpush1.bf16.msra.mxu0 0
    %1905 = vmatprep.subr.bf16.mxu0 0
    %1906 = vmatpush1.bf16.msra.mxu0 0
    %1907 = vmatprep.subr.bf16.mxu0 0
    %1908 = vmatpush1.bf16.msra.mxu0 0
    %1909 = vmatprep.subr.bf16.mxu0 0
    %1910 = vmatpush1.bf16.msra.mxu0 0
    %1911 = vmatprep.subr.bf16.mxu0 0
    %1912 = vmatpush1.bf16.msra.mxu0 0
    %1913 = vmatprep.mubr.bf16.mxu0 0
    %1914 = vmatmul.mubr.bf16.gmra.mrb[0].mxu0 %v116
    %v1915 = vpop.f32.mrb[0].mxu0
    %v1916 = vadd.f32 0.0, %v1915
    %v1917 = vpop.f32.mrb[0].mxu0
    %v1918 = vpop.f32.mrb[0].mxu0
    %v1919 = vadd.f32 0.0, %v1918
    %v1920 = vpop.f32.mrb[0].mxu0
    %1921 = vmatprep.mubr.bf16.mxu0 0
    %1922 = vmatmul.mubr.bf16.gmra.mrb[0].mxu0 %v119
    %v1923 = vpop.f32.mrb[0].mxu0
    %v1924 = vadd.f32 0.0, %v1923
    %v1925 = vpop.f32.mrb[0].mxu0
    %v1926 = vpop.f32.mrb[0].mxu0
    %v1927 = vadd.f32 0.0, %v1926
    %v1928 = vpop.f32.mrb[0].mxu0
    %1929 = vmatprep.mubr.bf16.mxu0 0
    %1930 = vmatmul.mubr.bf16.gmra.mrb[0].mxu0 %v122
    %v1931 = vpop.f32.mrb[0].mxu0
    %v1932 = vadd.f32 0.0, %v1931
    %v1933 = vpop.f32.mrb[0].mxu0
    %v1934 = vpop.f32.mrb[0].mxu0
    %v1935 = vadd.f32 0.0, %v1934
    %v1936 = vpop.f32.mrb[0].mxu0
    %1937 = vmatprep.mubr.bf16.mxu0 0
    %1938 = vmatmul.mubr.bf16.gmra.mrb[0].mxu0 %v125
    %v1939 = vpop.f32.mrb[0].mxu0
    %v1940 = vadd.f32 0.0, %v1939
    %v1941 = vpop.f32.mrb[0].mxu0
    %v1942 = vpop.f32.mrb[0].mxu0
    %v1943 = vadd.f32 0.0, %v1942
    %v1944 = vpop.f32.mrb[0].mxu0
    %1945 = vmatprep.mubr.bf16.mxu0 0
    %1946 = vmatmul.mubr.bf16.gmra.mrb[0].mxu0 %v128
    %v1947 = vpop.f32.mrb[0].mxu0
    %v1948 = vadd.f32 0.0, %v1947
    %v1949 = vpop.f32.mrb[0].mxu0
    %v1950 = vpop.f32.mrb[0].mxu0
    %v1951 = vadd.f32 0.0, %v1950
    %v1952 = vpop.f32.mrb[0].mxu0
    %1953 = vdwg.mxu0
    %v1954 = vmax.f32 %v1916, 0.0
    %v1955 = vmax.f32 %v1919, 0.0
    %v1956 = vmax.f32 %v1924, 0.0
    %v1957 = vmax.f32 %v1927, 0.0
    %v1958 = vmax.f32 %v1932, 0.0
    %v1959 = vmax.f32 %v1935, 0.0
    %v1960 = vmax.f32 %v1940, 0.0
    %v1961 = vmax.f32 %v1943, 0.0
    %v1962 = vmax.f32 %v1948, 0.0
    %v1963 = vmax.f32 %v1951, 0.0
    %s1964 = scalar_lea.vmem [#allocation4], 204
    %v1965 = vld [vmem:[%s1964] sm:$0xf]
    %v1966 = vld [vmem:[%s1964 + $0x4] sm:$0xf]
    %v1967 = vld [vmem:[%s1964 + $0x8] sm:$0x7]
    %v1971 = vunpack.c.l.b16 %v1965
    %v1972 = vunpack.c.l.b16 %v1966
    %v1973 = vunpack.c.l.b16 %v1967
    %v1974 = vpack.c.b16 %v1972, %v1971
    %v1975 = vpack.c.b16 %v1973, %v1973
    %v1978 = vand.u32 %v1975, %v133
    %1980 = vmatprep.subr.bf16.mxu0 0
    %1981 = vmatpush1.bf16.msra.mxu0 %v1974
    %1982 = vmatprep.subr.bf16.mxu0 0
    %1983 = vmatpush1.bf16.msra.mxu0 %v1978
    %1984 = vmatprep.subr.bf16.mxu0 0
    %1985 = vmatpush1.bf16.msra.mxu0 0
    %1986 = vmatprep.subr.bf16.mxu0 0
    %1987 = vmatpush1.bf16.msra.mxu0 0
    %1988 = vmatprep.subr.bf16.mxu0 0
    %1989 = vmatpush1.bf16.msra.mxu0 0
    %1990 = vmatprep.subr.bf16.mxu0 0
    %1991 = vmatpush1.bf16.msra.mxu0 0
    %1992 = vmatprep.subr.bf16.mxu0 0
    %1993 = vmatpush1.bf16.msra.mxu0 0
    %1994 = vmatprep.subr.bf16.mxu0 0
    %1995 = vmatpush1.bf16.msra.mxu0 0
    %1996 = vmatprep.subr.bf16.mxu0 0
    %1997 = vmatpush1.bf16.msra.mxu0 0
    %1998 = vmatprep.subr.bf16.mxu0 0
    %1999 = vmatpush1.bf16.msra.mxu0 0
    %2000 = vmatprep.subr.bf16.mxu0 0
    %2001 = vmatpush1.bf16.msra.mxu0 0
    %2002 = vmatprep.subr.bf16.mxu0 0
    %2003 = vmatpush1.bf16.msra.mxu0 0
    %2004 = vmatprep.subr.bf16.mxu0 0
    %2005 = vmatpush1.bf16.msra.mxu0 0
    %2006 = vmatprep.subr.bf16.mxu0 0
    %2007 = vmatpush1.bf16.msra.mxu0 0
    %2008 = vmatprep.subr.bf16.mxu0 0
    %2009 = vmatpush1.bf16.msra.mxu0 0
    %2010 = vmatprep.subr.bf16.mxu0 0
    %2011 = vmatpush1.bf16.msra.mxu0 0
    %2012 = vmatprep.mubr.bf16.mxu0 0
    %2013 = vmatmul.mubr.bf16.gmra.mrb[0].mxu0 %v116
    %v2014 = vpop.f32.mrb[0].mxu0
    %v2015 = vadd.f32 0.0, %v2014
    %v2016 = vpop.f32.mrb[0].mxu0
    %v2017 = vpop.f32.mrb[0].mxu0
    %v2018 = vadd.f32 0.0, %v2017
    %v2019 = vpop.f32.mrb[0].mxu0
    %2020 = vmatprep.mubr.bf16.mxu0 0
    %2021 = vmatmul.mubr.bf16.gmra.mrb[0].mxu0 %v119
    %v2022 = vpop.f32.mrb[0].mxu0
    %v2023 = vadd.f32 0.0, %v2022
    %v2024 = vpop.f32.mrb[0].mxu0
    %v2025 = vpop.f32.mrb[0].mxu0
    %v2026 = vadd.f32 0.0, %v2025
    %v2027 = vpop.f32.mrb[0].mxu0
    %2028 = vmatprep.mubr.bf16.mxu0 0
    %2029 = vmatmul.mubr.bf16.gmra.mrb[0].mxu0 %v122
    %v2030 = vpop.f32.mrb[0].mxu0
    %v2031 = vadd.f32 0.0, %v2030
    %v2032 = vpop.f32.mrb[0].mxu0
    %v2033 = vpop.f32.mrb[0].mxu0
    %v2034 = vadd.f32 0.0, %v2033
    %v2035 = vpop.f32.mrb[0].mxu0
    %2036 = vmatprep.mubr.bf16.mxu0 0
    %2037 = vmatmul.mubr.bf16.gmra.mrb[0].mxu0 %v125
    %v2038 = vpop.f32.mrb[0].mxu0
    %v2039 = vadd.f32 0.0, %v2038
    %v2040 = vpop.f32.mrb[0].mxu0
    %v2041 = vpop.f32.mrb[0].mxu0
    %v2042 = vadd.f32 0.0, %v2041
    %v2043 = vpop.f32.mrb[0].mxu0
    %2044 = vmatprep.mubr.bf16.mxu0 0
    %2045 = vmatmul.mubr.bf16.gmra.mrb[0].mxu0 %v128
    %v2046 = vpop.f32.mrb[0].mxu0
    %v2047 = vadd.f32 0.0, %v2046
    %v2048 = vpop.f32.mrb[0].mxu0
    %v2049 = vpop.f32.mrb[0].mxu0
    %v2050 = vadd.f32 0.0, %v2049
    %v2051 = vpop.f32.mrb[0].mxu0
    %2052 = vdwg.mxu0
    %v2053 = vmax.f32 %v2015, 0.0
    %v2054 = vmax.f32 %v2018, 0.0
    %v2055 = vmax.f32 %v2023, 0.0
    %v2056 = vmax.f32 %v2026, 0.0
    %v2057 = vmax.f32 %v2031, 0.0
    %v2058 = vmax.f32 %v2034, 0.0
    %v2059 = vmax.f32 %v2039, 0.0
    %v2060 = vmax.f32 %v2042, 0.0
    %v2061 = vmax.f32 %v2047, 0.0
    %v2062 = vmax.f32 %v2050, 0.0
    %v2063 = vadd.f32 %v1954, %v2053
    %v2064 = vadd.f32 %v1955, %v2054
    %v2065 = vadd.f32 %v1956, %v2055
    %v2066 = vadd.f32 %v1957, %v2056
    %v2067 = vadd.f32 %v1958, %v2057
    %v2068 = vadd.f32 %v1959, %v2058
    %v2069 = vadd.f32 %v1960, %v2059
    %v2070 = vadd.f32 %v1961, %v2060
    %v2071 = vadd.f32 %v1962, %v2061
    %v2072 = vadd.f32 %v1963, %v2062
    %v2073 = vpack.c.bf16 %v2064, %v2063
    %v2074 = vpack.c.bf16 %v2066, %v2065
    %v2075 = vpack.c.bf16 %v2068, %v2067
    %v2076 = vpack.c.bf16 %v2070, %v2069
    %v2077 = vpack.c.bf16 %v2072, %v2071
    %2078 = vst [vmem:[#allocation2 + $0x140] sm:$0xff] %v2073
    %2079 = vst [vmem:[#allocation2 + $0x148] sm:$0xff] %v2074
    %2080 = vst [vmem:[#allocation2 + $0x150] sm:$0xff] %v2075
    %2081 = vst [vmem:[#allocation2 + $0x158] sm:$0xff] %v2076
    %2082 = vst [vmem:[#allocation2 + $0x160] sm:$0xff] %v2077
    %s2083 = scalar_lea.vmem [#allocation4], 216
    %v2084 = vld [vmem:[%s2083] sm:$0xf]
    %v2085 = vld [vmem:[%s2083 + $0x4] sm:$0xf]
    %v2086 = vld [vmem:[%s2083 + $0x8] sm:$0x7]
    %v2090 = vunpack.c.l.b16 %v2084
    %v2091 = vunpack.c.l.b16 %v2085
    %v2092 = vunpack.c.l.b16 %v2086
    %v2093 = vpack.c.b16 %v2091, %v2090
    %v2094 = vpack.c.b16 %v2092, %v2092
    %v2097 = vand.u32 %v2094, %v133
    %2099 = vmatprep.subr.bf16.mxu0 0
    %2100 = vmatpush1.bf16.msra.mxu0 %v2093
    %2101 = vmatprep.subr.bf16.mxu0 0
    %2102 = vmatpush1.bf16.msra.mxu0 %v2097
    %2103 = vmatprep.subr.bf16.mxu0 0
    %2104 = vmatpush1.bf16.msra.mxu0 0
    %2105 = vmatprep.subr.bf16.mxu0 0
    %2106 = vmatpush1.bf16.msra.mxu0 0
    %2107 = vmatprep.subr.bf16.mxu0 0
    %2108 = vmatpush1.bf16.msra.mxu0 0
    %2109 = vmatprep.subr.bf16.mxu0 0
    %2110 = vmatpush1.bf16.msra.mxu0 0
    %2111 = vmatprep.subr.bf16.mxu0 0
    %2112 = vmatpush1.bf16.msra.mxu0 0
    %2113 = vmatprep.subr.bf16.mxu0 0
    %2114 = vmatpush1.bf16.msra.mxu0 0
    %2115 = vmatprep.subr.bf16.mxu0 0
    %2116 = vmatpush1.bf16.msra.mxu0 0
    %2117 = vmatprep.subr.bf16.mxu0 0
    %2118 = vmatpush1.bf16.msra.mxu0 0
    %2119 = vmatprep.subr.bf16.mxu0 0
    %2120 = vmatpush1.bf16.msra.mxu0 0
    %2121 = vmatprep.subr.bf16.mxu0 0
    %2122 = vmatpush1.bf16.msra.mxu0 0
    %2123 = vmatprep.subr.bf16.mxu0 0
    %2124 = vmatpush1.bf16.msra.mxu0 0
    %2125 = vmatprep.subr.bf16.mxu0 0
    %2126 = vmatpush1.bf16.msra.mxu0 0
    %2127 = vmatprep.subr.bf16.mxu0 0
    %2128 = vmatpush1.bf16.msra.mxu0 0
    %2129 = vmatprep.subr.bf16.mxu0 0
    %2130 = vmatpush1.bf16.msra.mxu0 0
    %2131 = vmatprep.mubr.bf16.mxu0 0
    %2132 = vmatmul.mubr.bf16.gmra.mrb[0].mxu0 %v116
    %v2133 = vpop.f32.mrb[0].mxu0
    %v2134 = vadd.f32 0.0, %v2133
    %v2135 = vpop.f32.mrb[0].mxu0
    %v2136 = vpop.f32.mrb[0].mxu0
    %v2137 = vadd.f32 0.0, %v2136
    %v2138 = vpop.f32.mrb[0].mxu0
    %2139 = vmatprep.mubr.bf16.mxu0 0
    %2140 = vmatmul.mubr.bf16.gmra.mrb[0].mxu0 %v119
    %v2141 = vpop.f32.mrb[0].mxu0
    %v2142 = vadd.f32 0.0, %v2141
    %v2143 = vpop.f32.mrb[0].mxu0
    %v2144 = vpop.f32.mrb[0].mxu0
    %v2145 = vadd.f32 0.0, %v2144
    %v2146 = vpop.f32.mrb[0].mxu0
    %2147 = vmatprep.mubr.bf16.mxu0 0
    %2148 = vmatmul.mubr.bf16.gmra.mrb[0].mxu0 %v122
    %v2149 = vpop.f32.mrb[0].mxu0
    %v2150 = vadd.f32 0.0, %v2149
    %v2151 = vpop.f32.mrb[0].mxu0
    %v2152 = vpop.f32.mrb[0].mxu0
    %v2153 = vadd.f32 0.0, %v2152
    %v2154 = vpop.f32.mrb[0].mxu0
    %2155 = vmatprep.mubr.bf16.mxu0 0
    %2156 = vmatmul.mubr.bf16.gmra.mrb[0].mxu0 %v125
    %v2157 = vpop.f32.mrb[0].mxu0
    %v2158 = vadd.f32 0.0, %v2157
    %v2159 = vpop.f32.mrb[0].mxu0
    %v2160 = vpop.f32.mrb[0].mxu0
    %v2161 = vadd.f32 0.0, %v2160
    %v2162 = vpop.f32.mrb[0].mxu0
    %2163 = vmatprep.mubr.bf16.mxu0 0
    %2164 = vmatmul.mubr.bf16.gmra.mrb[0].mxu0 %v128
    %v2165 = vpop.f32.mrb[0].mxu0
    %v2166 = vadd.f32 0.0, %v2165
    %v2167 = vpop.f32.mrb[0].mxu0
    %v2168 = vpop.f32.mrb[0].mxu0
    %v2169 = vadd.f32 0.0, %v2168
    %v2170 = vpop.f32.mrb[0].mxu0
    %2171 = vdwg.mxu0
    %v2172 = vmax.f32 %v2134, 0.0
    %v2173 = vmax.f32 %v2137, 0.0
    %v2174 = vmax.f32 %v2142, 0.0
    %v2175 = vmax.f32 %v2145, 0.0
    %v2176 = vmax.f32 %v2150, 0.0
    %v2177 = vmax.f32 %v2153, 0.0
    %v2178 = vmax.f32 %v2158, 0.0
    %v2179 = vmax.f32 %v2161, 0.0
    %v2180 = vmax.f32 %v2166, 0.0
    %v2181 = vmax.f32 %v2169, 0.0
    %s2182 = scalar_lea.vmem [#allocation4], 228
    %v2183 = vld [vmem:[%s2182] sm:$0xf]
    %v2184 = vld [vmem:[%s2182 + $0x4] sm:$0xf]
    %v2185 = vld [vmem:[%s2182 + $0x8] sm:$0x7]
    %v2189 = vunpack.c.l.b16 %v2183
    %v2190 = vunpack.c.l.b16 %v2184
    %v2191 = vunpack.c.l.b16 %v2185
    %v2192 = vpack.c.b16 %v2190, %v2189
    %v2193 = vpack.c.b16 %v2191, %v2191
    %v2196 = vand.u32 %v2193, %v133
    %2198 = vmatprep.subr.bf16.mxu0 0
    %2199 = vmatpush1.bf16.msra.mxu0 %v2192
    %2200 = vmatprep.subr.bf16.mxu0 0
    %2201 = vmatpush1.bf16.msra.mxu0 %v2196
    %2202 = vmatprep.subr.bf16.mxu0 0
    %2203 = vmatpush1.bf16.msra.mxu0 0
    %2204 = vmatprep.subr.bf16.mxu0 0
    %2205 = vmatpush1.bf16.msra.mxu0 0
    %2206 = vmatprep.subr.bf16.mxu0 0
    %2207 = vmatpush1.bf16.msra.mxu0 0
    %2208 = vmatprep.subr.bf16.mxu0 0
    %2209 = vmatpush1.bf16.msra.mxu0 0
    %2210 = vmatprep.subr.bf16.mxu0 0
    %2211 = vmatpush1.bf16.msra.mxu0 0
    %2212 = vmatprep.subr.bf16.mxu0 0
    %2213 = vmatpush1.bf16.msra.mxu0 0
    %2214 = vmatprep.subr.bf16.mxu0 0
    %2215 = vmatpush1.bf16.msra.mxu0 0
    %2216 = vmatprep.subr.bf16.mxu0 0
    %2217 = vmatpush1.bf16.msra.mxu0 0
    %2218 = vmatprep.subr.bf16.mxu0 0
    %2219 = vmatpush1.bf16.msra.mxu0 0
    %2220 = vmatprep.subr.bf16.mxu0 0
    %2221 = vmatpush1.bf16.msra.mxu0 0
    %2222 = vmatprep.subr.bf16.mxu0 0
    %2223 = vmatpush1.bf16.msra.mxu0 0
    %2224 = vmatprep.subr.bf16.mxu0 0
    %2225 = vmatpush1.bf16.msra.mxu0 0
    %2226 = vmatprep.subr.bf16.mxu0 0
    %2227 = vmatpush1.bf16.msra.mxu0 0
    %2228 = vmatprep.subr.bf16.mxu0 0
    %2229 = vmatpush1.bf16.msra.mxu0 0
    %2230 = vmatprep.mubr.bf16.mxu0 0
    %2231 = vmatmul.mubr.bf16.gmra.mrb[0].mxu0 %v116
    %v2232 = vpop.f32.mrb[0].mxu0
    %v2233 = vadd.f32 0.0, %v2232
    %v2234 = vpop.f32.mrb[0].mxu0
    %v2235 = vpop.f32.mrb[0].mxu0
    %v2236 = vadd.f32 0.0, %v2235
    %v2237 = vpop.f32.mrb[0].mxu0
    %2238 = vmatprep.mubr.bf16.mxu0 0
    %2239 = vmatmul.mubr.bf16.gmra.mrb[0].mxu0 %v119
    %v2240 = vpop.f32.mrb[0].mxu0
    %v2241 = vadd.f32 0.0, %v2240
    %v2242 = vpop.f32.mrb[0].mxu0
    %v2243 = vpop.f32.mrb[0].mxu0
    %v2244 = vadd.f32 0.0, %v2243
    %v2245 = vpop.f32.mrb[0].mxu0
    %2246 = vmatprep.mubr.bf16.mxu0 0
    %2247 = vmatmul.mubr.bf16.gmra.mrb[0].mxu0 %v122
    %v2248 = vpop.f32.mrb[0].mxu0
    %v2249 = vadd.f32 0.0, %v2248
    %v2250 = vpop.f32.mrb[0].mxu0
    %v2251 = vpop.f32.mrb[0].mxu0
    %v2252 = vadd.f32 0.0, %v2251
    %v2253 = vpop.f32.mrb[0].mxu0
    %2254 = vmatprep.mubr.bf16.mxu0 0
    %2255 = vmatmul.mubr.bf16.gmra.mrb[0].mxu0 %v125
    %v2256 = vpop.f32.mrb[0].mxu0
    %v2257 = vadd.f32 0.0, %v2256
    %v2258 = vpop.f32.mrb[0].mxu0
    %v2259 = vpop.f32.mrb[0].mxu0
    %v2260 = vadd.f32 0.0, %v2259
    %v2261 = vpop.f32.mrb[0].mxu0
    %2262 = vmatprep.mubr.bf16.mxu0 0
    %2263 = vmatmul.mubr.bf16.gmra.mrb[0].mxu0 %v128
    %v2264 = vpop.f32.mrb[0].mxu0
    %v2265 = vadd.f32 0.0, %v2264
    %v2266 = vpop.f32.mrb[0].mxu0
    %v2267 = vpop.f32.mrb[0].mxu0
    %v2268 = vadd.f32 0.0, %v2267
    %v2269 = vpop.f32.mrb[0].mxu0
    %2270 = vdwg.mxu0
    %v2271 = vmax.f32 %v2233, 0.0
    %v2272 = vmax.f32 %v2236, 0.0
    %v2273 = vmax.f32 %v2241, 0.0
    %v2274 = vmax.f32 %v2244, 0.0
    %v2275 = vmax.f32 %v2249, 0.0
    %v2276 = vmax.f32 %v2252, 0.0
    %v2277 = vmax.f32 %v2257, 0.0
    %v2278 = vmax.f32 %v2260, 0.0
    %v2279 = vmax.f32 %v2265, 0.0
    %v2280 = vmax.f32 %v2268, 0.0
    %v2281 = vadd.f32 %v2172, %v2271
    %v2282 = vadd.f32 %v2173, %v2272
    %v2283 = vadd.f32 %v2174, %v2273
    %v2284 = vadd.f32 %v2175, %v2274
    %v2285 = vadd.f32 %v2176, %v2275
    %v2286 = vadd.f32 %v2177, %v2276
    %v2287 = vadd.f32 %v2178, %v2277
    %v2288 = vadd.f32 %v2179, %v2278
    %v2289 = vadd.f32 %v2180, %v2279
    %v2290 = vadd.f32 %v2181, %v2280
    %v2291 = vpack.c.bf16 %v2282, %v2281
    %v2292 = vpack.c.bf16 %v2284, %v2283
    %v2293 = vpack.c.bf16 %v2286, %v2285
    %v2294 = vpack.c.bf16 %v2288, %v2287
    %v2295 = vpack.c.bf16 %v2290, %v2289
    %2296 = vst [vmem:[#allocation2 + $0x168] sm:$0xff] %v2291
    %2297 = vst [vmem:[#allocation2 + $0x170] sm:$0xff] %v2292
    %2298 = vst [vmem:[#allocation2 + $0x178] sm:$0xff] %v2293
    %2299 = vst [vmem:[#allocation2 + $0x180] sm:$0xff] %v2294
    %2300 = vst [vmem:[#allocation2 + $0x188] sm:$0xff] %v2295
    %s2301 = scalar_lea.vmem [#allocation4], 240
    %v2302 = vld [vmem:[%s2301] sm:$0xf]
    %v2303 = vld [vmem:[%s2301 + $0x4] sm:$0xf]
    %v2304 = vld [vmem:[%s2301 + $0x8] sm:$0x7]
    %v2308 = vunpack.c.l.b16 %v2302
    %v2309 = vunpack.c.l.b16 %v2303
    %v2310 = vunpack.c.l.b16 %v2304
    %v2311 = vpack.c.b16 %v2309, %v2308
    %v2312 = vpack.c.b16 %v2310, %v2310
    %v2315 = vand.u32 %v2312, %v133
    %2317 = vmatprep.subr.bf16.mxu0 0
    %2318 = vmatpush1.bf16.msra.mxu0 %v2311
    %2319 = vmatprep.subr.bf16.mxu0 0
    %2320 = vmatpush1.bf16.msra.mxu0 %v2315
    %2321 = vmatprep.subr.bf16.mxu0 0
    %2322 = vmatpush1.bf16.msra.mxu0 0
    %2323 = vmatprep.subr.bf16.mxu0 0
    %2324 = vmatpush1.bf16.msra.mxu0 0
    %2325 = vmatprep.subr.bf16.mxu0 0
    %2326 = vmatpush1.bf16.msra.mxu0 0
    %2327 = vmatprep.subr.bf16.mxu0 0
    %2328 = vmatpush1.bf16.msra.mxu0 0
    %2329 = vmatprep.subr.bf16.mxu0 0
    %2330 = vmatpush1.bf16.msra.mxu0 0
    %2331 = vmatprep.subr.bf16.mxu0 0
    %2332 = vmatpush1.bf16.msra.mxu0 0
    %2333 = vmatprep.subr.bf16.mxu0 0
    %2334 = vmatpush1.bf16.msra.mxu0 0
    %2335 = vmatprep.subr.bf16.mxu0 0
    %2336 = vmatpush1.bf16.msra.mxu0 0
    %2337 = vmatprep.subr.bf16.mxu0 0
    %2338 = vmatpush1.bf16.msra.mxu0 0
    %2339 = vmatprep.subr.bf16.mxu0 0
    %2340 = vmatpush1.bf16.msra.mxu0 0
    %2341 = vmatprep.subr.bf16.mxu0 0
    %2342 = vmatpush1.bf16.msra.mxu0 0
    %2343 = vmatprep.subr.bf16.mxu0 0
    %2344 = vmatpush1.bf16.msra.mxu0 0
    %2345 = vmatprep.subr.bf16.mxu0 0
    %2346 = vmatpush1.bf16.msra.mxu0 0
    %2347 = vmatprep.subr.bf16.mxu0 0
    %2348 = vmatpush1.bf16.msra.mxu0 0
    %2349 = vmatprep.mubr.bf16.mxu0 0
    %2350 = vmatmul.mubr.bf16.gmra.mrb[0].mxu0 %v116
    %v2351 = vpop.f32.mrb[0].mxu0
    %v2352 = vadd.f32 0.0, %v2351
    %v2353 = vpop.f32.mrb[0].mxu0
    %v2354 = vpop.f32.mrb[0].mxu0
    %v2355 = vadd.f32 0.0, %v2354
    %v2356 = vpop.f32.mrb[0].mxu0
    %2357 = vmatprep.mubr.bf16.mxu0 0
    %2358 = vmatmul.mubr.bf16.gmra.mrb[0].mxu0 %v119
    %v2359 = vpop.f32.mrb[0].mxu0
    %v2360 = vadd.f32 0.0, %v2359
    %v2361 = vpop.f32.mrb[0].mxu0
    %v2362 = vpop.f32.mrb[0].mxu0
    %v2363 = vadd.f32 0.0, %v2362
    %v2364 = vpop.f32.mrb[0].mxu0
    %2365 = vmatprep.mubr.bf16.mxu0 0
    %2366 = vmatmul.mubr.bf16.gmra.mrb[0].mxu0 %v122
    %v2367 = vpop.f32.mrb[0].mxu0
    %v2368 = vadd.f32 0.0, %v2367
    %v2369 = vpop.f32.mrb[0].mxu0
    %v2370 = vpop.f32.mrb[0].mxu0
    %v2371 = vadd.f32 0.0, %v2370
    %v2372 = vpop.f32.mrb[0].mxu0
    %2373 = vmatprep.mubr.bf16.mxu0 0
    %2374 = vmatmul.mubr.bf16.gmra.mrb[0].mxu0 %v125
    %v2375 = vpop.f32.mrb[0].mxu0
    %v2376 = vadd.f32 0.0, %v2375
    %v2377 = vpop.f32.mrb[0].mxu0
    %v2378 = vpop.f32.mrb[0].mxu0
    %v2379 = vadd.f32 0.0, %v2378
    %v2380 = vpop.f32.mrb[0].mxu0
    %2381 = vmatprep.mubr.bf16.mxu0 0
    %2382 = vmatmul.mubr.bf16.gmra.mrb[0].mxu0 %v128
    %v2383 = vpop.f32.mrb[0].mxu0
    %v2384 = vadd.f32 0.0, %v2383
    %v2385 = vpop.f32.mrb[0].mxu0
    %v2386 = vpop.f32.mrb[0].mxu0
    %v2387 = vadd.f32 0.0, %v2386
    %v2388 = vpop.f32.mrb[0].mxu0
    %2389 = vdwg.mxu0
    %v2390 = vmax.f32 %v2352, 0.0
    %v2391 = vmax.f32 %v2355, 0.0
    %v2392 = vmax.f32 %v2360, 0.0
    %v2393 = vmax.f32 %v2363, 0.0
    %v2394 = vmax.f32 %v2368, 0.0
    %v2395 = vmax.f32 %v2371, 0.0
    %v2396 = vmax.f32 %v2376, 0.0
    %v2397 = vmax.f32 %v2379, 0.0
    %v2398 = vmax.f32 %v2384, 0.0
    %v2399 = vmax.f32 %v2387, 0.0
    %s2400 = scalar_lea.vmem [#allocation4], 252
    %v2401 = vld [vmem:[%s2400] sm:$0xf]
    %v2402 = vld [vmem:[%s2400 + $0x4] sm:$0xf]
    %v2403 = vld [vmem:[%s2400 + $0x8] sm:$0x7]
    %v2407 = vunpack.c.l.b16 %v2401
    %v2408 = vunpack.c.l.b16 %v2402
    %v2409 = vunpack.c.l.b16 %v2403
    %v2410 = vpack.c.b16 %v2408, %v2407
    %v2411 = vpack.c.b16 %v2409, %v2409
    %v2414 = vand.u32 %v2411, %v133
    %2416 = vmatprep.subr.bf16.mxu0 0
    %2417 = vmatpush1.bf16.msra.mxu0 %v2410
    %2418 = vmatprep.subr.bf16.mxu0 0
    %2419 = vmatpush1.bf16.msra.mxu0 %v2414
    %2420 = vmatprep.subr.bf16.mxu0 0
    %2421 = vmatpush1.bf16.msra.mxu0 0
    %2422 = vmatprep.subr.bf16.mxu0 0
    %2423 = vmatpush1.bf16.msra.mxu0 0
    %2424 = vmatprep.subr.bf16.mxu0 0
    %2425 = vmatpush1.bf16.msra.mxu0 0
    %2426 = vmatprep.subr.bf16.mxu0 0
    %2427 = vmatpush1.bf16.msra.mxu0 0
    %2428 = vmatprep.subr.bf16.mxu0 0
    %2429 = vmatpush1.bf16.msra.mxu0 0
    %2430 = vmatprep.subr.bf16.mxu0 0
    %2431 = vmatpush1.bf16.msra.mxu0 0
    %2432 = vmatprep.subr.bf16.mxu0 0
    %2433 = vmatpush1.bf16.msra.mxu0 0
    %2434 = vmatprep.subr.bf16.mxu0 0
    %2435 = vmatpush1.bf16.msra.mxu0 0
    %2436 = vmatprep.subr.bf16.mxu0 0
    %2437 = vmatpush1.bf16.msra.mxu0 0
    %2438 = vmatprep.subr.bf16.mxu0 0
    %2439 = vmatpush1.bf16.msra.mxu0 0
    %2440 = vmatprep.subr.bf16.mxu0 0
    %2441 = vmatpush1.bf16.msra.mxu0 0
    %2442 = vmatprep.subr.bf16.mxu0 0
    %2443 = vmatpush1.bf16.msra.mxu0 0
    %2444 = vmatprep.subr.bf16.mxu0 0
    %2445 = vmatpush1.bf16.msra.mxu0 0
    %2446 = vmatprep.subr.bf16.mxu0 0
    %2447 = vmatpush1.bf16.msra.mxu0 0
    %2448 = vmatprep.mubr.bf16.mxu0 0
    %2449 = vmatmul.mubr.bf16.gmra.mrb[0].mxu0 %v116
    %v2450 = vpop.f32.mrb[0].mxu0
    %v2451 = vadd.f32 0.0, %v2450
    %v2452 = vpop.f32.mrb[0].mxu0
    %v2453 = vpop.f32.mrb[0].mxu0
    %v2454 = vadd.f32 0.0, %v2453
    %v2455 = vpop.f32.mrb[0].mxu0
    %2456 = vmatprep.mubr.bf16.mxu0 0
    %2457 = vmatmul.mubr.bf16.gmra.mrb[0].mxu0 %v119
    %v2458 = vpop.f32.mrb[0].mxu0
    %v2459 = vadd.f32 0.0, %v2458
    %v2460 = vpop.f32.mrb[0].mxu0
    %v2461 = vpop.f32.mrb[0].mxu0
    %v2462 = vadd.f32 0.0, %v2461
    %v2463 = vpop.f32.mrb[0].mxu0
    %2464 = vmatprep.mubr.bf16.mxu0 0
    %2465 = vmatmul.mubr.bf16.gmra.mrb[0].mxu0 %v122
    %v2466 = vpop.f32.mrb[0].mxu0
    %v2467 = vadd.f32 0.0, %v2466
    %v2468 = vpop.f32.mrb[0].mxu0
    %v2469 = vpop.f32.mrb[0].mxu0
    %v2470 = vadd.f32 0.0, %v2469
    %v2471 = vpop.f32.mrb[0].mxu0
    %2472 = vmatprep.mubr.bf16.mxu0 0
    %2473 = vmatmul.mubr.bf16.gmra.mrb[0].mxu0 %v125
    %v2474 = vpop.f32.mrb[0].mxu0
    %v2475 = vadd.f32 0.0, %v2474
    %v2476 = vpop.f32.mrb[0].mxu0
    %v2477 = vpop.f32.mrb[0].mxu0
    %v2478 = vadd.f32 0.0, %v2477
    %v2479 = vpop.f32.mrb[0].mxu0
    %2480 = vmatprep.mubr.bf16.mxu0 0
    %2481 = vmatmul.mubr.bf16.gmra.mrb[0].mxu0 %v128
    %v2482 = vpop.f32.mrb[0].mxu0
    %v2483 = vadd.f32 0.0, %v2482
    %v2484 = vpop.f32.mrb[0].mxu0
    %v2485 = vpop.f32.mrb[0].mxu0
    %v2486 = vadd.f32 0.0, %v2485
    %v2487 = vpop.f32.mrb[0].mxu0
    %2488 = vdwg.mxu0
    %v2489 = vmax.f32 %v2451, 0.0
    %v2490 = vmax.f32 %v2454, 0.0
    %v2491 = vmax.f32 %v2459, 0.0
    %v2492 = vmax.f32 %v2462, 0.0
    %v2493 = vmax.f32 %v2467, 0.0
    %v2494 = vmax.f32 %v2470, 0.0
    %v2495 = vmax.f32 %v2475, 0.0
    %v2496 = vmax.f32 %v2478, 0.0
    %v2497 = vmax.f32 %v2483, 0.0
    %v2498 = vmax.f32 %v2486, 0.0
    %v2499 = vadd.f32 %v2390, %v2489
    %v2500 = vadd.f32 %v2391, %v2490
    %v2501 = vadd.f32 %v2392, %v2491
    %v2502 = vadd.f32 %v2393, %v2492
    %v2503 = vadd.f32 %v2394, %v2493
    %v2504 = vadd.f32 %v2395, %v2494
    %v2505 = vadd.f32 %v2396, %v2495
    %v2506 = vadd.f32 %v2397, %v2496
    %v2507 = vadd.f32 %v2398, %v2497
    %v2508 = vadd.f32 %v2399, %v2498
    %v2509 = vpack.c.bf16 %v2500, %v2499
    %v2510 = vpack.c.bf16 %v2502, %v2501
    %v2511 = vpack.c.bf16 %v2504, %v2503
    %v2512 = vpack.c.bf16 %v2506, %v2505
    %v2513 = vpack.c.bf16 %v2508, %v2507
    %2514 = vst [vmem:[#allocation2 + $0x190] sm:$0xff] %v2509
    %2515 = vst [vmem:[#allocation2 + $0x198] sm:$0xff] %v2510
    %2516 = vst [vmem:[#allocation2 + $0x1a0] sm:$0xff] %v2511
    %2517 = vst [vmem:[#allocation2 + $0x1a8] sm:$0xff] %v2512
    %2518 = vst [vmem:[#allocation2 + $0x1b0] sm:$0xff] %v2513
    %s2519 = scalar_lea.vmem [#allocation4], 264
    %v2520 = vld [vmem:[%s2519] sm:$0xf]
    %v2521 = vld [vmem:[%s2519 + $0x4] sm:$0xf]
    %v2522 = vld [vmem:[%s2519 + $0x8] sm:$0x7]
    %v2526 = vunpack.c.l.b16 %v2520
    %v2527 = vunpack.c.l.b16 %v2521
    %v2528 = vunpack.c.l.b16 %v2522
    %v2529 = vpack.c.b16 %v2527, %v2526
    %v2530 = vpack.c.b16 %v2528, %v2528
    %v2533 = vand.u32 %v2530, %v133
    %2535 = vmatprep.subr.bf16.mxu0 0
    %2536 = vmatpush1.bf16.msra.mxu0 %v2529
    %2537 = vmatprep.subr.bf16.mxu0 0
    %2538 = vmatpush1.bf16.msra.mxu0 %v2533
    %2539 = vmatprep.subr.bf16.mxu0 0
    %2540 = vmatpush1.bf16.msra.mxu0 0
    %2541 = vmatprep.subr.bf16.mxu0 0
    %2542 = vmatpush1.bf16.msra.mxu0 0
    %2543 = vmatprep.subr.bf16.mxu0 0
    %2544 = vmatpush1.bf16.msra.mxu0 0
    %2545 = vmatprep.subr.bf16.mxu0 0
    %2546 = vmatpush1.bf16.msra.mxu0 0
    %2547 = vmatprep.subr.bf16.mxu0 0
    %2548 = vmatpush1.bf16.msra.mxu0 0
    %2549 = vmatprep.subr.bf16.mxu0 0
    %2550 = vmatpush1.bf16.msra.mxu0 0
    %2551 = vmatprep.subr.bf16.mxu0 0
    %2552 = vmatpush1.bf16.msra.mxu0 0
    %2553 = vmatprep.subr.bf16.mxu0 0
    %2554 = vmatpush1.bf16.msra.mxu0 0
    %2555 = vmatprep.subr.bf16.mxu0 0
    %2556 = vmatpush1.bf16.msra.mxu0 0
    %2557 = vmatprep.subr.bf16.mxu0 0
    %2558 = vmatpush1.bf16.msra.mxu0 0
    %2559 = vmatprep.subr.bf16.mxu0 0
    %2560 = vmatpush1.bf16.msra.mxu0 0
    %2561 = vmatprep.subr.bf16.mxu0 0
    %2562 = vmatpush1.bf16.msra.mxu0 0
    %2563 = vmatprep.subr.bf16.mxu0 0
    %2564 = vmatpush1.bf16.msra.mxu0 0
    %2565 = vmatprep.subr.bf16.mxu0 0
    %2566 = vmatpush1.bf16.msra.mxu0 0
    %2567 = vmatprep.mubr.bf16.mxu0 0
    %2568 = vmatmul.mubr.bf16.gmra.mrb[0].mxu0 %v116
    %v2569 = vpop.f32.mrb[0].mxu0
    %v2570 = vadd.f32 0.0, %v2569
    %v2571 = vpop.f32.mrb[0].mxu0
    %v2572 = vpop.f32.mrb[0].mxu0
    %v2573 = vadd.f32 0.0, %v2572
    %v2574 = vpop.f32.mrb[0].mxu0
    %2575 = vmatprep.mubr.bf16.mxu0 0
    %2576 = vmatmul.mubr.bf16.gmra.mrb[0].mxu0 %v119
    %v2577 = vpop.f32.mrb[0].mxu0
    %v2578 = vadd.f32 0.0, %v2577
    %v2579 = vpop.f32.mrb[0].mxu0
    %v2580 = vpop.f32.mrb[0].mxu0
    %v2581 = vadd.f32 0.0, %v2580
    %v2582 = vpop.f32.mrb[0].mxu0
    %2583 = vmatprep.mubr.bf16.mxu0 0
    %2584 = vmatmul.mubr.bf16.gmra.mrb[0].mxu0 %v122
    %v2585 = vpop.f32.mrb[0].mxu0
    %v2586 = vadd.f32 0.0, %v2585
    %v2587 = vpop.f32.mrb[0].mxu0
    %v2588 = vpop.f32.mrb[0].mxu0
    %v2589 = vadd.f32 0.0, %v2588
    %v2590 = vpop.f32.mrb[0].mxu0
    %2591 = vmatprep.mubr.bf16.mxu0 0
    %2592 = vmatmul.mubr.bf16.gmra.mrb[0].mxu0 %v125
    %v2593 = vpop.f32.mrb[0].mxu0
    %v2594 = vadd.f32 0.0, %v2593
    %v2595 = vpop.f32.mrb[0].mxu0
    %v2596 = vpop.f32.mrb[0].mxu0
    %v2597 = vadd.f32 0.0, %v2596
    %v2598 = vpop.f32.mrb[0].mxu0
    %2599 = vmatprep.mubr.bf16.mxu0 0
    %2600 = vmatmul.mubr.bf16.gmra.mrb[0].mxu0 %v128
    %v2601 = vpop.f32.mrb[0].mxu0
    %v2602 = vadd.f32 0.0, %v2601
    %v2603 = vpop.f32.mrb[0].mxu0
    %v2604 = vpop.f32.mrb[0].mxu0
    %v2605 = vadd.f32 0.0, %v2604
    %v2606 = vpop.f32.mrb[0].mxu0
    %2607 = vdwg.mxu0
    %v2608 = vmax.f32 %v2570, 0.0
    %v2609 = vmax.f32 %v2573, 0.0
    %v2610 = vmax.f32 %v2578, 0.0
    %v2611 = vmax.f32 %v2581, 0.0
    %v2612 = vmax.f32 %v2586, 0.0
    %v2613 = vmax.f32 %v2589, 0.0
    %v2614 = vmax.f32 %v2594, 0.0
    %v2615 = vmax.f32 %v2597, 0.0
    %v2616 = vmax.f32 %v2602, 0.0
    %v2617 = vmax.f32 %v2605, 0.0
    %s2618 = scalar_lea.vmem [#allocation4], 276
    %v2619 = vld [vmem:[%s2618] sm:$0xf]
    %v2620 = vld [vmem:[%s2618 + $0x4] sm:$0xf]
    %v2621 = vld [vmem:[%s2618 + $0x8] sm:$0x7]
    %v2625 = vunpack.c.l.b16 %v2619
    %v2626 = vunpack.c.l.b16 %v2620
    %v2627 = vunpack.c.l.b16 %v2621
    %v2628 = vpack.c.b16 %v2626, %v2625
    %v2629 = vpack.c.b16 %v2627, %v2627
    %v2632 = vand.u32 %v2629, %v133
    %2634 = vmatprep.subr.bf16.mxu0 0
    %2635 = vmatpush1.bf16.msra.mxu0 %v2628
    %2636 = vmatprep.subr.bf16.mxu0 0
    %2637 = vmatpush1.bf16.msra.mxu0 %v2632
    %2638 = vmatprep.subr.bf16.mxu0 0
    %2639 = vmatpush1.bf16.msra.mxu0 0
    %2640 = vmatprep.subr.bf16.mxu0 0
    %2641 = vmatpush1.bf16.msra.mxu0 0
    %2642 = vmatprep.subr.bf16.mxu0 0
    %2643 = vmatpush1.bf16.msra.mxu0 0
    %2644 = vmatprep.subr.bf16.mxu0 0
    %2645 = vmatpush1.bf16.msra.mxu0 0
    %2646 = vmatprep.subr.bf16.mxu0 0
    %2647 = vmatpush1.bf16.msra.mxu0 0
    %2648 = vmatprep.subr.bf16.mxu0 0
    %2649 = vmatpush1.bf16.msra.mxu0 0
    %2650 = vmatprep.subr.bf16.mxu0 0
    %2651 = vmatpush1.bf16.msra.mxu0 0
    %2652 = vmatprep.subr.bf16.mxu0 0
    %2653 = vmatpush1.bf16.msra.mxu0 0
    %2654 = vmatprep.subr.bf16.mxu0 0
    %2655 = vmatpush1.bf16.msra.mxu0 0
    %2656 = vmatprep.subr.bf16.mxu0 0
    %2657 = vmatpush1.bf16.msra.mxu0 0
    %2658 = vmatprep.subr.bf16.mxu0 0
    %2659 = vmatpush1.bf16.msra.mxu0 0
    %2660 = vmatprep.subr.bf16.mxu0 0
    %2661 = vmatpush1.bf16.msra.mxu0 0
    %2662 = vmatprep.subr.bf16.mxu0 0
    %2663 = vmatpush1.bf16.msra.mxu0 0
    %2664 = vmatprep.subr.bf16.mxu0 0
    %2665 = vmatpush1.bf16.msra.mxu0 0
    %2666 = vmatprep.mubr.bf16.mxu0 0
    %2667 = vmatmul.mubr.bf16.gmra.mrb[0].mxu0 %v116
    %v2668 = vpop.f32.mrb[0].mxu0
    %v2669 = vadd.f32 0.0, %v2668
    %v2670 = vpop.f32.mrb[0].mxu0
    %v2671 = vpop.f32.mrb[0].mxu0
    %v2672 = vadd.f32 0.0, %v2671
    %v2673 = vpop.f32.mrb[0].mxu0
    %2674 = vmatprep.mubr.bf16.mxu0 0
    %2675 = vmatmul.mubr.bf16.gmra.mrb[0].mxu0 %v119
    %v2676 = vpop.f32.mrb[0].mxu0
    %v2677 = vadd.f32 0.0, %v2676
    %v2678 = vpop.f32.mrb[0].mxu0
    %v2679 = vpop.f32.mrb[0].mxu0
    %v2680 = vadd.f32 0.0, %v2679
    %v2681 = vpop.f32.mrb[0].mxu0
    %2682 = vmatprep.mubr.bf16.mxu0 0
    %2683 = vmatmul.mubr.bf16.gmra.mrb[0].mxu0 %v122
    %v2684 = vpop.f32.mrb[0].mxu0
    %v2685 = vadd.f32 0.0, %v2684
    %v2686 = vpop.f32.mrb[0].mxu0
    %v2687 = vpop.f32.mrb[0].mxu0
    %v2688 = vadd.f32 0.0, %v2687
    %v2689 = vpop.f32.mrb[0].mxu0
    %2690 = vmatprep.mubr.bf16.mxu0 0
    %2691 = vmatmul.mubr.bf16.gmra.mrb[0].mxu0 %v125
    %v2692 = vpop.f32.mrb[0].mxu0
    %v2693 = vadd.f32 0.0, %v2692
    %v2694 = vpop.f32.mrb[0].mxu0
    %v2695 = vpop.f32.mrb[0].mxu0
    %v2696 = vadd.f32 0.0, %v2695
    %v2697 = vpop.f32.mrb[0].mxu0
    %2698 = vmatprep.mubr.bf16.mxu0 0
    %2699 = vmatmul.mubr.bf16.gmra.mrb[0].mxu0 %v128
    %v2700 = vpop.f32.mrb[0].mxu0
    %v2701 = vadd.f32 0.0, %v2700
    %v2702 = vpop.f32.mrb[0].mxu0
    %v2703 = vpop.f32.mrb[0].mxu0
    %v2704 = vadd.f32 0.0, %v2703
    %v2705 = vpop.f32.mrb[0].mxu0
    %2706 = vdwg.mxu0
    %v2707 = vmax.f32 %v2669, 0.0
    %v2708 = vmax.f32 %v2672, 0.0
    %v2709 = vmax.f32 %v2677, 0.0
    %v2710 = vmax.f32 %v2680, 0.0
    %v2711 = vmax.f32 %v2685, 0.0
    %v2712 = vmax.f32 %v2688, 0.0
    %v2713 = vmax.f32 %v2693, 0.0
    %v2714 = vmax.f32 %v2696, 0.0
    %v2715 = vmax.f32 %v2701, 0.0
    %v2716 = vmax.f32 %v2704, 0.0
    %v2717 = vadd.f32 %v2608, %v2707
    %v2718 = vadd.f32 %v2609, %v2708
    %v2719 = vadd.f32 %v2610, %v2709
    %v2720 = vadd.f32 %v2611, %v2710
    %v2721 = vadd.f32 %v2612, %v2711
    %v2722 = vadd.f32 %v2613, %v2712
    %v2723 = vadd.f32 %v2614, %v2713
    %v2724 = vadd.f32 %v2615, %v2714
    %v2725 = vadd.f32 %v2616, %v2715
    %v2726 = vadd.f32 %v2617, %v2716
    %v2727 = vpack.c.bf16 %v2718, %v2717
    %v2728 = vpack.c.bf16 %v2720, %v2719
    %v2729 = vpack.c.bf16 %v2722, %v2721
    %v2730 = vpack.c.bf16 %v2724, %v2723
    %v2731 = vpack.c.bf16 %v2726, %v2725
    %2732 = vst [vmem:[#allocation2 + $0x1b8] sm:$0xff] %v2727
    %2733 = vst [vmem:[#allocation2 + $0x1c0] sm:$0xff] %v2728
    %2734 = vst [vmem:[#allocation2 + $0x1c8] sm:$0xff] %v2729
    %2735 = vst [vmem:[#allocation2 + $0x1d0] sm:$0xff] %v2730
    %2736 = vst [vmem:[#allocation2 + $0x1d8] sm:$0xff] %v2731
    %s2737 = scalar_lea.vmem [#allocation4], 288
    %v2738 = vld [vmem:[%s2737] sm:$0xf]
    %v2739 = vld [vmem:[%s2737 + $0x4] sm:$0xf]
    %v2740 = vld [vmem:[%s2737 + $0x8] sm:$0x7]
    %v2744 = vunpack.c.l.b16 %v2738
    %v2745 = vunpack.c.l.b16 %v2739
    %v2746 = vunpack.c.l.b16 %v2740
    %v2747 = vpack.c.b16 %v2745, %v2744
    %v2748 = vpack.c.b16 %v2746, %v2746
    %v2751 = vand.u32 %v2748, %v133
    %2753 = vmatprep.subr.bf16.mxu0 0
    %2754 = vmatpush1.bf16.msra.mxu0 %v2747
    %2755 = vmatprep.subr.bf16.mxu0 0
    %2756 = vmatpush1.bf16.msra.mxu0 %v2751
    %2757 = vmatprep.subr.bf16.mxu0 0
    %2758 = vmatpush1.bf16.msra.mxu0 0
    %2759 = vmatprep.subr.bf16.mxu0 0
    %2760 = vmatpush1.bf16.msra.mxu0 0
    %2761 = vmatprep.subr.bf16.mxu0 0
    %2762 = vmatpush1.bf16.msra.mxu0 0
    %2763 = vmatprep.subr.bf16.mxu0 0
    %2764 = vmatpush1.bf16.msra.mxu0 0
    %2765 = vmatprep.subr.bf16.mxu0 0
    %2766 = vmatpush1.bf16.msra.mxu0 0
    %2767 = vmatprep.subr.bf16.mxu0 0
    %2768 = vmatpush1.bf16.msra.mxu0 0
    %2769 = vmatprep.subr.bf16.mxu0 0
    %2770 = vmatpush1.bf16.msra.mxu0 0
    %2771 = vmatprep.subr.bf16.mxu0 0
    %2772 = vmatpush1.bf16.msra.mxu0 0
    %2773 = vmatprep.subr.bf16.mxu0 0
    %2774 = vmatpush1.bf16.msra.mxu0 0
    %2775 = vmatprep.subr.bf16.mxu0 0
    %2776 = vmatpush1.bf16.msra.mxu0 0
    %2777 = vmatprep.subr.bf16.mxu0 0
    %2778 = vmatpush1.bf16.msra.mxu0 0
    %2779 = vmatprep.subr.bf16.mxu0 0
    %2780 = vmatpush1.bf16.msra.mxu0 0
    %2781 = vmatprep.subr.bf16.mxu0 0
    %2782 = vmatpush1.bf16.msra.mxu0 0
    %2783 = vmatprep.subr.bf16.mxu0 0
    %2784 = vmatpush1.bf16.msra.mxu0 0
    %2785 = vmatprep.mubr.bf16.mxu0 0
    %2786 = vmatmul.mubr.bf16.gmra.mrb[0].mxu0 %v116
    %v2787 = vpop.f32.mrb[0].mxu0
    %v2788 = vadd.f32 0.0, %v2787
    %v2789 = vpop.f32.mrb[0].mxu0
    %v2790 = vpop.f32.mrb[0].mxu0
    %v2791 = vadd.f32 0.0, %v2790
    %v2792 = vpop.f32.mrb[0].mxu0
    %2793 = vmatprep.mubr.bf16.mxu0 0
    %2794 = vmatmul.mubr.bf16.gmra.mrb[0].mxu0 %v119
    %v2795 = vpop.f32.mrb[0].mxu0
    %v2796 = vadd.f32 0.0, %v2795
    %v2797 = vpop.f32.mrb[0].mxu0
    %v2798 = vpop.f32.mrb[0].mxu0
    %v2799 = vadd.f32 0.0, %v2798
    %v2800 = vpop.f32.mrb[0].mxu0
    %2801 = vmatprep.mubr.bf16.mxu0 0
    %2802 = vmatmul.mubr.bf16.gmra.mrb[0].mxu0 %v122
    %v2803 = vpop.f32.mrb[0].mxu0
    %v2804 = vadd.f32 0.0, %v2803
    %v2805 = vpop.f32.mrb[0].mxu0
    %v2806 = vpop.f32.mrb[0].mxu0
    %v2807 = vadd.f32 0.0, %v2806
    %v2808 = vpop.f32.mrb[0].mxu0
    %2809 = vmatprep.mubr.bf16.mxu0 0
    %2810 = vmatmul.mubr.bf16.gmra.mrb[0].mxu0 %v125
    %v2811 = vpop.f32.mrb[0].mxu0
    %v2812 = vadd.f32 0.0, %v2811
    %v2813 = vpop.f32.mrb[0].mxu0
    %v2814 = vpop.f32.mrb[0].mxu0
    %v2815 = vadd.f32 0.0, %v2814
    %v2816 = vpop.f32.mrb[0].mxu0
    %2817 = vmatprep.mubr.bf16.mxu0 0
    %2818 = vmatmul.mubr.bf16.gmra.mrb[0].mxu0 %v128
    %v2819 = vpop.f32.mrb[0].mxu0
    %v2820 = vadd.f32 0.0, %v2819
    %v2821 = vpop.f32.mrb[0].mxu0
    %v2822 = vpop.f32.mrb[0].mxu0
    %v2823 = vadd.f32 0.0, %v2822
    %v2824 = vpop.f32.mrb[0].mxu0
    %2825 = vdwg.mxu0
    %v2826 = vmax.f32 %v2788, 0.0
    %v2827 = vmax.f32 %v2791, 0.0
    %v2828 = vmax.f32 %v2796, 0.0
    %v2829 = vmax.f32 %v2799, 0.0
    %v2830 = vmax.f32 %v2804, 0.0
    %v2831 = vmax.f32 %v2807, 0.0
    %v2832 = vmax.f32 %v2812, 0.0
    %v2833 = vmax.f32 %v2815, 0.0
    %v2834 = vmax.f32 %v2820, 0.0
    %v2835 = vmax.f32 %v2823, 0.0
    %s2836 = scalar_lea.vmem [#allocation4], 300
    %v2837 = vld [vmem:[%s2836] sm:$0xf]
    %v2838 = vld [vmem:[%s2836 + $0x4] sm:$0xf]
    %v2839 = vld [vmem:[%s2836 + $0x8] sm:$0x7]
    %v2843 = vunpack.c.l.b16 %v2837
    %v2844 = vunpack.c.l.b16 %v2838
    %v2845 = vunpack.c.l.b16 %v2839
    %v2846 = vpack.c.b16 %v2844, %v2843
    %v2847 = vpack.c.b16 %v2845, %v2845
    %v2850 = vand.u32 %v2847, %v133
    %2852 = vmatprep.subr.bf16.mxu0 0
    %2853 = vmatpush1.bf16.msra.mxu0 %v2846
    %2854 = vmatprep.subr.bf16.mxu0 0
    %2855 = vmatpush1.bf16.msra.mxu0 %v2850
    %2856 = vmatprep.subr.bf16.mxu0 0
    %2857 = vmatpush1.bf16.msra.mxu0 0
    %2858 = vmatprep.subr.bf16.mxu0 0
    %2859 = vmatpush1.bf16.msra.mxu0 0
    %2860 = vmatprep.subr.bf16.mxu0 0
    %2861 = vmatpush1.bf16.msra.mxu0 0
    %2862 = vmatprep.subr.bf16.mxu0 0
    %2863 = vmatpush1.bf16.msra.mxu0 0
    %2864 = vmatprep.subr.bf16.mxu0 0
    %2865 = vmatpush1.bf16.msra.mxu0 0
    %2866 = vmatprep.subr.bf16.mxu0 0
    %2867 = vmatpush1.bf16.msra.mxu0 0
    %2868 = vmatprep.subr.bf16.mxu0 0
    %2869 = vmatpush1.bf16.msra.mxu0 0
    %2870 = vmatprep.subr.bf16.mxu0 0
    %2871 = vmatpush1.bf16.msra.mxu0 0
    %2872 = vmatprep.subr.bf16.mxu0 0
    %2873 = vmatpush1.bf16.msra.mxu0 0
    %2874 = vmatprep.subr.bf16.mxu0 0
    %2875 = vmatpush1.bf16.msra.mxu0 0
    %2876 = vmatprep.subr.bf16.mxu0 0
    %2877 = vmatpush1.bf16.msra.mxu0 0
    %2878 = vmatprep.subr.bf16.mxu0 0
    %2879 = vmatpush1.bf16.msra.mxu0 0
    %2880 = vmatprep.subr.bf16.mxu0 0
    %2881 = vmatpush1.bf16.msra.mxu0 0
    %2882 = vmatprep.subr.bf16.mxu0 0
    %2883 = vmatpush1.bf16.msra.mxu0 0
    %2884 = vmatprep.mubr.bf16.mxu0 0
    %2885 = vmatmul.mubr.bf16.gmra.mrb[0].mxu0 %v116
    %v2886 = vpop.f32.mrb[0].mxu0
    %v2887 = vadd.f32 0.0, %v2886
    %v2888 = vpop.f32.mrb[0].mxu0
    %v2889 = vpop.f32.mrb[0].mxu0
    %v2890 = vadd.f32 0.0, %v2889
    %v2891 = vpop.f32.mrb[0].mxu0
    %2892 = vmatprep.mubr.bf16.mxu0 0
    %2893 = vmatmul.mubr.bf16.gmra.mrb[0].mxu0 %v119
    %v2894 = vpop.f32.mrb[0].mxu0
    %v2895 = vadd.f32 0.0, %v2894
    %v2896 = vpop.f32.mrb[0].mxu0
    %v2897 = vpop.f32.mrb[0].mxu0
    %v2898 = vadd.f32 0.0, %v2897
    %v2899 = vpop.f32.mrb[0].mxu0
    %2900 = vmatprep.mubr.bf16.mxu0 0
    %2901 = vmatmul.mubr.bf16.gmra.mrb[0].mxu0 %v122
    %v2902 = vpop.f32.mrb[0].mxu0
    %v2903 = vadd.f32 0.0, %v2902
    %v2904 = vpop.f32.mrb[0].mxu0
    %v2905 = vpop.f32.mrb[0].mxu0
    %v2906 = vadd.f32 0.0, %v2905
    %v2907 = vpop.f32.mrb[0].mxu0
    %2908 = vmatprep.mubr.bf16.mxu0 0
    %2909 = vmatmul.mubr.bf16.gmra.mrb[0].mxu0 %v125
    %v2910 = vpop.f32.mrb[0].mxu0
    %v2911 = vadd.f32 0.0, %v2910
    %v2912 = vpop.f32.mrb[0].mxu0
    %v2913 = vpop.f32.mrb[0].mxu0
    %v2914 = vadd.f32 0.0, %v2913
    %v2915 = vpop.f32.mrb[0].mxu0
    %2916 = vmatprep.mubr.bf16.mxu0 0
    %2917 = vmatmul.mubr.bf16.gmra.mrb[0].mxu0 %v128
    %v2918 = vpop.f32.mrb[0].mxu0
    %v2919 = vadd.f32 0.0, %v2918
    %v2920 = vpop.f32.mrb[0].mxu0
    %v2921 = vpop.f32.mrb[0].mxu0
    %v2922 = vadd.f32 0.0, %v2921
    %v2923 = vpop.f32.mrb[0].mxu0
    %2924 = vdwg.mxu0
    %v2925 = vmax.f32 %v2887, 0.0
    %v2926 = vmax.f32 %v2890, 0.0
    %v2927 = vmax.f32 %v2895, 0.0
    %v2928 = vmax.f32 %v2898, 0.0
    %v2929 = vmax.f32 %v2903, 0.0
    %v2930 = vmax.f32 %v2906, 0.0
    %v2931 = vmax.f32 %v2911, 0.0
    %v2932 = vmax.f32 %v2914, 0.0
    %v2933 = vmax.f32 %v2919, 0.0
    %v2934 = vmax.f32 %v2922, 0.0
    %v2935 = vadd.f32 %v2826, %v2925
    %v2936 = vadd.f32 %v2827, %v2926
    %v2937 = vadd.f32 %v2828, %v2927
    %v2938 = vadd.f32 %v2829, %v2928
    %v2939 = vadd.f32 %v2830, %v2929
    %v2940 = vadd.f32 %v2831, %v2930
    %v2941 = vadd.f32 %v2832, %v2931
    %v2942 = vadd.f32 %v2833, %v2932
    %v2943 = vadd.f32 %v2834, %v2933
    %v2944 = vadd.f32 %v2835, %v2934
    %v2945 = vpack.c.bf16 %v2936, %v2935
    %v2946 = vpack.c.bf16 %v2938, %v2937
    %v2947 = vpack.c.bf16 %v2940, %v2939
    %v2948 = vpack.c.bf16 %v2942, %v2941
    %v2949 = vpack.c.bf16 %v2944, %v2943
    %2950 = vst [vmem:[#allocation2 + $0x1e0] sm:$0xff] %v2945
    %2951 = vst [vmem:[#allocation2 + $0x1e8] sm:$0xff] %v2946
    %2952 = vst [vmem:[#allocation2 + $0x1f0] sm:$0xff] %v2947
    %2953 = vst [vmem:[#allocation2 + $0x1f8] sm:$0xff] %v2948
    %2954 = vst [vmem:[#allocation2 + $0x200] sm:$0xff] %v2949
    %s2955 = scalar_lea.vmem [#allocation4], 312
    %v2956 = vld [vmem:[%s2955] sm:$0xf]
    %v2957 = vld [vmem:[%s2955 + $0x4] sm:$0xf]
    %v2958 = vld [vmem:[%s2955 + $0x8] sm:$0x7]
    %v2962 = vunpack.c.l.b16 %v2956
    %v2963 = vunpack.c.l.b16 %v2957
    %v2964 = vunpack.c.l.b16 %v2958
    %v2965 = vpack.c.b16 %v2963, %v2962
    %v2966 = vpack.c.b16 %v2964, %v2964
    %v2969 = vand.u32 %v2966, %v133
    %2971 = vmatprep.subr.bf16.mxu0 0
    %2972 = vmatpush1.bf16.msra.mxu0 %v2965
    %2973 = vmatprep.subr.bf16.mxu0 0
    %2974 = vmatpush1.bf16.msra.mxu0 %v2969
    %2975 = vmatprep.subr.bf16.mxu0 0
    %2976 = vmatpush1.bf16.msra.mxu0 0
    %2977 = vmatprep.subr.bf16.mxu0 0
    %2978 = vmatpush1.bf16.msra.mxu0 0
    %2979 = vmatprep.subr.bf16.mxu0 0
    %2980 = vmatpush1.bf16.msra.mxu0 0
    %2981 = vmatprep.subr.bf16.mxu0 0
    %2982 = vmatpush1.bf16.msra.mxu0 0
    %2983 = vmatprep.subr.bf16.mxu0 0
    %2984 = vmatpush1.bf16.msra.mxu0 0
    %2985 = vmatprep.subr.bf16.mxu0 0
    %2986 = vmatpush1.bf16.msra.mxu0 0
    %2987 = vmatprep.subr.bf16.mxu0 0
    %2988 = vmatpush1.bf16.msra.mxu0 0
    %2989 = vmatprep.subr.bf16.mxu0 0
    %2990 = vmatpush1.bf16.msra.mxu0 0
    %2991 = vmatprep.subr.bf16.mxu0 0
    %2992 = vmatpush1.bf16.msra.mxu0 0
    %2993 = vmatprep.subr.bf16.mxu0 0
    %2994 = vmatpush1.bf16.msra.mxu0 0
    %2995 = vmatprep.subr.bf16.mxu0 0
    %2996 = vmatpush1.bf16.msra.mxu0 0
    %2997 = vmatprep.subr.bf16.mxu0 0
    %2998 = vmatpush1.bf16.msra.mxu0 0
    %2999 = vmatprep.subr.bf16.mxu0 0
    %3000 = vmatpush1.bf16.msra.mxu0 0
    %3001 = vmatprep.subr.bf16.mxu0 0
    %3002 = vmatpush1.bf16.msra.mxu0 0
    %3003 = vmatprep.mubr.bf16.mxu0 0
    %3004 = vmatmul.mubr.bf16.gmra.mrb[0].mxu0 %v116
    %v3005 = vpop.f32.mrb[0].mxu0
    %v3006 = vadd.f32 0.0, %v3005
    %v3007 = vpop.f32.mrb[0].mxu0
    %v3008 = vpop.f32.mrb[0].mxu0
    %v3009 = vadd.f32 0.0, %v3008
    %v3010 = vpop.f32.mrb[0].mxu0
    %3011 = vmatprep.mubr.bf16.mxu0 0
    %3012 = vmatmul.mubr.bf16.gmra.mrb[0].mxu0 %v119
    %v3013 = vpop.f32.mrb[0].mxu0
    %v3014 = vadd.f32 0.0, %v3013
    %v3015 = vpop.f32.mrb[0].mxu0
    %v3016 = vpop.f32.mrb[0].mxu0
    %v3017 = vadd.f32 0.0, %v3016
    %v3018 = vpop.f32.mrb[0].mxu0
    %3019 = vmatprep.mubr.bf16.mxu0 0
    %3020 = vmatmul.mubr.bf16.gmra.mrb[0].mxu0 %v122
    %v3021 = vpop.f32.mrb[0].mxu0
    %v3022 = vadd.f32 0.0, %v3021
    %v3023 = vpop.f32.mrb[0].mxu0
    %v3024 = vpop.f32.mrb[0].mxu0
    %v3025 = vadd.f32 0.0, %v3024
    %v3026 = vpop.f32.mrb[0].mxu0
    %3027 = vmatprep.mubr.bf16.mxu0 0
    %3028 = vmatmul.mubr.bf16.gmra.mrb[0].mxu0 %v125
    %v3029 = vpop.f32.mrb[0].mxu0
    %v3030 = vadd.f32 0.0, %v3029
    %v3031 = vpop.f32.mrb[0].mxu0
    %v3032 = vpop.f32.mrb[0].mxu0
    %v3033 = vadd.f32 0.0, %v3032
    %v3034 = vpop.f32.mrb[0].mxu0
    %3035 = vmatprep.mubr.bf16.mxu0 0
    %3036 = vmatmul.mubr.bf16.gmra.mrb[0].mxu0 %v128
    %v3037 = vpop.f32.mrb[0].mxu0
    %v3038 = vadd.f32 0.0, %v3037
    %v3039 = vpop.f32.mrb[0].mxu0
    %v3040 = vpop.f32.mrb[0].mxu0
    %v3041 = vadd.f32 0.0, %v3040
    %v3042 = vpop.f32.mrb[0].mxu0
    %3043 = vdwg.mxu0
    %v3044 = vmax.f32 %v3006, 0.0
    %v3045 = vmax.f32 %v3009, 0.0
    %v3046 = vmax.f32 %v3014, 0.0
    %v3047 = vmax.f32 %v3017, 0.0
    %v3048 = vmax.f32 %v3022, 0.0
    %v3049 = vmax.f32 %v3025, 0.0
    %v3050 = vmax.f32 %v3030, 0.0
    %v3051 = vmax.f32 %v3033, 0.0
    %v3052 = vmax.f32 %v3038, 0.0
    %v3053 = vmax.f32 %v3041, 0.0
    %s3054 = scalar_lea.vmem [#allocation4], 324
    %v3055 = vld [vmem:[%s3054] sm:$0xf]
    %v3056 = vld [vmem:[%s3054 + $0x4] sm:$0xf]
    %v3057 = vld [vmem:[%s3054 + $0x8] sm:$0x7]
    %v3061 = vunpack.c.l.b16 %v3055
    %v3062 = vunpack.c.l.b16 %v3056
    %v3063 = vunpack.c.l.b16 %v3057
    %v3064 = vpack.c.b16 %v3062, %v3061
    %v3065 = vpack.c.b16 %v3063, %v3063
    %v3068 = vand.u32 %v3065, %v133
    %3070 = vmatprep.subr.bf16.mxu0 0
    %3071 = vmatpush1.bf16.msra.mxu0 %v3064
    %3072 = vmatprep.subr.bf16.mxu0 0
    %3073 = vmatpush1.bf16.msra.mxu0 %v3068
    %3074 = vmatprep.subr.bf16.mxu0 0
    %3075 = vmatpush1.bf16.msra.mxu0 0
    %3076 = vmatprep.subr.bf16.mxu0 0
    %3077 = vmatpush1.bf16.msra.mxu0 0
    %3078 = vmatprep.subr.bf16.mxu0 0
    %3079 = vmatpush1.bf16.msra.mxu0 0
    %3080 = vmatprep.subr.bf16.mxu0 0
    %3081 = vmatpush1.bf16.msra.mxu0 0
    %3082 = vmatprep.subr.bf16.mxu0 0
    %3083 = vmatpush1.bf16.msra.mxu0 0
    %3084 = vmatprep.subr.bf16.mxu0 0
    %3085 = vmatpush1.bf16.msra.mxu0 0
    %3086 = vmatprep.subr.bf16.mxu0 0
    %3087 = vmatpush1.bf16.msra.mxu0 0
    %3088 = vmatprep.subr.bf16.mxu0 0
    %3089 = vmatpush1.bf16.msra.mxu0 0
    %3090 = vmatprep.subr.bf16.mxu0 0
    %3091 = vmatpush1.bf16.msra.mxu0 0
    %3092 = vmatprep.subr.bf16.mxu0 0
    %3093 = vmatpush1.bf16.msra.mxu0 0
    %3094 = vmatprep.subr.bf16.mxu0 0
    %3095 = vmatpush1.bf16.msra.mxu0 0
    %3096 = vmatprep.subr.bf16.mxu0 0
    %3097 = vmatpush1.bf16.msra.mxu0 0
    %3098 = vmatprep.subr.bf16.mxu0 0
    %3099 = vmatpush1.bf16.msra.mxu0 0
    %3100 = vmatprep.subr.bf16.mxu0 0
    %3101 = vmatpush1.bf16.msra.mxu0 0
    %3102 = vmatprep.mubr.bf16.mxu0 0
    %3103 = vmatmul.mubr.bf16.gmra.mrb[0].mxu0 %v116
    %v3104 = vpop.f32.mrb[0].mxu0
    %v3105 = vadd.f32 0.0, %v3104
    %v3106 = vpop.f32.mrb[0].mxu0
    %v3107 = vpop.f32.mrb[0].mxu0
    %v3108 = vadd.f32 0.0, %v3107
    %v3109 = vpop.f32.mrb[0].mxu0
    %3110 = vmatprep.mubr.bf16.mxu0 0
    %3111 = vmatmul.mubr.bf16.gmra.mrb[0].mxu0 %v119
    %v3112 = vpop.f32.mrb[0].mxu0
    %v3113 = vadd.f32 0.0, %v3112
    %v3114 = vpop.f32.mrb[0].mxu0
    %v3115 = vpop.f32.mrb[0].mxu0
    %v3116 = vadd.f32 0.0, %v3115
    %v3117 = vpop.f32.mrb[0].mxu0
    %3118 = vmatprep.mubr.bf16.mxu0 0
    %3119 = vmatmul.mubr.bf16.gmra.mrb[0].mxu0 %v122
    %v3120 = vpop.f32.mrb[0].mxu0
    %v3121 = vadd.f32 0.0, %v3120
    %v3122 = vpop.f32.mrb[0].mxu0
    %v3123 = vpop.f32.mrb[0].mxu0
    %v3124 = vadd.f32 0.0, %v3123
    %v3125 = vpop.f32.mrb[0].mxu0
    %3126 = vmatprep.mubr.bf16.mxu0 0
    %3127 = vmatmul.mubr.bf16.gmra.mrb[0].mxu0 %v125
    %v3128 = vpop.f32.mrb[0].mxu0
    %v3129 = vadd.f32 0.0, %v3128
    %v3130 = vpop.f32.mrb[0].mxu0
    %v3131 = vpop.f32.mrb[0].mxu0
    %v3132 = vadd.f32 0.0, %v3131
    %v3133 = vpop.f32.mrb[0].mxu0
    %3134 = vmatprep.mubr.bf16.mxu0 0
    %3135 = vmatmul.mubr.bf16.gmra.mrb[0].mxu0 %v128
    %v3136 = vpop.f32.mrb[0].mxu0
    %v3137 = vadd.f32 0.0, %v3136
    %v3138 = vpop.f32.mrb[0].mxu0
    %v3139 = vpop.f32.mrb[0].mxu0
    %v3140 = vadd.f32 0.0, %v3139
    %v3141 = vpop.f32.mrb[0].mxu0
    %3142 = vdwg.mxu0
    %v3143 = vmax.f32 %v3105, 0.0
    %v3144 = vmax.f32 %v3108, 0.0
    %v3145 = vmax.f32 %v3113, 0.0
    %v3146 = vmax.f32 %v3116, 0.0
    %v3147 = vmax.f32 %v3121, 0.0
    %v3148 = vmax.f32 %v3124, 0.0
    %v3149 = vmax.f32 %v3129, 0.0
    %v3150 = vmax.f32 %v3132, 0.0
    %v3151 = vmax.f32 %v3137, 0.0
    %v3152 = vmax.f32 %v3140, 0.0
    %v3153 = vadd.f32 %v3044, %v3143
    %v3154 = vadd.f32 %v3045, %v3144
    %v3155 = vadd.f32 %v3046, %v3145
    %v3156 = vadd.f32 %v3047, %v3146
    %v3157 = vadd.f32 %v3048, %v3147
    %v3158 = vadd.f32 %v3049, %v3148
    %v3159 = vadd.f32 %v3050, %v3149
    %v3160 = vadd.f32 %v3051, %v3150
    %v3161 = vadd.f32 %v3052, %v3151
    %v3162 = vadd.f32 %v3053, %v3152
    %v3163 = vpack.c.bf16 %v3154, %v3153
    %v3164 = vpack.c.bf16 %v3156, %v3155
    %v3165 = vpack.c.bf16 %v3158, %v3157
    %v3166 = vpack.c.bf16 %v3160, %v3159
    %v3167 = vpack.c.bf16 %v3162, %v3161
    %3168 = vst [vmem:[#allocation2 + $0x208] sm:$0xff] %v3163
    %3169 = vst [vmem:[#allocation2 + $0x210] sm:$0xff] %v3164
    %3170 = vst [vmem:[#allocation2 + $0x218] sm:$0xff] %v3165
    %3171 = vst [vmem:[#allocation2 + $0x220] sm:$0xff] %v3166
    %3172 = vst [vmem:[#allocation2 + $0x228] sm:$0xff] %v3167
    %s3173 = scalar_lea.vmem [#allocation4], 336
    %v3174 = vld [vmem:[%s3173] sm:$0xf]
    %v3175 = vld [vmem:[%s3173 + $0x4] sm:$0xf]
    %v3176 = vld [vmem:[%s3173 + $0x8] sm:$0x7]
    %v3180 = vunpack.c.l.b16 %v3174
    %v3181 = vunpack.c.l.b16 %v3175
    %v3182 = vunpack.c.l.b16 %v3176
    %v3183 = vpack.c.b16 %v3181, %v3180
    %v3184 = vpack.c.b16 %v3182, %v3182
    %v3187 = vand.u32 %v3184, %v133
    %3189 = vmatprep.subr.bf16.mxu0 0
    %3190 = vmatpush1.bf16.msra.mxu0 %v3183
    %3191 = vmatprep.subr.bf16.mxu0 0
    %3192 = vmatpush1.bf16.msra.mxu0 %v3187
    %3193 = vmatprep.subr.bf16.mxu0 0
    %3194 = vmatpush1.bf16.msra.mxu0 0
    %3195 = vmatprep.subr.bf16.mxu0 0
    %3196 = vmatpush1.bf16.msra.mxu0 0
    %3197 = vmatprep.subr.bf16.mxu0 0
    %3198 = vmatpush1.bf16.msra.mxu0 0
    %3199 = vmatprep.subr.bf16.mxu0 0
    %3200 = vmatpush1.bf16.msra.mxu0 0
    %3201 = vmatprep.subr.bf16.mxu0 0
    %3202 = vmatpush1.bf16.msra.mxu0 0
    %3203 = vmatprep.subr.bf16.mxu0 0
    %3204 = vmatpush1.bf16.msra.mxu0 0
    %3205 = vmatprep.subr.bf16.mxu0 0
    %3206 = vmatpush1.bf16.msra.mxu0 0
    %3207 = vmatprep.subr.bf16.mxu0 0
    %3208 = vmatpush1.bf16.msra.mxu0 0
    %3209 = vmatprep.subr.bf16.mxu0 0
    %3210 = vmatpush1.bf16.msra.mxu0 0
    %3211 = vmatprep.subr.bf16.mxu0 0
    %3212 = vmatpush1.bf16.msra.mxu0 0
    %3213 = vmatprep.subr.bf16.mxu0 0
    %3214 = vmatpush1.bf16.msra.mxu0 0
    %3215 = vmatprep.subr.bf16.mxu0 0
    %3216 = vmatpush1.bf16.msra.mxu0 0
    %3217 = vmatprep.subr.bf16.mxu0 0
    %3218 = vmatpush1.bf16.msra.mxu0 0
    %3219 = vmatprep.subr.bf16.mxu0 0
    %3220 = vmatpush1.bf16.msra.mxu0 0
    %3221 = vmatprep.mubr.bf16.mxu0 0
    %3222 = vmatmul.mubr.bf16.gmra.mrb[0].mxu0 %v116
    %v3223 = vpop.f32.mrb[0].mxu0
    %v3224 = vadd.f32 0.0, %v3223
    %v3225 = vpop.f32.mrb[0].mxu0
    %v3226 = vpop.f32.mrb[0].mxu0
    %v3227 = vadd.f32 0.0, %v3226
    %v3228 = vpop.f32.mrb[0].mxu0
    %3229 = vmatprep.mubr.bf16.mxu0 0
    %3230 = vmatmul.mubr.bf16.gmra.mrb[0].mxu0 %v119
    %v3231 = vpop.f32.mrb[0].mxu0
    %v3232 = vadd.f32 0.0, %v3231
    %v3233 = vpop.f32.mrb[0].mxu0
    %v3234 = vpop.f32.mrb[0].mxu0
    %v3235 = vadd.f32 0.0, %v3234
    %v3236 = vpop.f32.mrb[0].mxu0
    %3237 = vmatprep.mubr.bf16.mxu0 0
    %3238 = vmatmul.mubr.bf16.gmra.mrb[0].mxu0 %v122
    %v3239 = vpop.f32.mrb[0].mxu0
    %v3240 = vadd.f32 0.0, %v3239
    %v3241 = vpop.f32.mrb[0].mxu0
    %v3242 = vpop.f32.mrb[0].mxu0
    %v3243 = vadd.f32 0.0, %v3242
    %v3244 = vpop.f32.mrb[0].mxu0
    %3245 = vmatprep.mubr.bf16.mxu0 0
    %3246 = vmatmul.mubr.bf16.gmra.mrb[0].mxu0 %v125
    %v3247 = vpop.f32.mrb[0].mxu0
    %v3248 = vadd.f32 0.0, %v3247
    %v3249 = vpop.f32.mrb[0].mxu0
    %v3250 = vpop.f32.mrb[0].mxu0
    %v3251 = vadd.f32 0.0, %v3250
    %v3252 = vpop.f32.mrb[0].mxu0
    %3253 = vmatprep.mubr.bf16.mxu0 0
    %3254 = vmatmul.mubr.bf16.gmra.mrb[0].mxu0 %v128
    %v3255 = vpop.f32.mrb[0].mxu0
    %v3256 = vadd.f32 0.0, %v3255
    %v3257 = vpop.f32.mrb[0].mxu0
    %v3258 = vpop.f32.mrb[0].mxu0
    %v3259 = vadd.f32 0.0, %v3258
    %v3260 = vpop.f32.mrb[0].mxu0
    %3261 = vdwg.mxu0
    %v3262 = vmax.f32 %v3224, 0.0
    %v3263 = vmax.f32 %v3227, 0.0
    %v3264 = vmax.f32 %v3232, 0.0
    %v3265 = vmax.f32 %v3235, 0.0
    %v3266 = vmax.f32 %v3240, 0.0
    %v3267 = vmax.f32 %v3243, 0.0
    %v3268 = vmax.f32 %v3248, 0.0
    %v3269 = vmax.f32 %v3251, 0.0
    %v3270 = vmax.f32 %v3256, 0.0
    %v3271 = vmax.f32 %v3259, 0.0
    %s3272 = scalar_lea.vmem [#allocation4], 348
    %v3273 = vld [vmem:[%s3272] sm:$0xf]
    %v3274 = vld [vmem:[%s3272 + $0x4] sm:$0xf]
    %v3275 = vld [vmem:[%s3272 + $0x8] sm:$0x7]
    %v3279 = vunpack.c.l.b16 %v3273
    %v3280 = vunpack.c.l.b16 %v3274
    %v3281 = vunpack.c.l.b16 %v3275
    %v3282 = vpack.c.b16 %v3280, %v3279
    %v3283 = vpack.c.b16 %v3281, %v3281
    %v3286 = vand.u32 %v3283, %v133
    %3288 = vmatprep.subr.bf16.mxu0 0
    %3289 = vmatpush1.bf16.msra.mxu0 %v3282
    %3290 = vmatprep.subr.bf16.mxu0 0
    %3291 = vmatpush1.bf16.msra.mxu0 %v3286
    %3292 = vmatprep.subr.bf16.mxu0 0
    %3293 = vmatpush1.bf16.msra.mxu0 0
    %3294 = vmatprep.subr.bf16.mxu0 0
    %3295 = vmatpush1.bf16.msra.mxu0 0
    %3296 = vmatprep.subr.bf16.mxu0 0
    %3297 = vmatpush1.bf16.msra.mxu0 0
    %3298 = vmatprep.subr.bf16.mxu0 0
    %3299 = vmatpush1.bf16.msra.mxu0 0
    %3300 = vmatprep.subr.bf16.mxu0 0
    %3301 = vmatpush1.bf16.msra.mxu0 0
    %3302 = vmatprep.subr.bf16.mxu0 0
    %3303 = vmatpush1.bf16.msra.mxu0 0
    %3304 = vmatprep.subr.bf16.mxu0 0
    %3305 = vmatpush1.bf16.msra.mxu0 0
    %3306 = vmatprep.subr.bf16.mxu0 0
    %3307 = vmatpush1.bf16.msra.mxu0 0
    %3308 = vmatprep.subr.bf16.mxu0 0
    %3309 = vmatpush1.bf16.msra.mxu0 0
    %3310 = vmatprep.subr.bf16.mxu0 0
    %3311 = vmatpush1.bf16.msra.mxu0 0
    %3312 = vmatprep.subr.bf16.mxu0 0
    %3313 = vmatpush1.bf16.msra.mxu0 0
    %3314 = vmatprep.subr.bf16.mxu0 0
    %3315 = vmatpush1.bf16.msra.mxu0 0
    %3316 = vmatprep.subr.bf16.mxu0 0
    %3317 = vmatpush1.bf16.msra.mxu0 0
    %3318 = vmatprep.subr.bf16.mxu0 0
    %3319 = vmatpush1.bf16.msra.mxu0 0
    %3320 = vmatprep.mubr.bf16.mxu0 0
    %3321 = vmatmul.mubr.bf16.gmra.mrb[0].mxu0 %v116
    %v3322 = vpop.f32.mrb[0].mxu0
    %v3323 = vadd.f32 0.0, %v3322
    %v3324 = vpop.f32.mrb[0].mxu0
    %v3325 = vpop.f32.mrb[0].mxu0
    %v3326 = vadd.f32 0.0, %v3325
    %v3327 = vpop.f32.mrb[0].mxu0
    %3328 = vmatprep.mubr.bf16.mxu0 0
    %3329 = vmatmul.mubr.bf16.gmra.mrb[0].mxu0 %v119
    %v3330 = vpop.f32.mrb[0].mxu0
    %v3331 = vadd.f32 0.0, %v3330
    %v3332 = vpop.f32.mrb[0].mxu0
    %v3333 = vpop.f32.mrb[0].mxu0
    %v3334 = vadd.f32 0.0, %v3333
    %v3335 = vpop.f32.mrb[0].mxu0
    %3336 = vmatprep.mubr.bf16.mxu0 0
    %3337 = vmatmul.mubr.bf16.gmra.mrb[0].mxu0 %v122
    %v3338 = vpop.f32.mrb[0].mxu0
    %v3339 = vadd.f32 0.0, %v3338
    %v3340 = vpop.f32.mrb[0].mxu0
    %v3341 = vpop.f32.mrb[0].mxu0
    %v3342 = vadd.f32 0.0, %v3341
    %v3343 = vpop.f32.mrb[0].mxu0
    %3344 = vmatprep.mubr.bf16.mxu0 0
    %3345 = vmatmul.mubr.bf16.gmra.mrb[0].mxu0 %v125
    %v3346 = vpop.f32.mrb[0].mxu0
    %v3347 = vadd.f32 0.0, %v3346
    %v3348 = vpop.f32.mrb[0].mxu0
    %v3349 = vpop.f32.mrb[0].mxu0
    %v3350 = vadd.f32 0.0, %v3349
    %v3351 = vpop.f32.mrb[0].mxu0
    %3352 = vmatprep.mubr.bf16.mxu0 0
    %3353 = vmatmul.mubr.bf16.gmra.mrb[0].mxu0 %v128
    %v3354 = vpop.f32.mrb[0].mxu0
    %v3355 = vadd.f32 0.0, %v3354
    %v3356 = vpop.f32.mrb[0].mxu0
    %v3357 = vpop.f32.mrb[0].mxu0
    %v3358 = vadd.f32 0.0, %v3357
    %v3359 = vpop.f32.mrb[0].mxu0
    %3360 = vdwg.mxu0
    %v3361 = vmax.f32 %v3323, 0.0
    %v3362 = vmax.f32 %v3326, 0.0
    %v3363 = vmax.f32 %v3331, 0.0
    %v3364 = vmax.f32 %v3334, 0.0
    %v3365 = vmax.f32 %v3339, 0.0
    %v3366 = vmax.f32 %v3342, 0.0
    %v3367 = vmax.f32 %v3347, 0.0
    %v3368 = vmax.f32 %v3350, 0.0
    %v3369 = vmax.f32 %v3355, 0.0
    %v3370 = vmax.f32 %v3358, 0.0
    %v3371 = vadd.f32 %v3262, %v3361
    %v3372 = vadd.f32 %v3263, %v3362
    %v3373 = vadd.f32 %v3264, %v3363
    %v3374 = vadd.f32 %v3265, %v3364
    %v3375 = vadd.f32 %v3266, %v3365
    %v3376 = vadd.f32 %v3267, %v3366
    %v3377 = vadd.f32 %v3268, %v3367
    %v3378 = vadd.f32 %v3269, %v3368
    %v3379 = vadd.f32 %v3270, %v3369
    %v3380 = vadd.f32 %v3271, %v3370
    %v3381 = vpack.c.bf16 %v3372, %v3371
    %v3382 = vpack.c.bf16 %v3374, %v3373
    %v3383 = vpack.c.bf16 %v3376, %v3375
    %v3384 = vpack.c.bf16 %v3378, %v3377
    %v3385 = vpack.c.bf16 %v3380, %v3379
    %3386 = vst [vmem:[#allocation2 + $0x230] sm:$0xff] %v3381
    %3387 = vst [vmem:[#allocation2 + $0x238] sm:$0xff] %v3382
    %3388 = vst [vmem:[#allocation2 + $0x240] sm:$0xff] %v3383
    %3389 = vst [vmem:[#allocation2 + $0x248] sm:$0xff] %v3384
    %3390 = vst [vmem:[#allocation2 + $0x250] sm:$0xff] %v3385
    %s3391 = scalar_lea.vmem [#allocation4], 360
    %v3392 = vld [vmem:[%s3391] sm:$0xf]
    %v3393 = vld [vmem:[%s3391 + $0x4] sm:$0xf]
    %v3394 = vld [vmem:[%s3391 + $0x8] sm:$0x7]
    %v3398 = vunpack.c.l.b16 %v3392
    %v3399 = vunpack.c.l.b16 %v3393
    %v3400 = vunpack.c.l.b16 %v3394
    %v3401 = vpack.c.b16 %v3399, %v3398
    %v3402 = vpack.c.b16 %v3400, %v3400
    %v3405 = vand.u32 %v3402, %v133
    %3407 = vmatprep.subr.bf16.mxu0 0
    %3408 = vmatpush1.bf16.msra.mxu0 %v3401
    %3409 = vmatprep.subr.bf16.mxu0 0
    %3410 = vmatpush1.bf16.msra.mxu0 %v3405
    %3411 = vmatprep.subr.bf16.mxu0 0
    %3412 = vmatpush1.bf16.msra.mxu0 0
    %3413 = vmatprep.subr.bf16.mxu0 0
    %3414 = vmatpush1.bf16.msra.mxu0 0
    %3415 = vmatprep.subr.bf16.mxu0 0
    %3416 = vmatpush1.bf16.msra.mxu0 0
    %3417 = vmatprep.subr.bf16.mxu0 0
    %3418 = vmatpush1.bf16.msra.mxu0 0
    %3419 = vmatprep.subr.bf16.mxu0 0
    %3420 = vmatpush1.bf16.msra.mxu0 0
    %3421 = vmatprep.subr.bf16.mxu0 0
    %3422 = vmatpush1.bf16.msra.mxu0 0
    %3423 = vmatprep.subr.bf16.mxu0 0
    %3424 = vmatpush1.bf16.msra.mxu0 0
    %3425 = vmatprep.subr.bf16.mxu0 0
    %3426 = vmatpush1.bf16.msra.mxu0 0
    %3427 = vmatprep.subr.bf16.mxu0 0
    %3428 = vmatpush1.bf16.msra.mxu0 0
    %3429 = vmatprep.subr.bf16.mxu0 0
    %3430 = vmatpush1.bf16.msra.mxu0 0
    %3431 = vmatprep.subr.bf16.mxu0 0
    %3432 = vmatpush1.bf16.msra.mxu0 0
    %3433 = vmatprep.subr.bf16.mxu0 0
    %3434 = vmatpush1.bf16.msra.mxu0 0
    %3435 = vmatprep.subr.bf16.mxu0 0
    %3436 = vmatpush1.bf16.msra.mxu0 0
    %3437 = vmatprep.subr.bf16.mxu0 0
    %3438 = vmatpush1.bf16.msra.mxu0 0
    %3439 = vmatprep.mubr.bf16.mxu0 0
    %3440 = vmatmul.mubr.bf16.gmra.mrb[0].mxu0 %v116
    %v3441 = vpop.f32.mrb[0].mxu0
    %v3442 = vadd.f32 0.0, %v3441
    %v3443 = vpop.f32.mrb[0].mxu0
    %v3444 = vpop.f32.mrb[0].mxu0
    %v3445 = vadd.f32 0.0, %v3444
    %v3446 = vpop.f32.mrb[0].mxu0
    %3447 = vmatprep.mubr.bf16.mxu0 0
    %3448 = vmatmul.mubr.bf16.gmra.mrb[0].mxu0 %v119
    %v3449 = vpop.f32.mrb[0].mxu0
    %v3450 = vadd.f32 0.0, %v3449
    %v3451 = vpop.f32.mrb[0].mxu0
    %v3452 = vpop.f32.mrb[0].mxu0
    %v3453 = vadd.f32 0.0, %v3452
    %v3454 = vpop.f32.mrb[0].mxu0
    %3455 = vmatprep.mubr.bf16.mxu0 0
    %3456 = vmatmul.mubr.bf16.gmra.mrb[0].mxu0 %v122
    %v3457 = vpop.f32.mrb[0].mxu0
    %v3458 = vadd.f32 0.0, %v3457
    %v3459 = vpop.f32.mrb[0].mxu0
    %v3460 = vpop.f32.mrb[0].mxu0
    %v3461 = vadd.f32 0.0, %v3460
    %v3462 = vpop.f32.mrb[0].mxu0
    %3463 = vmatprep.mubr.bf16.mxu0 0
    %3464 = vmatmul.mubr.bf16.gmra.mrb[0].mxu0 %v125
    %v3465 = vpop.f32.mrb[0].mxu0
    %v3466 = vadd.f32 0.0, %v3465
    %v3467 = vpop.f32.mrb[0].mxu0
    %v3468 = vpop.f32.mrb[0].mxu0
    %v3469 = vadd.f32 0.0, %v3468
    %v3470 = vpop.f32.mrb[0].mxu0
    %3471 = vmatprep.mubr.bf16.mxu0 0
    %3472 = vmatmul.mubr.bf16.gmra.mrb[0].mxu0 %v128
    %v3473 = vpop.f32.mrb[0].mxu0
    %v3474 = vadd.f32 0.0, %v3473
    %v3475 = vpop.f32.mrb[0].mxu0
    %v3476 = vpop.f32.mrb[0].mxu0
    %v3477 = vadd.f32 0.0, %v3476
    %v3478 = vpop.f32.mrb[0].mxu0
    %3479 = vdwg.mxu0
    %v3480 = vmax.f32 %v3442, 0.0
    %v3481 = vmax.f32 %v3445, 0.0
    %v3482 = vmax.f32 %v3450, 0.0
    %v3483 = vmax.f32 %v3453, 0.0
    %v3484 = vmax.f32 %v3458, 0.0
    %v3485 = vmax.f32 %v3461, 0.0
    %v3486 = vmax.f32 %v3466, 0.0
    %v3487 = vmax.f32 %v3469, 0.0
    %v3488 = vmax.f32 %v3474, 0.0
    %v3489 = vmax.f32 %v3477, 0.0
    %s3490 = scalar_lea.vmem [#allocation4], 372
    %v3491 = vld [vmem:[%s3490] sm:$0xf]
    %v3492 = vld [vmem:[%s3490 + $0x4] sm:$0xf]
    %v3493 = vld [vmem:[%s3490 + $0x8] sm:$0x7]
    %v3497 = vunpack.c.l.b16 %v3491
    %v3498 = vunpack.c.l.b16 %v3492
    %v3499 = vunpack.c.l.b16 %v3493
    %v3500 = vpack.c.b16 %v3498, %v3497
    %v3501 = vpack.c.b16 %v3499, %v3499
    %v3504 = vand.u32 %v3501, %v133
    %3506 = vmatprep.subr.bf16.mxu0 0
    %3507 = vmatpush1.bf16.msra.mxu0 %v3500
    %3508 = vmatprep.subr.bf16.mxu0 0
    %3509 = vmatpush1.bf16.msra.mxu0 %v3504
    %3510 = vmatprep.subr.bf16.mxu0 0
    %3511 = vmatpush1.bf16.msra.mxu0 0
    %3512 = vmatprep.subr.bf16.mxu0 0
    %3513 = vmatpush1.bf16.msra.mxu0 0
    %3514 = vmatprep.subr.bf16.mxu0 0
    %3515 = vmatpush1.bf16.msra.mxu0 0
    %3516 = vmatprep.subr.bf16.mxu0 0
    %3517 = vmatpush1.bf16.msra.mxu0 0
    %3518 = vmatprep.subr.bf16.mxu0 0
    %3519 = vmatpush1.bf16.msra.mxu0 0
    %3520 = vmatprep.subr.bf16.mxu0 0
    %3521 = vmatpush1.bf16.msra.mxu0 0
    %3522 = vmatprep.subr.bf16.mxu0 0
    %3523 = vmatpush1.bf16.msra.mxu0 0
    %3524 = vmatprep.subr.bf16.mxu0 0
    %3525 = vmatpush1.bf16.msra.mxu0 0
    %3526 = vmatprep.subr.bf16.mxu0 0
    %3527 = vmatpush1.bf16.msra.mxu0 0
    %3528 = vmatprep.subr.bf16.mxu0 0
    %3529 = vmatpush1.bf16.msra.mxu0 0
    %3530 = vmatprep.subr.bf16.mxu0 0
    %3531 = vmatpush1.bf16.msra.mxu0 0
    %3532 = vmatprep.subr.bf16.mxu0 0
    %3533 = vmatpush1.bf16.msra.mxu0 0
    %3534 = vmatprep.subr.bf16.mxu0 0
    %3535 = vmatpush1.bf16.msra.mxu0 0
    %3536 = vmatprep.subr.bf16.mxu0 0
    %3537 = vmatpush1.bf16.msra.mxu0 0
    %3538 = vmatprep.mubr.bf16.mxu0 0
    %3539 = vmatmul.mubr.bf16.gmra.mrb[0].mxu0 %v116
    %v3540 = vpop.f32.mrb[0].mxu0
    %v3541 = vadd.f32 0.0, %v3540
    %v3542 = vpop.f32.mrb[0].mxu0
    %v3543 = vpop.f32.mrb[0].mxu0
    %v3544 = vadd.f32 0.0, %v3543
    %v3545 = vpop.f32.mrb[0].mxu0
    %3546 = vmatprep.mubr.bf16.mxu0 0
    %3547 = vmatmul.mubr.bf16.gmra.mrb[0].mxu0 %v119
    %v3548 = vpop.f32.mrb[0].mxu0
    %v3549 = vadd.f32 0.0, %v3548
    %v3550 = vpop.f32.mrb[0].mxu0
    %v3551 = vpop.f32.mrb[0].mxu0
    %v3552 = vadd.f32 0.0, %v3551
    %v3553 = vpop.f32.mrb[0].mxu0
    %3554 = vmatprep.mubr.bf16.mxu0 0
    %3555 = vmatmul.mubr.bf16.gmra.mrb[0].mxu0 %v122
    %v3556 = vpop.f32.mrb[0].mxu0
    %v3557 = vadd.f32 0.0, %v3556
    %v3558 = vpop.f32.mrb[0].mxu0
    %v3559 = vpop.f32.mrb[0].mxu0
    %v3560 = vadd.f32 0.0, %v3559
    %v3561 = vpop.f32.mrb[0].mxu0
    %3562 = vmatprep.mubr.bf16.mxu0 0
    %3563 = vmatmul.mubr.bf16.gmra.mrb[0].mxu0 %v125
    %v3564 = vpop.f32.mrb[0].mxu0
    %v3565 = vadd.f32 0.0, %v3564
    %v3566 = vpop.f32.mrb[0].mxu0
    %v3567 = vpop.f32.mrb[0].mxu0
    %v3568 = vadd.f32 0.0, %v3567
    %v3569 = vpop.f32.mrb[0].mxu0
    %3570 = vmatprep.mubr.bf16.mxu0 0
    %3571 = vmatmul.mubr.bf16.gmra.mrb[0].mxu0 %v128
    %v3572 = vpop.f32.mrb[0].mxu0
    %v3573 = vadd.f32 0.0, %v3572
    %v3574 = vpop.f32.mrb[0].mxu0
    %v3575 = vpop.f32.mrb[0].mxu0
    %v3576 = vadd.f32 0.0, %v3575
    %v3577 = vpop.f32.mrb[0].mxu0
    %3578 = vdwg.mxu0
    %v3579 = vmax.f32 %v3541, 0.0
    %v3580 = vmax.f32 %v3544, 0.0
    %v3581 = vmax.f32 %v3549, 0.0
    %v3582 = vmax.f32 %v3552, 0.0
    %v3583 = vmax.f32 %v3557, 0.0
    %v3584 = vmax.f32 %v3560, 0.0
    %v3585 = vmax.f32 %v3565, 0.0
    %v3586 = vmax.f32 %v3568, 0.0
    %v3587 = vmax.f32 %v3573, 0.0
    %v3588 = vmax.f32 %v3576, 0.0
    %v3589 = vadd.f32 %v3480, %v3579
    %v3590 = vadd.f32 %v3481, %v3580
    %v3591 = vadd.f32 %v3482, %v3581
    %v3592 = vadd.f32 %v3483, %v3582
    %v3593 = vadd.f32 %v3484, %v3583
    %v3594 = vadd.f32 %v3485, %v3584
    %v3595 = vadd.f32 %v3486, %v3585
    %v3596 = vadd.f32 %v3487, %v3586
    %v3597 = vadd.f32 %v3488, %v3587
    %v3598 = vadd.f32 %v3489, %v3588
    %v3599 = vpack.c.bf16 %v3590, %v3589
    %v3600 = vpack.c.bf16 %v3592, %v3591
    %v3601 = vpack.c.bf16 %v3594, %v3593
    %v3602 = vpack.c.bf16 %v3596, %v3595
    %v3603 = vpack.c.bf16 %v3598, %v3597
    %3604 = vst [vmem:[#allocation2 + $0x258] sm:$0xff] %v3599
    %3605 = vst [vmem:[#allocation2 + $0x260] sm:$0xff] %v3600
    %3606 = vst [vmem:[#allocation2 + $0x268] sm:$0xff] %v3601
    %3607 = vst [vmem:[#allocation2 + $0x270] sm:$0xff] %v3602
    %3608 = vst [vmem:[#allocation2 + $0x278] sm:$0xff] %v3603
    %s3609 = scalar_lea.vmem [#allocation4], 384
    %v3610 = vld [vmem:[%s3609] sm:$0xf]
    %v3611 = vld [vmem:[%s3609 + $0x4] sm:$0xf]
    %v3612 = vld [vmem:[%s3609 + $0x8] sm:$0x7]
    %v3616 = vunpack.c.l.b16 %v3610
    %v3617 = vunpack.c.l.b16 %v3611
    %v3618 = vunpack.c.l.b16 %v3612
    %v3619 = vpack.c.b16 %v3617, %v3616
    %v3620 = vpack.c.b16 %v3618, %v3618
    %v3623 = vand.u32 %v3620, %v133
    %3625 = vmatprep.subr.bf16.mxu0 0
    %3626 = vmatpush1.bf16.msra.mxu0 %v3619
    %3627 = vmatprep.subr.bf16.mxu0 0
    %3628 = vmatpush1.bf16.msra.mxu0 %v3623
    %3629 = vmatprep.subr.bf16.mxu0 0
    %3630 = vmatpush1.bf16.msra.mxu0 0
    %3631 = vmatprep.subr.bf16.mxu0 0
    %3632 = vmatpush1.bf16.msra.mxu0 0
    %3633 = vmatprep.subr.bf16.mxu0 0
    %3634 = vmatpush1.bf16.msra.mxu0 0
    %3635 = vmatprep.subr.bf16.mxu0 0
    %3636 = vmatpush1.bf16.msra.mxu0 0
    %3637 = vmatprep.subr.bf16.mxu0 0
    %3638 = vmatpush1.bf16.msra.mxu0 0
    %3639 = vmatprep.subr.bf16.mxu0 0
    %3640 = vmatpush1.bf16.msra.mxu0 0
    %3641 = vmatprep.subr.bf16.mxu0 0
    %3642 = vmatpush1.bf16.msra.mxu0 0
    %3643 = vmatprep.subr.bf16.mxu0 0
    %3644 = vmatpush1.bf16.msra.mxu0 0
    %3645 = vmatprep.subr.bf16.mxu0 0
    %3646 = vmatpush1.bf16.msra.mxu0 0
    %3647 = vmatprep.subr.bf16.mxu0 0
    %3648 = vmatpush1.bf16.msra.mxu0 0
    %3649 = vmatprep.subr.bf16.mxu0 0
    %3650 = vmatpush1.bf16.msra.mxu0 0
    %3651 = vmatprep.subr.bf16.mxu0 0
    %3652 = vmatpush1.bf16.msra.mxu0 0
    %3653 = vmatprep.subr.bf16.mxu0 0
    %3654 = vmatpush1.bf16.msra.mxu0 0
    %3655 = vmatprep.subr.bf16.mxu0 0
    %3656 = vmatpush1.bf16.msra.mxu0 0
    %3657 = vmatprep.mubr.bf16.mxu0 0
    %3658 = vmatmul.mubr.bf16.gmra.mrb[0].mxu0 %v116
    %v3659 = vpop.f32.mrb[0].mxu0
    %v3660 = vadd.f32 0.0, %v3659
    %v3661 = vpop.f32.mrb[0].mxu0
    %v3662 = vpop.f32.mrb[0].mxu0
    %v3663 = vadd.f32 0.0, %v3662
    %v3664 = vpop.f32.mrb[0].mxu0
    %3665 = vmatprep.mubr.bf16.mxu0 0
    %3666 = vmatmul.mubr.bf16.gmra.mrb[0].mxu0 %v119
    %v3667 = vpop.f32.mrb[0].mxu0
    %v3668 = vadd.f32 0.0, %v3667
    %v3669 = vpop.f32.mrb[0].mxu0
    %v3670 = vpop.f32.mrb[0].mxu0
    %v3671 = vadd.f32 0.0, %v3670
    %v3672 = vpop.f32.mrb[0].mxu0
    %3673 = vmatprep.mubr.bf16.mxu0 0
    %3674 = vmatmul.mubr.bf16.gmra.mrb[0].mxu0 %v122
    %v3675 = vpop.f32.mrb[0].mxu0
    %v3676 = vadd.f32 0.0, %v3675
    %v3677 = vpop.f32.mrb[0].mxu0
    %v3678 = vpop.f32.mrb[0].mxu0
    %v3679 = vadd.f32 0.0, %v3678
    %v3680 = vpop.f32.mrb[0].mxu0
    %3681 = vmatprep.mubr.bf16.mxu0 0
    %3682 = vmatmul.mubr.bf16.gmra.mrb[0].mxu0 %v125
    %v3683 = vpop.f32.mrb[0].mxu0
    %v3684 = vadd.f32 0.0, %v3683
    %v3685 = vpop.f32.mrb[0].mxu0
    %v3686 = vpop.f32.mrb[0].mxu0
    %v3687 = vadd.f32 0.0, %v3686
    %v3688 = vpop.f32.mrb[0].mxu0
    %3689 = vmatprep.mubr.bf16.mxu0 0
    %3690 = vmatmul.mubr.bf16.gmra.mrb[0].mxu0 %v128
    %v3691 = vpop.f32.mrb[0].mxu0
    %v3692 = vadd.f32 0.0, %v3691
    %v3693 = vpop.f32.mrb[0].mxu0
    %v3694 = vpop.f32.mrb[0].mxu0
    %v3695 = vadd.f32 0.0, %v3694
    %v3696 = vpop.f32.mrb[0].mxu0
    %3697 = vdwg.mxu0
    %v3698 = vmax.f32 %v3660, 0.0
    %v3699 = vmax.f32 %v3663, 0.0
    %v3700 = vmax.f32 %v3668, 0.0
    %v3701 = vmax.f32 %v3671, 0.0
    %v3702 = vmax.f32 %v3676, 0.0
    %v3703 = vmax.f32 %v3679, 0.0
    %v3704 = vmax.f32 %v3684, 0.0
    %v3705 = vmax.f32 %v3687, 0.0
    %v3706 = vmax.f32 %v3692, 0.0
    %v3707 = vmax.f32 %v3695, 0.0
    %s3708 = scalar_lea.vmem [#allocation4], 396
    %v3709 = vld [vmem:[%s3708] sm:$0xf]
    %v3710 = vld [vmem:[%s3708 + $0x4] sm:$0xf]
    %v3711 = vld [vmem:[%s3708 + $0x8] sm:$0x7]
    %v3715 = vunpack.c.l.b16 %v3709
    %v3716 = vunpack.c.l.b16 %v3710
    %v3717 = vunpack.c.l.b16 %v3711
    %v3718 = vpack.c.b16 %v3716, %v3715
    %v3719 = vpack.c.b16 %v3717, %v3717
    %v3722 = vand.u32 %v3719, %v133
    %3724 = vmatprep.subr.bf16.mxu0 0
    %3725 = vmatpush1.bf16.msra.mxu0 %v3718
    %3726 = vmatprep.subr.bf16.mxu0 0
    %3727 = vmatpush1.bf16.msra.mxu0 %v3722
    %3728 = vmatprep.subr.bf16.mxu0 0
    %3729 = vmatpush1.bf16.msra.mxu0 0
    %3730 = vmatprep.subr.bf16.mxu0 0
    %3731 = vmatpush1.bf16.msra.mxu0 0
    %3732 = vmatprep.subr.bf16.mxu0 0
    %3733 = vmatpush1.bf16.msra.mxu0 0
    %3734 = vmatprep.subr.bf16.mxu0 0
    %3735 = vmatpush1.bf16.msra.mxu0 0
    %3736 = vmatprep.subr.bf16.mxu0 0
    %3737 = vmatpush1.bf16.msra.mxu0 0
    %3738 = vmatprep.subr.bf16.mxu0 0
    %3739 = vmatpush1.bf16.msra.mxu0 0
    %3740 = vmatprep.subr.bf16.mxu0 0
    %3741 = vmatpush1.bf16.msra.mxu0 0
    %3742 = vmatprep.subr.bf16.mxu0 0
    %3743 = vmatpush1.bf16.msra.mxu0 0
    %3744 = vmatprep.subr.bf16.mxu0 0
    %3745 = vmatpush1.bf16.msra.mxu0 0
    %3746 = vmatprep.subr.bf16.mxu0 0
    %3747 = vmatpush1.bf16.msra.mxu0 0
    %3748 = vmatprep.subr.bf16.mxu0 0
    %3749 = vmatpush1.bf16.msra.mxu0 0
    %3750 = vmatprep.subr.bf16.mxu0 0
    %3751 = vmatpush1.bf16.msra.mxu0 0
    %3752 = vmatprep.subr.bf16.mxu0 0
    %3753 = vmatpush1.bf16.msra.mxu0 0
    %3754 = vmatprep.subr.bf16.mxu0 0
    %3755 = vmatpush1.bf16.msra.mxu0 0
    %3756 = vmatprep.mubr.bf16.mxu0 0
    %3757 = vmatmul.mubr.bf16.gmra.mrb[0].mxu0 %v116
    %v3758 = vpop.f32.mrb[0].mxu0
    %v3759 = vadd.f32 0.0, %v3758
    %v3760 = vpop.f32.mrb[0].mxu0
    %v3761 = vpop.f32.mrb[0].mxu0
    %v3762 = vadd.f32 0.0, %v3761
    %v3763 = vpop.f32.mrb[0].mxu0
    %3764 = vmatprep.mubr.bf16.mxu0 0
    %3765 = vmatmul.mubr.bf16.gmra.mrb[0].mxu0 %v119
    %v3766 = vpop.f32.mrb[0].mxu0
    %v3767 = vadd.f32 0.0, %v3766
    %v3768 = vpop.f32.mrb[0].mxu0
    %v3769 = vpop.f32.mrb[0].mxu0
    %v3770 = vadd.f32 0.0, %v3769
    %v3771 = vpop.f32.mrb[0].mxu0
    %3772 = vmatprep.mubr.bf16.mxu0 0
    %3773 = vmatmul.mubr.bf16.gmra.mrb[0].mxu0 %v122
    %v3774 = vpop.f32.mrb[0].mxu0
    %v3775 = vadd.f32 0.0, %v3774
    %v3776 = vpop.f32.mrb[0].mxu0
    %v3777 = vpop.f32.mrb[0].mxu0
    %v3778 = vadd.f32 0.0, %v3777
    %v3779 = vpop.f32.mrb[0].mxu0
    %3780 = vmatprep.mubr.bf16.mxu0 0
    %3781 = vmatmul.mubr.bf16.gmra.mrb[0].mxu0 %v125
    %v3782 = vpop.f32.mrb[0].mxu0
    %v3783 = vadd.f32 0.0, %v3782
    %v3784 = vpop.f32.mrb[0].mxu0
    %v3785 = vpop.f32.mrb[0].mxu0
    %v3786 = vadd.f32 0.0, %v3785
    %v3787 = vpop.f32.mrb[0].mxu0
    %3788 = vmatprep.mubr.bf16.mxu0 0
    %3789 = vmatmul.mubr.bf16.gmra.mrb[0].mxu0 %v128
    %v3790 = vpop.f32.mrb[0].mxu0
    %v3791 = vadd.f32 0.0, %v3790
    %v3792 = vpop.f32.mrb[0].mxu0
    %v3793 = vpop.f32.mrb[0].mxu0
    %v3794 = vadd.f32 0.0, %v3793
    %v3795 = vpop.f32.mrb[0].mxu0
    %3796 = vdwg.mxu0
    %v3797 = vmax.f32 %v3759, 0.0
    %v3798 = vmax.f32 %v3762, 0.0
    %v3799 = vmax.f32 %v3767, 0.0
    %v3800 = vmax.f32 %v3770, 0.0
    %v3801 = vmax.f32 %v3775, 0.0
    %v3802 = vmax.f32 %v3778, 0.0
    %v3803 = vmax.f32 %v3783, 0.0
    %v3804 = vmax.f32 %v3786, 0.0
    %v3805 = vmax.f32 %v3791, 0.0
    %v3806 = vmax.f32 %v3794, 0.0
    %v3807 = vadd.f32 %v3698, %v3797
    %v3808 = vadd.f32 %v3699, %v3798
    %v3809 = vadd.f32 %v3700, %v3799
    %v3810 = vadd.f32 %v3701, %v3800
    %v3811 = vadd.f32 %v3702, %v3801
    %v3812 = vadd.f32 %v3703, %v3802
    %v3813 = vadd.f32 %v3704, %v3803
    %v3814 = vadd.f32 %v3705, %v3804
    %v3815 = vadd.f32 %v3706, %v3805
    %v3816 = vadd.f32 %v3707, %v3806
    %v3817 = vpack.c.bf16 %v3808, %v3807
    %v3818 = vpack.c.bf16 %v3810, %v3809
    %v3819 = vpack.c.bf16 %v3812, %v3811
    %v3820 = vpack.c.bf16 %v3814, %v3813
    %v3821 = vpack.c.bf16 %v3816, %v3815
    %3822 = vst [vmem:[#allocation2 + $0x280] sm:$0xff] %v3817
    %3823 = vst [vmem:[#allocation2 + $0x288] sm:$0xff] %v3818
    %3824 = vst [vmem:[#allocation2 + $0x290] sm:$0xff] %v3819
    %3825 = vst [vmem:[#allocation2 + $0x298] sm:$0xff] %v3820
    %3826 = vst [vmem:[#allocation2 + $0x2a0] sm:$0xff] %v3821
    %v3827 = vld [vmem:[#allocation7] sm:$0xff]
    %v3828 = vld [vmem:[#allocation7 + $0x8] sm:$0xff]
    %v3829 = vld [vmem:[#allocation7 + $0x10] sm:$0xff]
    %v3830 = vld [vmem:[#allocation7 + $0x18] sm:$0xff]
    %v3831 = vld [vmem:[#allocation7 + $0x20] sm:$0xff]
    %v3832 = vld [vmem:[#allocation7 + $0x28] sm:$0xf]
    %v3833 = vld [vmem:[#allocation7 + $0x2c] sm:$0xff]
    %v3834 = vld [vmem:[#allocation7 + $0x34] sm:$0xff]
    %v3835 = vld [vmem:[#allocation7 + $0x3c] sm:$0xff]
    %v3836 = vld [vmem:[#allocation7 + $0x44] sm:$0xff]
    %v3837 = vld [vmem:[#allocation7 + $0x4c] sm:$0xff]
    %v3838 = vld [vmem:[#allocation7 + $0x54] sm:$0xf]
    %v3839 = vld [vmem:[#allocation7 + $0x58] sm:$0xff]
    %v3840 = vld [vmem:[#allocation7 + $0x60] sm:$0xff]
    %v3841 = vld [vmem:[#allocation7 + $0x68] sm:$0xff]
    %v3842 = vld [vmem:[#allocation7 + $0x70] sm:$0xff]
    %v3843 = vld [vmem:[#allocation7 + $0x78] sm:$0xff]
    %v3844 = vld [vmem:[#allocation7 + $0x80] sm:$0xf]
    %v3845 = vld [vmem:[#allocation7 + $0x84] sm:$0xff]
    %v3846 = vld [vmem:[#allocation7 + $0x8c] sm:$0xff]
    %v3847 = vld [vmem:[#allocation7 + $0x94] sm:$0xff]
    %v3848 = vld [vmem:[#allocation7 + $0x9c] sm:$0xff]
    %v3849 = vld [vmem:[#allocation7 + $0xa4] sm:$0xff]
    %v3850 = vld [vmem:[#allocation7 + $0xac] sm:$0xf]
    %v3851 = vld [vmem:[#allocation7 + $0xb0] sm:$0xff]
    %v3852 = vld [vmem:[#allocation7 + $0xb8] sm:$0xff]
    %v3853 = vld [vmem:[#allocation7 + $0xc0] sm:$0xff]
    %v3854 = vld [vmem:[#allocation7 + $0xc8] sm:$0xff]
    %v3855 = vld [vmem:[#allocation7 + $0xd0] sm:$0xff]
    %v3856 = vld [vmem:[#allocation7 + $0xd8] sm:$0xf]
    %v3857 = vld [vmem:[#allocation7 + $0xdc] sm:$0xff]
    %v3858 = vld [vmem:[#allocation7 + $0xe4] sm:$0xff]
    %v3859 = vld [vmem:[#allocation7 + $0xec] sm:$0xff]
    %v3860 = vld [vmem:[#allocation7 + $0xf4] sm:$0xff]
    %v3861 = vld [vmem:[#allocation7 + $0xfc] sm:$0xff]
    %v3862 = vld [vmem:[#allocation7 + $0x104] sm:$0xf]
    %v3863 = vld [vmem:[#allocation7 + $0x108] sm:$0xff]
    %v3864 = vld [vmem:[#allocation7 + $0x110] sm:$0xff]
    %v3865 = vld [vmem:[#allocation7 + $0x118] sm:$0xff]
    %v3866 = vld [vmem:[#allocation7 + $0x120] sm:$0xff]
    %v3867 = vld [vmem:[#allocation7 + $0x128] sm:$0xff]
    %v3868 = vld [vmem:[#allocation7 + $0x130] sm:$0xf]
    %v3869 = vld [vmem:[#allocation7 + $0x134] sm:$0xff]
    %v3870 = vld [vmem:[#allocation7 + $0x13c] sm:$0xff]
    %v3871 = vld [vmem:[#allocation7 + $0x144] sm:$0xff]
    %v3872 = vld [vmem:[#allocation7 + $0x14c] sm:$0xff]
    %v3873 = vld [vmem:[#allocation7 + $0x154] sm:$0xff]
    %v3874 = vld [vmem:[#allocation7 + $0x15c] sm:$0xf]
    %v3875 = vld [vmem:[#allocation7 + $0x160] sm:$0xff]
    %v3876 = vld [vmem:[#allocation7 + $0x168] sm:$0xff]
    %v3877 = vld [vmem:[#allocation7 + $0x170] sm:$0xff]
    %v3878 = vld [vmem:[#allocation7 + $0x178] sm:$0xff]
    %v3879 = vld [vmem:[#allocation7 + $0x180] sm:$0xff]
    %v3880 = vld [vmem:[#allocation7 + $0x188] sm:$0xf]
    %v3881 = vld [vmem:[#allocation7 + $0x18c] sm:$0xff]
    %v3882 = vld [vmem:[#allocation7 + $0x194] sm:$0xff]
    %v3883 = vld [vmem:[#allocation7 + $0x19c] sm:$0xff]
    %v3884 = vld [vmem:[#allocation7 + $0x1a4] sm:$0xff]
    %v3885 = vld [vmem:[#allocation7 + $0x1ac] sm:$0xff]
    %v3886 = vld [vmem:[#allocation7 + $0x1b4] sm:$0xf]
    %v3887 = vld [vmem:[#allocation2] sm:$0xff]
    %v3888 = vld [vmem:[#allocation2 + $0x8] sm:$0xff]
    %v3889 = vld [vmem:[#allocation2 + $0x10] sm:$0xff]
    %v3890 = vld [vmem:[#allocation2 + $0x18] sm:$0xff]
    %v3891 = vld [vmem:[#allocation2 + $0x20] sm:$0xff]
    %v3892 = vld [vmem:[#allocation2 + $0x28] sm:$0xff]
    %v3893 = vld [vmem:[#allocation2 + $0x30] sm:$0xff]
    %v3894 = vld [vmem:[#allocation2 + $0x38] sm:$0xff]
    %v3895 = vld [vmem:[#allocation2 + $0x40] sm:$0xff]
    %v3896 = vld [vmem:[#allocation2 + $0x48] sm:$0xff]
    %v3897 = vld [vmem:[#allocation2 + $0x50] sm:$0xff]
    %v3898 = vld [vmem:[#allocation2 + $0x58] sm:$0xff]
    %v3899 = vld [vmem:[#allocation2 + $0x60] sm:$0xff]
    %v3900 = vld [vmem:[#allocation2 + $0x68] sm:$0xff]
    %v3901 = vld [vmem:[#allocation2 + $0x70] sm:$0xff]
    %v3902 = vld [vmem:[#allocation2 + $0x78] sm:$0xff]
    %v3903 = vld [vmem:[#allocation2 + $0x80] sm:$0xff]
    %v3904 = vld [vmem:[#allocation2 + $0x88] sm:$0xff]
    %v3905 = vld [vmem:[#allocation2 + $0x90] sm:$0xff]
    %v3906 = vld [vmem:[#allocation2 + $0x98] sm:$0xff]
    %v3907 = vld [vmem:[#allocation2 + $0xa0] sm:$0xff]
    %v3908 = vld [vmem:[#allocation2 + $0xa8] sm:$0xff]
    %v3909 = vld [vmem:[#allocation2 + $0xb0] sm:$0xff]
    %v3910 = vld [vmem:[#allocation2 + $0xb8] sm:$0xff]
    %v3911 = vld [vmem:[#allocation2 + $0xc0] sm:$0xff]
    %v3912 = vld [vmem:[#allocation2 + $0xc8] sm:$0xff]
    %v3913 = vld [vmem:[#allocation2 + $0xd0] sm:$0xff]
    %v3914 = vld [vmem:[#allocation2 + $0xd8] sm:$0xff]
    %v3915 = vld [vmem:[#allocation2 + $0xe0] sm:$0xff]
    %v3916 = vld [vmem:[#allocation2 + $0xe8] sm:$0xff]
    %v3917 = vld [vmem:[#allocation2 + $0xf0] sm:$0xff]
    %v3918 = vld [vmem:[#allocation2 + $0xf8] sm:$0xff]
    %v3919 = vld [vmem:[#allocation2 + $0x100] sm:$0xff]
    %v3920 = vld [vmem:[#allocation2 + $0x108] sm:$0xff]
    %v3921 = vld [vmem:[#allocation2 + $0x110] sm:$0xff]
    %v3922 = vld [vmem:[#allocation2 + $0x118] sm:$0xff]
    %v3923 = vld [vmem:[#allocation2 + $0x120] sm:$0xff]
    %v3924 = vld [vmem:[#allocation2 + $0x128] sm:$0xff]
    %v3925 = vld [vmem:[#allocation2 + $0x130] sm:$0xff]
    %v3926 = vld [vmem:[#allocation2 + $0x138] sm:$0xff]
    %v3927 = vld [vmem:[#allocation2 + $0x140] sm:$0xff]
    %v3928 = vld [vmem:[#allocation2 + $0x148] sm:$0xff]
    %v3929 = vld [vmem:[#allocation2 + $0x150] sm:$0xff]
    %v3930 = vld [vmem:[#allocation2 + $0x158] sm:$0xff]
    %v3931 = vld [vmem:[#allocation2 + $0x160] sm:$0xff]
    %v3932 = vld [vmem:[#allocation2 + $0x168] sm:$0xff]
    %v3933 = vld [vmem:[#allocation2 + $0x170] sm:$0xff]
    %v3934 = vld [vmem:[#allocation2 + $0x178] sm:$0xff]
    %v3935 = vld [vmem:[#allocation2 + $0x180] sm:$0xff]
    %v3936 = vld [vmem:[#allocation2 + $0x188] sm:$0xff]
    %v3937 = vld [vmem:[#allocation2 + $0x190] sm:$0xff]
    %v3938 = vld [vmem:[#allocation2 + $0x198] sm:$0xff]
    %v3939 = vld [vmem:[#allocation2 + $0x1a0] sm:$0xff]
    %v3940 = vld [vmem:[#allocation2 + $0x1a8] sm:$0xff]
    %v3941 = vld [vmem:[#allocation2 + $0x1b0] sm:$0xff]
    %v3942 = vld [vmem:[#allocation2 + $0x1b8] sm:$0xff]
    %v3943 = vld [vmem:[#allocation2 + $0x1c0] sm:$0xff]
    %v3944 = vld [vmem:[#allocation2 + $0x1c8] sm:$0xff]
    %v3945 = vld [vmem:[#allocation2 + $0x1d0] sm:$0xff]
    %v3946 = vld [vmem:[#allocation2 + $0x1d8] sm:$0xff]
    %v3947 = vld [vmem:[#allocation2 + $0x1e0] sm:$0xff]
    %v3948 = vld [vmem:[#allocation2 + $0x1e8] sm:$0xff]
    %v3949 = vld [vmem:[#allocation2 + $0x1f0] sm:$0xff]
    %v3950 = vld [vmem:[#allocation2 + $0x1f8] sm:$0xff]
    %v3951 = vld [vmem:[#allocation2 + $0x200] sm:$0xff]
    %v3952 = vld [vmem:[#allocation2 + $0x208] sm:$0xff]
    %v3953 = vld [vmem:[#allocation2 + $0x210] sm:$0xff]
    %v3954 = vld [vmem:[#allocation2 + $0x218] sm:$0xff]
    %v3955 = vld [vmem:[#allocation2 + $0x220] sm:$0xff]
    %v3956 = vld [vmem:[#allocation2 + $0x228] sm:$0xff]
    %v3957 = vld [vmem:[#allocation2 + $0x230] sm:$0xff]
    %v3958 = vld [vmem:[#allocation2 + $0x238] sm:$0xff]
    %v3959 = vld [vmem:[#allocation2 + $0x240] sm:$0xff]
    %v3960 = vld [vmem:[#allocation2 + $0x248] sm:$0xff]
    %v3961 = vld [vmem:[#allocation2 + $0x250] sm:$0xff]
    %v3962 = vld [vmem:[#allocation2 + $0x258] sm:$0xff]
    %v3963 = vld [vmem:[#allocation2 + $0x260] sm:$0xff]
    %v3964 = vld [vmem:[#allocation2 + $0x268] sm:$0xff]
    %v3965 = vld [vmem:[#allocation2 + $0x270] sm:$0xff]
    %v3966 = vld [vmem:[#allocation2 + $0x278] sm:$0xff]
    %v3967 = vld [vmem:[#allocation2 + $0x280] sm:$0xff]
    %v3968 = vld [vmem:[#allocation2 + $0x288] sm:$0xff]
    %v3969 = vld [vmem:[#allocation2 + $0x290] sm:$0xff]
    %v3970 = vld [vmem:[#allocation2 + $0x298] sm:$0xff]
    %v3971 = vld [vmem:[#allocation2 + $0x2a0] sm:$0xff]
    %v3972 = vld [vmem:[%s3] sm:$0xff]
    %v3973 = vld [vmem:[%s3 + $0x8] sm:$0xff]
    %v3974 = vld [vmem:[%s3 + $0x10] sm:$0xff]
    %v3975 = vld [vmem:[%s3 + $0x18] sm:$0xff]
    %v3976 = vld [vmem:[%s3 + $0x20] sm:$0xff]
    %v3977 = vld [vmem:[%s3 + $0x28] sm:$0xff]
    %v3978 = vld [vmem:[%s3 + $0x30] sm:$0xff]
    %v3979 = vld [vmem:[%s3 + $0x38] sm:$0xff]
    %v3980 = vld [vmem:[%s3 + $0x40] sm:$0xff]
    %v3981 = vld [vmem:[%s3 + $0x48] sm:$0xff]
    %3983 = vset.pattern.permute.xlu0 0
    %3984 = vperm.xlu0 %3983, %v3972
    %v3985 = vpop.permute.xlu0 %3984
    %3988 = vset.pattern.permute.xlu0 0
    %3989 = vperm.xlu0 %3988, %v3973
    %v3990 = vpop.permute.xlu0 %3989
    %3993 = vset.pattern.permute.xlu0 0
    %3994 = vperm.xlu0 %3993, %v3974
    %v3995 = vpop.permute.xlu0 %3994
    %3998 = vset.pattern.permute.xlu0 0
    %3999 = vperm.xlu0 %3998, %v3975
    %v4000 = vpop.permute.xlu0 %3999
    %4003 = vset.pattern.permute.xlu0 0
    %4004 = vperm.xlu0 %4003, %v3976
    %v4005 = vpop.permute.xlu0 %4004
    %4008 = vset.pattern.permute.xlu0 0
    %4009 = vperm.xlu0 %4008, %v3977
    %v4010 = vpop.permute.xlu0 %4009
    %4013 = vset.pattern.permute.xlu0 0
    %4014 = vperm.xlu0 %4013, %v3978
    %v4015 = vpop.permute.xlu0 %4014
    %4018 = vset.pattern.permute.xlu0 0
    %4019 = vperm.xlu0 %4018, %v3979
    %v4020 = vpop.permute.xlu0 %4019
    %4023 = vset.pattern.permute.xlu0 0
    %4024 = vperm.xlu0 %4023, %v3980
    %v4025 = vpop.permute.xlu0 %4024
    %4028 = vset.pattern.permute.xlu0 0
    %4029 = vperm.xlu0 %4028, %v3981
    %v4030 = vpop.permute.xlu0 %4029
    %v4092 = vunpack.c.l.b16 %v3827
    %v4093 = vunpack.c.h.b16 %v3827
    %v4094 = vunpack.c.l.b16 %v3828
    %v4095 = vunpack.c.h.b16 %v3828
    %v4096 = vunpack.c.l.b16 %v3829
    %v4097 = vunpack.c.h.b16 %v3829
    %v4098 = vunpack.c.l.b16 %v3830
    %v4099 = vunpack.c.h.b16 %v3830
    %v4100 = vunpack.c.l.b16 %v3831
    %v4101 = vunpack.c.h.b16 %v3831
    %v4102 = vunpack.c.l.b16 %v3832
    %v4103 = vunpack.c.l.b16 %v3833
    %v4104 = vunpack.c.h.b16 %v3833
    %v4105 = vunpack.c.l.b16 %v3834
    %v4106 = vunpack.c.h.b16 %v3834
    %v4107 = vunpack.c.l.b16 %v3835
    %v4108 = vunpack.c.h.b16 %v3835
    %v4109 = vunpack.c.l.b16 %v3836
    %v4110 = vunpack.c.h.b16 %v3836
    %v4111 = vunpack.c.l.b16 %v3837
    %v4112 = vunpack.c.h.b16 %v3837
    %v4113 = vunpack.c.l.b16 %v3838
    %v4114 = vunpack.c.l.b16 %v3839
    %v4115 = vunpack.c.h.b16 %v3839
    %v4116 = vunpack.c.l.b16 %v3840
    %v4117 = vunpack.c.h.b16 %v3840
    %v4118 = vunpack.c.l.b16 %v3841
    %v4119 = vunpack.c.h.b16 %v3841
    %v4120 = vunpack.c.l.b16 %v3842
    %v4121 = vunpack.c.h.b16 %v3842
    %v4122 = vunpack.c.l.b16 %v3843
    %v4123 = vunpack.c.h.b16 %v3843
    %v4124 = vunpack.c.l.b16 %v3844
    %v4125 = vunpack.c.l.b16 %v3845
    %v4126 = vunpack.c.h.b16 %v3845
    %v4127 = vunpack.c.l.b16 %v3846
    %v4128 = vunpack.c.h.b16 %v3846
    %v4129 = vunpack.c.l.b16 %v3847
    %v4130 = vunpack.c.h.b16 %v3847
    %v4131 = vunpack.c.l.b16 %v3848
    %v4132 = vunpack.c.h.b16 %v3848
    %v4133 = vunpack.c.l.b16 %v3849
    %v4134 = vunpack.c.h.b16 %v3849
    %v4135 = vunpack.c.l.b16 %v3850
    %v4136 = vunpack.c.l.b16 %v3851
    %v4137 = vunpack.c.h.b16 %v3851
    %v4138 = vunpack.c.l.b16 %v3852
    %v4139 = vunpack.c.h.b16 %v3852
    %v4140 = vunpack.c.l.b16 %v3853
    %v4141 = vunpack.c.h.b16 %v3853
    %v4142 = vunpack.c.l.b16 %v3854
    %v4143 = vunpack.c.h.b16 %v3854
    %v4144 = vunpack.c.l.b16 %v3855
    %v4145 = vunpack.c.h.b16 %v3855
    %v4146 = vunpack.c.l.b16 %v3856
    %v4147 = vunpack.c.l.b16 %v3857
    %v4148 = vunpack.c.h.b16 %v3857
    %v4149 = vunpack.c.l.b16 %v3858
    %v4150 = vunpack.c.h.b16 %v3858
    %v4151 = vunpack.c.l.b16 %v3859
    %v4152 = vunpack.c.h.b16 %v3859
    %v4153 = vunpack.c.l.b16 %v3860
    %v4154 = vunpack.c.h.b16 %v3860
    %v4155 = vunpack.c.l.b16 %v3861
    %v4156 = vunpack.c.h.b16 %v3861
    %v4157 = vunpack.c.l.b16 %v3862
    %v4158 = vunpack.c.l.b16 %v3863
    %v4159 = vunpack.c.h.b16 %v3863
    %v4160 = vunpack.c.l.b16 %v3864
    %v4161 = vunpack.c.h.b16 %v3864
    %v4162 = vunpack.c.l.b16 %v3865
    %v4163 = vunpack.c.h.b16 %v3865
    %v4164 = vunpack.c.l.b16 %v3866
    %v4165 = vunpack.c.h.b16 %v3866
    %v4166 = vunpack.c.l.b16 %v3867
    %v4167 = vunpack.c.h.b16 %v3867
    %v4168 = vunpack.c.l.b16 %v3868
    %v4169 = vunpack.c.l.b16 %v3869
    %v4170 = vunpack.c.h.b16 %v3869
    %v4171 = vunpack.c.l.b16 %v3870
    %v4172 = vunpack.c.h.b16 %v3870
    %v4173 = vunpack.c.l.b16 %v3871
    %v4174 = vunpack.c.h.b16 %v3871
    %v4175 = vunpack.c.l.b16 %v3872
    %v4176 = vunpack.c.h.b16 %v3872
    %v4177 = vunpack.c.l.b16 %v3873
    %v4178 = vunpack.c.h.b16 %v3873
    %v4179 = vunpack.c.l.b16 %v3874
    %v4180 = vunpack.c.l.b16 %v3875
    %v4181 = vunpack.c.h.b16 %v3875
    %v4182 = vunpack.c.l.b16 %v3876
    %v4183 = vunpack.c.h.b16 %v3876
    %v4184 = vunpack.c.l.b16 %v3877
    %v4185 = vunpack.c.h.b16 %v3877
    %v4186 = vunpack.c.l.b16 %v3878
    %v4187 = vunpack.c.h.b16 %v3878
    %v4188 = vunpack.c.l.b16 %v3879
    %v4189 = vunpack.c.h.b16 %v3879
    %v4190 = vunpack.c.l.b16 %v3880
    %v4191 = vunpack.c.l.b16 %v3881
    %v4192 = vunpack.c.h.b16 %v3881
    %v4193 = vunpack.c.l.b16 %v3882
    %v4194 = vunpack.c.h.b16 %v3882
    %v4195 = vunpack.c.l.b16 %v3883
    %v4196 = vunpack.c.h.b16 %v3883
    %v4197 = vunpack.c.l.b16 %v3884
    %v4198 = vunpack.c.h.b16 %v3884
    %v4199 = vunpack.c.l.b16 %v3885
    %v4200 = vunpack.c.h.b16 %v3885
    %v4201 = vunpack.c.l.b16 %v3886
    %v4202 = vpack.c.b16 %v4103, %v4092
    %v4203 = vpack.c.b16 %v4104, %v4093
    %v4204 = vpack.c.b16 %v4105, %v4094
    %v4205 = vpack.c.b16 %v4106, %v4095
    %v4206 = vpack.c.b16 %v4107, %v4096
    %v4207 = vpack.c.b16 %v4108, %v4097
    %v4208 = vpack.c.b16 %v4109, %v4098
    %v4209 = vpack.c.b16 %v4110, %v4099
    %v4210 = vpack.c.b16 %v4111, %v4100
    %v4211 = vpack.c.b16 %v4112, %v4101
    %v4212 = vpack.c.b16 %v4113, %v4102
    %v4213 = vpack.c.b16 %v4125, %v4114
    %v4214 = vpack.c.b16 %v4126, %v4115
    %v4215 = vpack.c.b16 %v4127, %v4116
    %v4216 = vpack.c.b16 %v4128, %v4117
    %v4217 = vpack.c.b16 %v4129, %v4118
    %v4218 = vpack.c.b16 %v4130, %v4119
    %v4219 = vpack.c.b16 %v4131, %v4120
    %v4220 = vpack.c.b16 %v4132, %v4121
    %v4221 = vpack.c.b16 %v4133, %v4122
    %v4222 = vpack.c.b16 %v4134, %v4123
    %v4223 = vpack.c.b16 %v4135, %v4124
    %v4224 = vpack.c.b16 %v4147, %v4136
    %v4225 = vpack.c.b16 %v4148, %v4137
    %v4226 = vpack.c.b16 %v4149, %v4138
    %v4227 = vpack.c.b16 %v4150, %v4139
    %v4228 = vpack.c.b16 %v4151, %v4140
    %v4229 = vpack.c.b16 %v4152, %v4141
    %v4230 = vpack.c.b16 %v4153, %v4142
    %v4231 = vpack.c.b16 %v4154, %v4143
    %v4232 = vpack.c.b16 %v4155, %v4144
    %v4233 = vpack.c.b16 %v4156, %v4145
    %v4234 = vpack.c.b16 %v4157, %v4146
    %v4235 = vpack.c.b16 %v4169, %v4158
    %v4236 = vpack.c.b16 %v4170, %v4159
    %v4237 = vpack.c.b16 %v4171, %v4160
    %v4238 = vpack.c.b16 %v4172, %v4161
    %v4239 = vpack.c.b16 %v4173, %v4162
    %v4240 = vpack.c.b16 %v4174, %v4163
    %v4241 = vpack.c.b16 %v4175, %v4164
    %v4242 = vpack.c.b16 %v4176, %v4165
    %v4243 = vpack.c.b16 %v4177, %v4166
    %v4244 = vpack.c.b16 %v4178, %v4167
    %v4245 = vpack.c.b16 %v4179, %v4168
    %v4246 = vpack.c.b16 %v4191, %v4180
    %v4247 = vpack.c.b16 %v4192, %v4181
    %v4248 = vpack.c.b16 %v4193, %v4182
    %v4249 = vpack.c.b16 %v4194, %v4183
    %v4250 = vpack.c.b16 %v4195, %v4184
    %v4251 = vpack.c.b16 %v4196, %v4185
    %v4252 = vpack.c.b16 %v4197, %v4186
    %v4253 = vpack.c.b16 %v4198, %v4187
    %v4254 = vpack.c.b16 %v4199, %v4188
    %v4255 = vpack.c.b16 %v4200, %v4189
    %v4256 = vpack.c.b16 %v4201, %v4190
    %vm4307 = vcmask 654336
    %v4309 = vsel %vm4307, %v4212, 0
    %v4312 = vsel %vm4307, %v4223, 0
    %v4315 = vsel %vm4307, %v4234, 0
    %v4318 = vsel %vm4307, %v4245, 0
    %v4321 = vsel %vm4307, %v4256, 0
    %4323 = vmatprep.subr.bf16.mxu0 0
    %4324 = vmatpush1.bf16.msra.mxu0 %v3887
    %4325 = vmatprep.subr.bf16.mxu0 0
    %4326 = vmatpush1.bf16.msra.mxu0 %v3888
    %4327 = vmatprep.subr.bf16.mxu0 0
    %4328 = vmatpush1.bf16.msra.mxu0 %v3889
    %4329 = vmatprep.subr.bf16.mxu0 0
    %4330 = vmatpush1.bf16.msra.mxu0 %v3890
    %4331 = vmatprep.subr.bf16.mxu0 0
    %4332 = vmatpush1.bf16.msra.mxu0 %v3891
    %4333 = vmatprep.subr.bf16.mxu0 0
    %4334 = vmatpush1.bf16.msra.mxu0 %v3892
    %4335 = vmatprep.subr.bf16.mxu0 0
    %4336 = vmatpush1.bf16.msra.mxu0 %v3893
    %4337 = vmatprep.subr.bf16.mxu0 0
    %4338 = vmatpush1.bf16.msra.mxu0 %v3894
    %4339 = vmatprep.subr.bf16.mxu0 0
    %4340 = vmatpush1.bf16.msra.mxu0 %v3895
    %4341 = vmatprep.subr.bf16.mxu0 0
    %4342 = vmatpush1.bf16.msra.mxu0 %v3896
    %4343 = vmatprep.subr.bf16.mxu0 0
    %4344 = vmatpush1.bf16.msra.mxu0 %v3897
    %4345 = vmatprep.subr.bf16.mxu0 0
    %4346 = vmatpush1.bf16.msra.mxu0 %v3898
    %4347 = vmatprep.subr.bf16.mxu0 0
    %4348 = vmatpush1.bf16.msra.mxu0 %v3899
    %4349 = vmatprep.subr.bf16.mxu0 0
    %4350 = vmatpush1.bf16.msra.mxu0 %v3900
    %4351 = vmatprep.subr.bf16.mxu0 0
    %4352 = vmatpush1.bf16.msra.mxu0 %v3901
    %4353 = vmatprep.subr.bf16.mxu0 0
    %4354 = vmatpush1.bf16.msra.mxu0 %v3902
    %4355 = vmatprep.mubr.bf16.mxu0 %v4203
    %4356 = vmatmul.mubr.bf16.gmra.mrb[0].mxu0 %v4202
    %v4357 = vpop.f32.mrb[0].mxu0
    %v4358 = vadd.f32 %v3985, %v4357
    %v4359 = vpop.f32.mrb[0].mxu0
    %v4360 = vpop.f32.mrb[0].mxu0
    %v4361 = vadd.f32 %v3990, %v4360
    %v4362 = vpop.f32.mrb[0].mxu0
    %4363 = vmatprep.mubr.bf16.mxu0 %v4214
    %4364 = vmatmul.mubr.bf16.gmra.mrb[0].mxu0 %v4213
    %v4365 = vpop.f32.mrb[0].mxu0
    %v4366 = vadd.f32 %v3995, %v4365
    %v4367 = vpop.f32.mrb[0].mxu0
    %v4368 = vpop.f32.mrb[0].mxu0
    %v4369 = vadd.f32 %v4000, %v4368
    %v4370 = vpop.f32.mrb[0].mxu0
    %4371 = vmatprep.mubr.bf16.mxu0 %v4225
    %4372 = vmatmul.mubr.bf16.gmra.mrb[0].mxu0 %v4224
    %v4373 = vpop.f32.mrb[0].mxu0
    %v4374 = vadd.f32 %v4005, %v4373
    %v4375 = vpop.f32.mrb[0].mxu0
    %v4376 = vpop.f32.mrb[0].mxu0
    %v4377 = vadd.f32 %v4010, %v4376
    %v4378 = vpop.f32.mrb[0].mxu0
    %4379 = vmatprep.mubr.bf16.mxu0 %v4236
    %4380 = vmatmul.mubr.bf16.gmra.mrb[0].mxu0 %v4235
    %v4381 = vpop.f32.mrb[0].mxu0
    %v4382 = vadd.f32 %v4015, %v4381
    %v4383 = vpop.f32.mrb[0].mxu0
    %v4384 = vpop.f32.mrb[0].mxu0
    %v4385 = vadd.f32 %v4020, %v4384
    %v4386 = vpop.f32.mrb[0].mxu0
    %4387 = vmatprep.mubr.bf16.mxu0 %v4247
    %4388 = vmatmul.mubr.bf16.gmra.mrb[0].mxu0 %v4246
    %v4389 = vpop.f32.mrb[0].mxu0
    %v4390 = vadd.f32 %v4025, %v4389
    %v4391 = vpop.f32.mrb[0].mxu0
    %v4392 = vpop.f32.mrb[0].mxu0
    %v4393 = vadd.f32 %v4030, %v4392
    %v4394 = vpop.f32.mrb[0].mxu0
    %4395 = vdwg.mxu0
    %4396 = vmatprep.subr.bf16.mxu0 0
    %4397 = vmatpush1.bf16.msra.mxu0 %v3903
    %4398 = vmatprep.subr.bf16.mxu0 0
    %4399 = vmatpush1.bf16.msra.mxu0 %v3904
    %4400 = vmatprep.subr.bf16.mxu0 0
    %4401 = vmatpush1.bf16.msra.mxu0 %v3905
    %4402 = vmatprep.subr.bf16.mxu0 0
    %4403 = vmatpush1.bf16.msra.mxu0 %v3906
    %4404 = vmatprep.subr.bf16.mxu0 0
    %4405 = vmatpush1.bf16.msra.mxu0 %v3907
    %4406 = vmatprep.subr.bf16.mxu0 0
    %4407 = vmatpush1.bf16.msra.mxu0 %v3908
    %4408 = vmatprep.subr.bf16.mxu0 0
    %4409 = vmatpush1.bf16.msra.mxu0 %v3909
    %4410 = vmatprep.subr.bf16.mxu0 0
    %4411 = vmatpush1.bf16.msra.mxu0 %v3910
    %4412 = vmatprep.subr.bf16.mxu0 0
    %4413 = vmatpush1.bf16.msra.mxu0 %v3911
    %4414 = vmatprep.subr.bf16.mxu0 0
    %4415 = vmatpush1.bf16.msra.mxu0 %v3912
    %4416 = vmatprep.subr.bf16.mxu0 0
    %4417 = vmatpush1.bf16.msra.mxu0 %v3913
    %4418 = vmatprep.subr.bf16.mxu0 0
    %4419 = vmatpush1.bf16.msra.mxu0 %v3914
    %4420 = vmatprep.subr.bf16.mxu0 0
    %4421 = vmatpush1.bf16.msra.mxu0 %v3915
    %4422 = vmatprep.subr.bf16.mxu0 0
    %4423 = vmatpush1.bf16.msra.mxu0 %v3916
    %4424 = vmatprep.subr.bf16.mxu0 0
    %4425 = vmatpush1.bf16.msra.mxu0 %v3917
    %4426 = vmatprep.subr.bf16.mxu0 0
    %4427 = vmatpush1.bf16.msra.mxu0 %v3918
    %4428 = vmatprep.mubr.bf16.mxu0 %v4205
    %4429 = vmatmul.mubr.bf16.gmra.mrb[0].mxu0 %v4204
    %v4430 = vpop.f32.mrb[0].mxu0
    %v4431 = vadd.f32 %v4358, %v4430
    %v4432 = vpop.f32.mrb[0].mxu0
    %v4433 = vpop.f32.mrb[0].mxu0
    %v4434 = vadd.f32 %v4361, %v4433
    %v4435 = vpop.f32.mrb[0].mxu0
    %4436 = vmatprep.mubr.bf16.mxu0 %v4216
    %4437 = vmatmul.mubr.bf16.gmra.mrb[0].mxu0 %v4215
    %v4438 = vpop.f32.mrb[0].mxu0
    %v4439 = vadd.f32 %v4366, %v4438
    %v4440 = vpop.f32.mrb[0].mxu0
    %v4441 = vpop.f32.mrb[0].mxu0
    %v4442 = vadd.f32 %v4369, %v4441
    %v4443 = vpop.f32.mrb[0].mxu0
    %4444 = vmatprep.mubr.bf16.mxu0 %v4227
    %4445 = vmatmul.mubr.bf16.gmra.mrb[0].mxu0 %v4226
    %v4446 = vpop.f32.mrb[0].mxu0
    %v4447 = vadd.f32 %v4374, %v4446
    %v4448 = vpop.f32.mrb[0].mxu0
    %v4449 = vpop.f32.mrb[0].mxu0
    %v4450 = vadd.f32 %v4377, %v4449
    %v4451 = vpop.f32.mrb[0].mxu0
    %4452 = vmatprep.mubr.bf16.mxu0 %v4238
    %4453 = vmatmul.mubr.bf16.gmra.mrb[0].mxu0 %v4237
    %v4454 = vpop.f32.mrb[0].mxu0
    %v4455 = vadd.f32 %v4382, %v4454
    %v4456 = vpop.f32.mrb[0].mxu0
    %v4457 = vpop.f32.mrb[0].mxu0
    %v4458 = vadd.f32 %v4385, %v4457
    %v4459 = vpop.f32.mrb[0].mxu0
    %4460 = vmatprep.mubr.bf16.mxu0 %v4249
    %4461 = vmatmul.mubr.bf16.gmra.mrb[0].mxu0 %v4248
    %v4462 = vpop.f32.mrb[0].mxu0
    %v4463 = vadd.f32 %v4390, %v4462
    %v4464 = vpop.f32.mrb[0].mxu0
    %v4465 = vpop.f32.mrb[0].mxu0
    %v4466 = vadd.f32 %v4393, %v4465
    %v4467 = vpop.f32.mrb[0].mxu0
    %4468 = vdwg.mxu0
    %4469 = vmatprep.subr.bf16.mxu0 0
    %4470 = vmatpush1.bf16.msra.mxu0 %v3919
    %4471 = vmatprep.subr.bf16.mxu0 0
    %4472 = vmatpush1.bf16.msra.mxu0 %v3920
    %4473 = vmatprep.subr.bf16.mxu0 0
    %4474 = vmatpush1.bf16.msra.mxu0 %v3921
    %4475 = vmatprep.subr.bf16.mxu0 0
    %4476 = vmatpush1.bf16.msra.mxu0 %v3922
    %4477 = vmatprep.subr.bf16.mxu0 0
    %4478 = vmatpush1.bf16.msra.mxu0 %v3923
    %4479 = vmatprep.subr.bf16.mxu0 0
    %4480 = vmatpush1.bf16.msra.mxu0 %v3924
    %4481 = vmatprep.subr.bf16.mxu0 0
    %4482 = vmatpush1.bf16.msra.mxu0 %v3925
    %4483 = vmatprep.subr.bf16.mxu0 0
    %4484 = vmatpush1.bf16.msra.mxu0 %v3926
    %4485 = vmatprep.subr.bf16.mxu0 0
    %4486 = vmatpush1.bf16.msra.mxu0 %v3927
    %4487 = vmatprep.subr.bf16.mxu0 0
    %4488 = vmatpush1.bf16.msra.mxu0 %v3928
    %4489 = vmatprep.subr.bf16.mxu0 0
    %4490 = vmatpush1.bf16.msra.mxu0 %v3929
    %4491 = vmatprep.subr.bf16.mxu0 0
    %4492 = vmatpush1.bf16.msra.mxu0 %v3930
    %4493 = vmatprep.subr.bf16.mxu0 0
    %4494 = vmatpush1.bf16.msra.mxu0 %v3931
    %4495 = vmatprep.subr.bf16.mxu0 0
    %4496 = vmatpush1.bf16.msra.mxu0 %v3932
    %4497 = vmatprep.subr.bf16.mxu0 0
    %4498 = vmatpush1.bf16.msra.mxu0 %v3933
    %4499 = vmatprep.subr.bf16.mxu0 0
    %4500 = vmatpush1.bf16.msra.mxu0 %v3934
    %4501 = vmatprep.mubr.bf16.mxu0 %v4207
    %4502 = vmatmul.mubr.bf16.gmra.mrb[0].mxu0 %v4206
    %v4503 = vpop.f32.mrb[0].mxu0
    %v4504 = vadd.f32 %v4431, %v4503
    %v4505 = vpop.f32.mrb[0].mxu0
    %v4506 = vpop.f32.mrb[0].mxu0
    %v4507 = vadd.f32 %v4434, %v4506
    %v4508 = vpop.f32.mrb[0].mxu0
    %4509 = vmatprep.mubr.bf16.mxu0 %v4218
    %4510 = vmatmul.mubr.bf16.gmra.mrb[0].mxu0 %v4217
    %v4511 = vpop.f32.mrb[0].mxu0
    %v4512 = vadd.f32 %v4439, %v4511
    %v4513 = vpop.f32.mrb[0].mxu0
    %v4514 = vpop.f32.mrb[0].mxu0
    %v4515 = vadd.f32 %v4442, %v4514
    %v4516 = vpop.f32.mrb[0].mxu0
    %4517 = vmatprep.mubr.bf16.mxu0 %v4229
    %4518 = vmatmul.mubr.bf16.gmra.mrb[0].mxu0 %v4228
    %v4519 = vpop.f32.mrb[0].mxu0
    %v4520 = vadd.f32 %v4447, %v4519
    %v4521 = vpop.f32.mrb[0].mxu0
    %v4522 = vpop.f32.mrb[0].mxu0
    %v4523 = vadd.f32 %v4450, %v4522
    %v4524 = vpop.f32.mrb[0].mxu0
    %4525 = vmatprep.mubr.bf16.mxu0 %v4240
    %4526 = vmatmul.mubr.bf16.gmra.mrb[0].mxu0 %v4239
    %v4527 = vpop.f32.mrb[0].mxu0
    %v4528 = vadd.f32 %v4455, %v4527
    %v4529 = vpop.f32.mrb[0].mxu0
    %v4530 = vpop.f32.mrb[0].mxu0
    %v4531 = vadd.f32 %v4458, %v4530
    %v4532 = vpop.f32.mrb[0].mxu0
    %4533 = vmatprep.mubr.bf16.mxu0 %v4251
    %4534 = vmatmul.mubr.bf16.gmra.mrb[0].mxu0 %v4250
    %v4535 = vpop.f32.mrb[0].mxu0
    %v4536 = vadd.f32 %v4463, %v4535
    %v4537 = vpop.f32.mrb[0].mxu0
    %v4538 = vpop.f32.mrb[0].mxu0
    %v4539 = vadd.f32 %v4466, %v4538
    %v4540 = vpop.f32.mrb[0].mxu0
    %4541 = vdwg.mxu0
    %4542 = vmatprep.subr.bf16.mxu0 0
    %4543 = vmatpush1.bf16.msra.mxu0 %v3935
    %4544 = vmatprep.subr.bf16.mxu0 0
    %4545 = vmatpush1.bf16.msra.mxu0 %v3936
    %4546 = vmatprep.subr.bf16.mxu0 0
    %4547 = vmatpush1.bf16.msra.mxu0 %v3937
    %4548 = vmatprep.subr.bf16.mxu0 0
    %4549 = vmatpush1.bf16.msra.mxu0 %v3938
    %4550 = vmatprep.subr.bf16.mxu0 0
    %4551 = vmatpush1.bf16.msra.mxu0 %v3939
    %4552 = vmatprep.subr.bf16.mxu0 0
    %4553 = vmatpush1.bf16.msra.mxu0 %v3940
    %4554 = vmatprep.subr.bf16.mxu0 0
    %4555 = vmatpush1.bf16.msra.mxu0 %v3941
    %4556 = vmatprep.subr.bf16.mxu0 0
    %4557 = vmatpush1.bf16.msra.mxu0 %v3942
    %4558 = vmatprep.subr.bf16.mxu0 0
    %4559 = vmatpush1.bf16.msra.mxu0 %v3943
    %4560 = vmatprep.subr.bf16.mxu0 0
    %4561 = vmatpush1.bf16.msra.mxu0 %v3944
    %4562 = vmatprep.subr.bf16.mxu0 0
    %4563 = vmatpush1.bf16.msra.mxu0 %v3945
    %4564 = vmatprep.subr.bf16.mxu0 0
    %4565 = vmatpush1.bf16.msra.mxu0 %v3946
    %4566 = vmatprep.subr.bf16.mxu0 0
    %4567 = vmatpush1.bf16.msra.mxu0 %v3947
    %4568 = vmatprep.subr.bf16.mxu0 0
    %4569 = vmatpush1.bf16.msra.mxu0 %v3948
    %4570 = vmatprep.subr.bf16.mxu0 0
    %4571 = vmatpush1.bf16.msra.mxu0 %v3949
    %4572 = vmatprep.subr.bf16.mxu0 0
    %4573 = vmatpush1.bf16.msra.mxu0 %v3950
    %4574 = vmatprep.mubr.bf16.mxu0 %v4209
    %4575 = vmatmul.mubr.bf16.gmra.mrb[0].mxu0 %v4208
    %v4576 = vpop.f32.mrb[0].mxu0
    %v4577 = vadd.f32 %v4504, %v4576
    %v4578 = vpop.f32.mrb[0].mxu0
    %v4579 = vpop.f32.mrb[0].mxu0
    %v4580 = vadd.f32 %v4507, %v4579
    %v4581 = vpop.f32.mrb[0].mxu0
    %4582 = vmatprep.mubr.bf16.mxu0 %v4220
    %4583 = vmatmul.mubr.bf16.gmra.mrb[0].mxu0 %v4219
    %v4584 = vpop.f32.mrb[0].mxu0
    %v4585 = vadd.f32 %v4512, %v4584
    %v4586 = vpop.f32.mrb[0].mxu0
    %v4587 = vpop.f32.mrb[0].mxu0
    %v4588 = vadd.f32 %v4515, %v4587
    %v4589 = vpop.f32.mrb[0].mxu0
    %4590 = vmatprep.mubr.bf16.mxu0 %v4231
    %4591 = vmatmul.mubr.bf16.gmra.mrb[0].mxu0 %v4230
    %v4592 = vpop.f32.mrb[0].mxu0
    %v4593 = vadd.f32 %v4520, %v4592
    %v4594 = vpop.f32.mrb[0].mxu0
    %v4595 = vpop.f32.mrb[0].mxu0
    %v4596 = vadd.f32 %v4523, %v4595
    %v4597 = vpop.f32.mrb[0].mxu0
    %4598 = vmatprep.mubr.bf16.mxu0 %v4242
    %4599 = vmatmul.mubr.bf16.gmra.mrb[0].mxu0 %v4241
    %v4600 = vpop.f32.mrb[0].mxu0
    %v4601 = vadd.f32 %v4528, %v4600
    %v4602 = vpop.f32.mrb[0].mxu0
    %v4603 = vpop.f32.mrb[0].mxu0
    %v4604 = vadd.f32 %v4531, %v4603
    %v4605 = vpop.f32.mrb[0].mxu0
    %4606 = vmatprep.mubr.bf16.mxu0 %v4253
    %4607 = vmatmul.mubr.bf16.gmra.mrb[0].mxu0 %v4252
    %v4608 = vpop.f32.mrb[0].mxu0
    %v4609 = vadd.f32 %v4536, %v4608
    %v4610 = vpop.f32.mrb[0].mxu0
    %v4611 = vpop.f32.mrb[0].mxu0
    %v4612 = vadd.f32 %v4539, %v4611
    %v4613 = vpop.f32.mrb[0].mxu0
    %4614 = vdwg.mxu0
    %4615 = vmatprep.subr.bf16.mxu0 0
    %4616 = vmatpush1.bf16.msra.mxu0 %v3951
    %4617 = vmatprep.subr.bf16.mxu0 0
    %4618 = vmatpush1.bf16.msra.mxu0 %v3952
    %4619 = vmatprep.subr.bf16.mxu0 0
    %4620 = vmatpush1.bf16.msra.mxu0 %v3953
    %4621 = vmatprep.subr.bf16.mxu0 0
    %4622 = vmatpush1.bf16.msra.mxu0 %v3954
    %4623 = vmatprep.subr.bf16.mxu0 0
    %4624 = vmatpush1.bf16.msra.mxu0 %v3955
    %4625 = vmatprep.subr.bf16.mxu0 0
    %4626 = vmatpush1.bf16.msra.mxu0 %v3956
    %4627 = vmatprep.subr.bf16.mxu0 0
    %4628 = vmatpush1.bf16.msra.mxu0 %v3957
    %4629 = vmatprep.subr.bf16.mxu0 0
    %4630 = vmatpush1.bf16.msra.mxu0 %v3958
    %4631 = vmatprep.subr.bf16.mxu0 0
    %4632 = vmatpush1.bf16.msra.mxu0 %v3959
    %4633 = vmatprep.subr.bf16.mxu0 0
    %4634 = vmatpush1.bf16.msra.mxu0 %v3960
    %4635 = vmatprep.subr.bf16.mxu0 0
    %4636 = vmatpush1.bf16.msra.mxu0 %v3961
    %4637 = vmatprep.subr.bf16.mxu0 0
    %4638 = vmatpush1.bf16.msra.mxu0 %v3962
    %4639 = vmatprep.subr.bf16.mxu0 0
    %4640 = vmatpush1.bf16.msra.mxu0 %v3963
    %4641 = vmatprep.subr.bf16.mxu0 0
    %4642 = vmatpush1.bf16.msra.mxu0 %v3964
    %4643 = vmatprep.subr.bf16.mxu0 0
    %4644 = vmatpush1.bf16.msra.mxu0 %v3965
    %4645 = vmatprep.subr.bf16.mxu0 0
    %4646 = vmatpush1.bf16.msra.mxu0 %v3966
    %4647 = vmatprep.mubr.bf16.mxu0 %v4211
    %4648 = vmatmul.mubr.bf16.gmra.mrb[0].mxu0 %v4210
    %v4649 = vpop.f32.mrb[0].mxu0
    %v4650 = vadd.f32 %v4577, %v4649
    %v4651 = vpop.f32.mrb[0].mxu0
    %v4652 = vpop.f32.mrb[0].mxu0
    %v4653 = vadd.f32 %v4580, %v4652
    %v4654 = vpop.f32.mrb[0].mxu0
    %4655 = vmatprep.mubr.bf16.mxu0 %v4222
    %4656 = vmatmul.mubr.bf16.gmra.mrb[0].mxu0 %v4221
    %v4657 = vpop.f32.mrb[0].mxu0
    %v4658 = vadd.f32 %v4585, %v4657
    %v4659 = vpop.f32.mrb[0].mxu0
    %v4660 = vpop.f32.mrb[0].mxu0
    %v4661 = vadd.f32 %v4588, %v4660
    %v4662 = vpop.f32.mrb[0].mxu0
    %4663 = vmatprep.mubr.bf16.mxu0 %v4233
    %4664 = vmatmul.mubr.bf16.gmra.mrb[0].mxu0 %v4232
    %v4665 = vpop.f32.mrb[0].mxu0
    %v4666 = vadd.f32 %v4593, %v4665
    %v4667 = vpop.f32.mrb[0].mxu0
    %v4668 = vpop.f32.mrb[0].mxu0
    %v4669 = vadd.f32 %v4596, %v4668
    %v4670 = vpop.f32.mrb[0].mxu0
    %4671 = vmatprep.mubr.bf16.mxu0 %v4244
    %4672 = vmatmul.mubr.bf16.gmra.mrb[0].mxu0 %v4243
    %v4673 = vpop.f32.mrb[0].mxu0
    %v4674 = vadd.f32 %v4601, %v4673
    %v4675 = vpop.f32.mrb[0].mxu0
    %v4676 = vpop.f32.mrb[0].mxu0
    %v4677 = vadd.f32 %v4604, %v4676
    %v4678 = vpop.f32.mrb[0].mxu0
    %4679 = vmatprep.mubr.bf16.mxu0 %v4255
    %4680 = vmatmul.mubr.bf16.gmra.mrb[0].mxu0 %v4254
    %v4681 = vpop.f32.mrb[0].mxu0
    %v4682 = vadd.f32 %v4609, %v4681
    %v4683 = vpop.f32.mrb[0].mxu0
    %v4684 = vpop.f32.mrb[0].mxu0
    %v4685 = vadd.f32 %v4612, %v4684
    %v4686 = vpop.f32.mrb[0].mxu0
    %4687 = vdwg.mxu0
    %4688 = vmatprep.subr.bf16.mxu0 0
    %4689 = vmatpush1.bf16.msra.mxu0 %v3967
    %4690 = vmatprep.subr.bf16.mxu0 0
    %4691 = vmatpush1.bf16.msra.mxu0 %v3968
    %4692 = vmatprep.subr.bf16.mxu0 0
    %4693 = vmatpush1.bf16.msra.mxu0 %v3969
    %4694 = vmatprep.subr.bf16.mxu0 0
    %4695 = vmatpush1.bf16.msra.mxu0 %v3970
    %4696 = vmatprep.subr.bf16.mxu0 0
    %4697 = vmatpush1.bf16.msra.mxu0 %v3971
    %4698 = vmatprep.subr.bf16.mxu0 0
    %4699 = vmatpush1.bf16.msra.mxu0 0
    %4700 = vmatprep.subr.bf16.mxu0 0
    %4701 = vmatpush1.bf16.msra.mxu0 0
    %4702 = vmatprep.subr.bf16.mxu0 0
    %4703 = vmatpush1.bf16.msra.mxu0 0
    %4704 = vmatprep.subr.bf16.mxu0 0
    %4705 = vmatpush1.bf16.msra.mxu0 0
    %4706 = vmatprep.subr.bf16.mxu0 0
    %4707 = vmatpush1.bf16.msra.mxu0 0
    %4708 = vmatprep.subr.bf16.mxu0 0
    %4709 = vmatpush1.bf16.msra.mxu0 0
    %4710 = vmatprep.subr.bf16.mxu0 0
    %4711 = vmatpush1.bf16.msra.mxu0 0
    %4712 = vmatprep.subr.bf16.mxu0 0
    %4713 = vmatpush1.bf16.msra.mxu0 0
    %4714 = vmatprep.subr.bf16.mxu0 0
    %4715 = vmatpush1.bf16.msra.mxu0 0
    %4716 = vmatprep.subr.bf16.mxu0 0
    %4717 = vmatpush1.bf16.msra.mxu0 0
    %4718 = vmatprep.subr.bf16.mxu0 0
    %4719 = vmatpush1.bf16.msra.mxu0 0
    %4720 = vmatprep.mubr.bf16.mxu0 0
    %4721 = vmatmul.mubr.bf16.gmra.mrb[0].mxu0 %v4309
    %v4722 = vpop.f32.mrb[0].mxu0
    %v4723 = vadd.f32 %v4650, %v4722
    %v4724 = vpop.f32.mrb[0].mxu0
    %v4725 = vpop.f32.mrb[0].mxu0
    %v4726 = vadd.f32 %v4653, %v4725
    %v4727 = vpop.f32.mrb[0].mxu0
    %4728 = vmatprep.mubr.bf16.mxu0 0
    %4729 = vmatmul.mubr.bf16.gmra.mrb[0].mxu0 %v4312
    %v4730 = vpop.f32.mrb[0].mxu0
    %v4731 = vadd.f32 %v4658, %v4730
    %v4732 = vpop.f32.mrb[0].mxu0
    %v4733 = vpop.f32.mrb[0].mxu0
    %v4734 = vadd.f32 %v4661, %v4733
    %v4735 = vpop.f32.mrb[0].mxu0
    %4736 = vmatprep.mubr.bf16.mxu0 0
    %4737 = vmatmul.mubr.bf16.gmra.mrb[0].mxu0 %v4315
    %v4738 = vpop.f32.mrb[0].mxu0
    %v4739 = vadd.f32 %v4666, %v4738
    %v4740 = vpop.f32.mrb[0].mxu0
    %v4741 = vpop.f32.mrb[0].mxu0
    %v4742 = vadd.f32 %v4669, %v4741
    %v4743 = vpop.f32.mrb[0].mxu0
    %4744 = vmatprep.mubr.bf16.mxu0 0
    %4745 = vmatmul.mubr.bf16.gmra.mrb[0].mxu0 %v4318
    %v4746 = vpop.f32.mrb[0].mxu0
    %v4747 = vadd.f32 %v4674, %v4746
    %v4748 = vpop.f32.mrb[0].mxu0
    %v4749 = vpop.f32.mrb[0].mxu0
    %v4750 = vadd.f32 %v4677, %v4749
    %v4751 = vpop.f32.mrb[0].mxu0
    %4752 = vmatprep.mubr.bf16.mxu0 0
    %4753 = vmatmul.mubr.bf16.gmra.mrb[0].mxu0 %v4321
    %v4754 = vpop.f32.mrb[0].mxu0
    %v4755 = vadd.f32 %v4682, %v4754
    %v4756 = vpop.f32.mrb[0].mxu0
    %v4757 = vpop.f32.mrb[0].mxu0
    %v4758 = vadd.f32 %v4685, %v4757
    %v4759 = vpop.f32.mrb[0].mxu0
    %4760 = vdwg.mxu0
    %v4761 = vmax.f32 %v4723, 0.0
    %v4762 = vmax.f32 %v4726, 0.0
    %v4763 = vmax.f32 %v4731, 0.0
    %v4764 = vmax.f32 %v4734, 0.0
    %v4765 = vmax.f32 %v4739, 0.0
    %v4766 = vmax.f32 %v4742, 0.0
    %v4767 = vmax.f32 %v4747, 0.0
    %v4768 = vmax.f32 %v4750, 0.0
    %v4769 = vmax.f32 %v4755, 0.0
    %v4770 = vmax.f32 %v4758, 0.0
    %v4771 = vld [vmem:[%s4] sm:$0xf]
    %v4772 = vld [vmem:[%s4 + $0x4] sm:$0xf]
    %v4773 = vld [vmem:[%s4 + $0x8] sm:$0xf]
    %v4774 = vld [vmem:[%s4 + $0xc] sm:$0xf]
    %v4775 = vld [vmem:[%s4 + $0x10] sm:$0xf]
    %v4776 = vpack.c.bf16 %v4762, %v4761
    %v4777 = vpack.c.bf16 %v4764, %v4763
    %v4778 = vpack.c.bf16 %v4766, %v4765
    %v4779 = vpack.c.bf16 %v4768, %v4767
    %v4780 = vpack.c.bf16 %v4770, %v4769
    %v4781 = vld [vmem:[%s5] sm:$0xff]
    %v4782 = vld [vmem:[%s5 + $0x8] sm:$0xff]
    %v4783 = vld [vmem:[%s5 + $0x10] sm:$0xff]
    %v4784 = vld [vmem:[%s5 + $0x18] sm:$0xff]
    %v4785 = vld [vmem:[%s5 + $0x20] sm:$0xff]
    %4787 = vset.pattern.permute.xlu0 0
    %4788 = vperm.xlu0 %4787, %v4781
    %v4789 = vpop.permute.xlu0 %4788
    %4792 = vset.pattern.permute.xlu0 0
    %4793 = vperm.xlu0 %4792, %v4782
    %v4794 = vpop.permute.xlu0 %4793
    %4797 = vset.pattern.permute.xlu0 0
    %4798 = vperm.xlu0 %4797, %v4783
    %v4799 = vpop.permute.xlu0 %4798
    %4802 = vset.pattern.permute.xlu0 0
    %4803 = vperm.xlu0 %4802, %v4784
    %v4804 = vpop.permute.xlu0 %4803
    %4807 = vset.pattern.permute.xlu0 0
    %4808 = vperm.xlu0 %4807, %v4785
    %v4809 = vpop.permute.xlu0 %4808
    %v4816 = vunpack.c.l.b16 %v4771
    %v4817 = vunpack.c.l.b16 %v4772
    %v4818 = vunpack.c.l.b16 %v4773
    %v4819 = vunpack.c.l.b16 %v4774
    %v4820 = vunpack.c.l.b16 %v4775
    %v4821 = vpack.c.b16 %v4817, %v4816
    %v4822 = vpack.c.b16 %v4819, %v4818
    %v4823 = vpack.c.b16 %v4820, %v4820
    %v4825 = vsel %vm4307, %v4821, 0
    %v4828 = vsel %vm4307, %v4822, 0
    %v4831 = vsel %vm4307, %v4823, 0
    %4833 = vmatprep.subr.bf16.mxu0 0
    %4834 = vmatpush1.bf16.msra.mxu0 %v4776
    %4835 = vmatprep.subr.bf16.mxu0 0
    %4836 = vmatpush1.bf16.msra.mxu0 %v4777
    %4837 = vmatprep.subr.bf16.mxu0 0
    %4838 = vmatpush1.bf16.msra.mxu0 %v4778
    %4839 = vmatprep.subr.bf16.mxu0 0
    %4840 = vmatpush1.bf16.msra.mxu0 %v4779
    %4841 = vmatprep.subr.bf16.mxu0 0
    %4842 = vmatpush1.bf16.msra.mxu0 %v4780
    %4843 = vmatprep.subr.bf16.mxu0 0
    %4844 = vmatpush1.bf16.msra.mxu0 0
    %4845 = vmatprep.subr.bf16.mxu0 0
    %4846 = vmatpush1.bf16.msra.mxu0 0
    %4847 = vmatprep.subr.bf16.mxu0 0
    %4848 = vmatpush1.bf16.msra.mxu0 0
    %4849 = vmatprep.subr.bf16.mxu0 0
    %4850 = vmatpush1.bf16.msra.mxu0 0
    %4851 = vmatprep.subr.bf16.mxu0 0
    %4852 = vmatpush1.bf16.msra.mxu0 0
    %4853 = vmatprep.subr.bf16.mxu0 0
    %4854 = vmatpush1.bf16.msra.mxu0 0
    %4855 = vmatprep.subr.bf16.mxu0 0
    %4856 = vmatpush1.bf16.msra.mxu0 0
    %4857 = vmatprep.subr.bf16.mxu0 0
    %4858 = vmatpush1.bf16.msra.mxu0 0
    %4859 = vmatprep.subr.bf16.mxu0 0
    %4860 = vmatpush1.bf16.msra.mxu0 0
    %4861 = vmatprep.subr.bf16.mxu0 0
    %4862 = vmatpush1.bf16.msra.mxu0 0
    %4863 = vmatprep.subr.bf16.mxu0 0
    %4864 = vmatpush1.bf16.msra.mxu0 0
    %4865 = vmatprep.mubr.bf16.mxu0 0
    %4866 = vmatmul.mubr.bf16.gmra.mrb[0].mxu0 %v4825
    %v4867 = vpop.f32.mrb[0].mxu0
    %v4868 = vadd.f32 %v4789, %v4867
    %v4869 = vpop.f32.mrb[0].mxu0
    %v4870 = vpop.f32.mrb[0].mxu0
    %v4871 = vadd.f32 %v4794, %v4870
    %v4872 = vpop.f32.mrb[0].mxu0
    %4873 = vmatprep.mubr.bf16.mxu0 0
    %4874 = vmatmul.mubr.bf16.gmra.mrb[0].mxu0 %v4828
    %v4875 = vpop.f32.mrb[0].mxu0
    %v4876 = vadd.f32 %v4799, %v4875
    %v4877 = vpop.f32.mrb[0].mxu0
    %v4878 = vpop.f32.mrb[0].mxu0
    %v4879 = vadd.f32 %v4804, %v4878
    %v4880 = vpop.f32.mrb[0].mxu0
    %4881 = vmatprep.mubr.bf16.mxu0 0
    %4882 = vmatmul.mubr.bf16.gmra.mrb[0].mxu0 %v4831
    %v4883 = vpop.f32.mrb[0].mxu0
    %v4884 = vadd.f32 %v4809, %v4883
    %v4885 = vpop.f32.mrb[0].mxu0
    %v4886 = vpop.f32.mrb[0].mxu0
    %v4887 = vpop.f32.mrb[0].mxu0
    %4888 = vdwg.mxu0
    %v4889 = vmax.f32 %v4868, 0.0
    %v4890 = vmax.f32 %v4871, 0.0
    %v4891 = vmax.f32 %v4876, 0.0
    %v4892 = vmax.f32 %v4879, 0.0
    %v4893 = vmax.f32 %v4884, 0.0
    %v4894 = vld [vmem:[%s6] sm:$0xf]
    %v4895 = vld [vmem:[%s6 + $0x4] sm:$0xf]
    %v4896 = vld [vmem:[%s6 + $0x8] sm:$0xf]
    %v4897 = vld [vmem:[%s6 + $0xc] sm:$0xf]
    %v4898 = vld [vmem:[%s6 + $0x10] sm:$0xf]
    %v4899 = vpack.c.bf16 %v4890, %v4889
    %v4900 = vpack.c.bf16 %v4892, %v4891
    %v4901 = vpack.c.bf16 %v4893, %v4893
    %v4902 = vld [vmem:[%s7] sm:$0xff]
    %v4903 = vld [vmem:[%s7 + $0x8] sm:$0xff]
    %v4904 = vld [vmem:[%s7 + $0x10] sm:$0xff]
    %v4905 = vld [vmem:[%s7 + $0x18] sm:$0xff]
    %v4906 = vld [vmem:[%s7 + $0x20] sm:$0xff]
    %4908 = vset.pattern.permute.xlu0 0
    %4909 = vperm.xlu0 %4908, %v4902
    %v4910 = vpop.permute.xlu0 %4909
    %4913 = vset.pattern.permute.xlu0 0
    %4914 = vperm.xlu0 %4913, %v4903
    %v4915 = vpop.permute.xlu0 %4914
    %4918 = vset.pattern.permute.xlu0 0
    %4919 = vperm.xlu0 %4918, %v4904
    %v4920 = vpop.permute.xlu0 %4919
    %4923 = vset.pattern.permute.xlu0 0
    %4924 = vperm.xlu0 %4923, %v4905
    %v4925 = vpop.permute.xlu0 %4924
    %4928 = vset.pattern.permute.xlu0 0
    %4929 = vperm.xlu0 %4928, %v4906
    %v4930 = vpop.permute.xlu0 %4929
    %v4937 = vunpack.c.l.b16 %v4894
    %v4938 = vunpack.c.l.b16 %v4895
    %v4939 = vunpack.c.l.b16 %v4896
    %v4940 = vunpack.c.l.b16 %v4897
    %v4941 = vunpack.c.l.b16 %v4898
    %v4942 = vpack.c.b16 %v4938, %v4937
    %v4943 = vpack.c.b16 %v4940, %v4939
    %v4944 = vpack.c.b16 %v4941, %v4941
    %vm4945 = vcmask 326656
    %v4947 = vsel %vm4945, %v4942, 0
    %v4950 = vsel %vm4945, %v4943, 0
    %v4953 = vsel %vm4945, %v4944, 0
    %vm4955 = vcmask 1043456
    %v4957 = vsel %vm4955, %v4901, 0
    %4959 = vmatprep.subr.bf16.mxu0 0
    %4960 = vmatpush1.bf16.msra.mxu0 %v4899
    %4961 = vmatprep.subr.bf16.mxu0 0
    %4962 = vmatpush1.bf16.msra.mxu0 %v4900
    %4963 = vmatprep.subr.bf16.mxu0 0
    %4964 = vmatpush1.bf16.msra.mxu0 %v4957
    %4965 = vmatprep.subr.bf16.mxu0 0
    %4966 = vmatpush1.bf16.msra.mxu0 0
    %4967 = vmatprep.subr.bf16.mxu0 0
    %4968 = vmatpush1.bf16.msra.mxu0 0
    %4969 = vmatprep.subr.bf16.mxu0 0
    %4970 = vmatpush1.bf16.msra.mxu0 0
    %4971 = vmatprep.subr.bf16.mxu0 0
    %4972 = vmatpush1.bf16.msra.mxu0 0
    %4973 = vmatprep.subr.bf16.mxu0 0
    %4974 = vmatpush1.bf16.msra.mxu0 0
    %4975 = vmatprep.subr.bf16.mxu0 0
    %4976 = vmatpush1.bf16.msra.mxu0 0
    %4977 = vmatprep.subr.bf16.mxu0 0
    %4978 = vmatpush1.bf16.msra.mxu0 0
    %4979 = vmatprep.subr.bf16.mxu0 0
    %4980 = vmatpush1.bf16.msra.mxu0 0
    %4981 = vmatprep.subr.bf16.mxu0 0
    %4982 = vmatpush1.bf16.msra.mxu0 0
    %4983 = vmatprep.subr.bf16.mxu0 0
    %4984 = vmatpush1.bf16.msra.mxu0 0
    %4985 = vmatprep.subr.bf16.mxu0 0
    %4986 = vmatpush1.bf16.msra.mxu0 0
    %4987 = vmatprep.subr.bf16.mxu0 0
    %4988 = vmatpush1.bf16.msra.mxu0 0
    %4989 = vmatprep.subr.bf16.mxu0 0
    %4990 = vmatpush1.bf16.msra.mxu0 0
    %4991 = vmatprep.mubr.bf16.mxu0 0
    %4992 = vmatmul.mubr.bf16.gmra.mrb[0].mxu0 %v4947
    %v4993 = vpop.f32.mrb[0].mxu0
    %v4994 = vadd.f32 %v4910, %v4993
    %v4995 = vpop.f32.mrb[0].mxu0
    %v4996 = vpop.f32.mrb[0].mxu0
    %v4997 = vadd.f32 %v4915, %v4996
    %v4998 = vpop.f32.mrb[0].mxu0
    %4999 = vmatprep.mubr.bf16.mxu0 0
    %5000 = vmatmul.mubr.bf16.gmra.mrb[0].mxu0 %v4950
    %v5001 = vpop.f32.mrb[0].mxu0
    %v5002 = vadd.f32 %v4920, %v5001
    %v5003 = vpop.f32.mrb[0].mxu0
    %v5004 = vpop.f32.mrb[0].mxu0
    %v5005 = vadd.f32 %v4925, %v5004
    %v5006 = vpop.f32.mrb[0].mxu0
    %5007 = vmatprep.mubr.bf16.mxu0 0
    %5008 = vmatmul.mubr.bf16.gmra.mrb[0].mxu0 %v4953
    %v5009 = vpop.f32.mrb[0].mxu0
    %v5010 = vadd.f32 %v4930, %v5009
    %v5011 = vpop.f32.mrb[0].mxu0
    %v5012 = vpop.f32.mrb[0].mxu0
    %v5013 = vpop.f32.mrb[0].mxu0
    %5014 = vdwg.mxu0
    %v5015 = vmax.f32 %v4994, 0.0
    %v5016 = vmax.f32 %v4997, 0.0
    %v5017 = vmax.f32 %v5002, 0.0
    %v5018 = vmax.f32 %v5005, 0.0
    %v5019 = vmax.f32 %v5010, 0.0
    %v5020 = vld [vmem:[%s8] sm:$0x1]
    %v5021 = vpack.c.bf16 %v5016, %v5015
    %v5022 = vpack.c.bf16 %v5018, %v5017
    %v5023 = vpack.c.bf16 %v5019, %v5019
    %v5024 = vld [vmem:[#allocation3] sm:$0x1]
    %5026 = vset.pattern.permute.xlu0 0
    %5027 = vperm.xlu0 %5026, %v5024
    %v5028 = vpop.permute.xlu0 %5027
    %v5030 = vlaneseq
    %v5031 = vshrl.u32 %v5030, 7
    %v5032 = vsub.s32 0, %v5031
    %v5033 = vrot.slane %v5028, %v5032
    %v5035 = vsel %vm4945, %v5020, 0
    %v5038 = vsel %vm4955, %v5023, 0
    %5040 = vmatprep.subr.bf16.mxu0 0
    %5041 = vmatpush1.bf16.msra.mxu0 %v5021
    %5042 = vmatprep.subr.bf16.mxu0 0
    %5043 = vmatpush1.bf16.msra.mxu0 %v5022
    %5044 = vmatprep.subr.bf16.mxu0 0
    %5045 = vmatpush1.bf16.msra.mxu0 %v5038
    %5046 = vmatprep.subr.bf16.mxu0 0
    %5047 = vmatpush1.bf16.msra.mxu0 0
    %5048 = vmatprep.subr.bf16.mxu0 0
    %5049 = vmatpush1.bf16.msra.mxu0 0
    %5050 = vmatprep.subr.bf16.mxu0 0
    %5051 = vmatpush1.bf16.msra.mxu0 0
    %5052 = vmatprep.subr.bf16.mxu0 0
    %5053 = vmatpush1.bf16.msra.mxu0 0
    %5054 = vmatprep.subr.bf16.mxu0 0
    %5055 = vmatpush1.bf16.msra.mxu0 0
    %5056 = vmatprep.subr.bf16.mxu0 0
    %5057 = vmatpush1.bf16.msra.mxu0 0
    %5058 = vmatprep.subr.bf16.mxu0 0
    %5059 = vmatpush1.bf16.msra.mxu0 0
    %5060 = vmatprep.subr.bf16.mxu0 0
    %5061 = vmatpush1.bf16.msra.mxu0 0
    %5062 = vmatprep.subr.bf16.mxu0 0
    %5063 = vmatpush1.bf16.msra.mxu0 0
    %5064 = vmatprep.subr.bf16.mxu0 0
    %5065 = vmatpush1.bf16.msra.mxu0 0
    %5066 = vmatprep.subr.bf16.mxu0 0
    %5067 = vmatpush1.bf16.msra.mxu0 0
    %5068 = vmatprep.subr.bf16.mxu0 0
    %5069 = vmatpush1.bf16.msra.mxu0 0
    %5070 = vmatprep.subr.bf16.mxu0 0
    %5071 = vmatpush1.bf16.msra.mxu0 0
    %5072 = vmatprep.mubr.bf16.mxu0 0
    %5073 = vmatmul.mubr.bf16.gmra.mrb[0].mxu0 %v5035
    %v5074 = vpop.f32.mrb[0].mxu0
    %v5075 = vadd.f32 %v5033, %v5074
    %v5076 = vpop.f32.mrb[0].mxu0
    %v5077 = vpop.f32.mrb[0].mxu0
    %v5078 = vpop.f32.mrb[0].mxu0
    %5079 = vdwg.mxu0
    %v5080 = vxor.u32 %v5075, 2147483648
    %v5081 = vmul.f32 %v5080, 1.442695
    %v5082 = vpow.pop %v5081
    %v5083 = vadd.f32 %v5082, 1.0
    %v5084 = vrcp.pop %v5083
    %v5085 = vmul.f32 1.0, %v5084
    %5086 = vst [vmem:[#allocation9] sm:$0x1] %v5085
    // Predicated region
    $region50: #{tpu_custom_call.1} parent=1 // pred_check
      _
    $region51: #{tpu_custom_call.1} parent=1 // pred_check_branch
      %5088 = sbr.rel (0) target = $region53
    $region52: #{tpu_custom_call.1} parent=1 // pred_region
      %s5090 = ssub.s32 16, 16
      %5091 = vsyncadd [#allocation6], %s5090
      %s5093 = sshll.u32 [#allocation9], 4
      %s5094 = int_to_ptr.vmem [resolvable:$true] %s5093
      %5096 = dma.vmem_to_hbm [thread:$0]  %s5094, 16, %s10, [#allocation6]
    $region53: #{tpu_custom_call.1} parent=1 // pred_fallthru
      _
    // Predicated region
    $region54: #{tpu_custom_call.1} parent=1 // pred_check
      _
    $region55: #{tpu_custom_call.1} parent=1 // pred_check_branch
      %5098 = sbr.rel (0) target = $region57
    $region56: #{tpu_custom_call.1} parent=1 // pred_region
      %5099 = dma.done [#allocation6], 16
    $region57: #{tpu_custom_call.1} parent=1 // pred_fallthru
      _
    %5100 = vsyncpa [#allocation5], 1
    %5101 = vsyncpa [#allocation8], 1
    %5102 = vsyncpa [#allocation6], 1

</llo_original>
